<compile_context>
chip_gen: v6e
topology: v6e:2x2x1
jax: 0.10.0
libtpu: 0.0.40
codegen_flags: <defaults>
</compile_context>

<pallas_src>
import math

import jax
import jax.numpy as jnp
from jax import lax
from jax.experimental import pallas as pl
from jax.experimental.pallas import tpu as pltpu

# ----------------------------- small ViT config ------------------------------
BATCH = 2
CHANNELS = 3          # ViT pixel_values are RGB
IMAGE = 16
PATCH = 8
HIDDEN = 32
HEADS = 4
HEAD_DIM = HIDDEN // HEADS
LAYERS = 2
MLP = 4 * HIDDEN
NUM_CLASSES = 5
LN_EPS = 1e-12        # HF ViT layer_norm_eps
NUM_PATCHES = (IMAGE // PATCH) ** 2      # 4
SEQ = NUM_PATCHES + 1                    # 5 (+1 CLS token)
SEQ_PAD = 8                              # sublane-aligned padded sequence
ROWS = BATCH * SEQ_PAD                   # 16 token rows in the fused slab
PATCH_DIM = CHANNELS * PATCH * PATCH     # 192
CLS_PAD = 128                            # lane-dense classifier output width
NEG_INF = -1e30


# ------------------------------ fused Pallas kernel ---------------------------
def _layernorm(x, g, b):
    mu = jnp.mean(x, axis=-1, keepdims=True)
    var = jnp.mean(jnp.square(x - mu), axis=-1, keepdims=True)
    return (x - mu) * lax.rsqrt(var + LN_EPS) * g + b


def _gelu_exact(x):
    # exact (erf) GELU, matching HF ViT's default "gelu"
    return 0.5 * x * (1.0 + lax.erf(x * (1.0 / math.sqrt(2.0))))


def _vit_kernel(tokens_ref, tok_add_ref, bias_ref, patch_w_ref,
                ln1_g_ref, ln1_b_ref, w_qkv_ref, b_qkv_ref, wo_ref, bo_ref,
                ln2_g_ref, ln2_b_ref, w_fc1_ref, b_fc1_ref, w_fc2_ref, b_fc2_ref,
                ln_f_g_ref, ln_f_b_ref, head_w_ref, head_b_ref,
                o_ref):
    f32 = jnp.float32
    scale = 1.0 / math.sqrt(HEAD_DIM)

    # Patch embedding (Conv2d kernel=stride=PATCH as one matmul).
    # CLS token, position embeddings and patch bias are pre-folded into tok_add.
    x = (jnp.dot(tokens_ref[...], patch_w_ref[...], preferred_element_type=f32)
         + tok_add_ref[...])                          # (ROWS, HIDDEN)
    bias = bias_ref[...]                              # (ROWS, ROWS) additive attn mask

    for l in range(LAYERS):   # unrolled; all params/activations stay resident
        # ---------------- attention block (pre-LN) ----------------
        xn = _layernorm(x, ln1_g_ref[l], ln1_b_ref[l])
        qkv = jnp.dot(xn, w_qkv_ref[l], preferred_element_type=f32) + b_qkv_ref[l]
        wo = wo_ref[l]
        attn = jnp.zeros_like(x)
        for h in range(HEADS):
            q = qkv[:, h * HEAD_DIM:(h + 1) * HEAD_DIM]
            k = qkv[:, HIDDEN + h * HEAD_DIM:HIDDEN + (h + 1) * HEAD_DIM]
            v = qkv[:, 2 * HIDDEN + h * HEAD_DIM:2 * HIDDEN + (h + 1) * HEAD_DIM]
            # q @ k^T over all (batch-padded) rows; cross-batch / pad keys masked by bias
            s = lax.dot_general(q, k, (((1,), (1,)), ((), ())),
                                preferred_element_type=f32) * scale + bias
            m = jnp.max(s, axis=-1, keepdims=True)
            p = jnp.exp(s - m)
            p = p / jnp.sum(p, axis=-1, keepdims=True)
            ctx = jnp.dot(p, v, preferred_element_type=f32)
            # output projection folded per head: concat_h(ctx_h) @ Wo == sum_h ctx_h @ Wo[h]
            attn = attn + jnp.dot(ctx, wo[h * HEAD_DIM:(h + 1) * HEAD_DIM, :],
                                  preferred_element_type=f32)
        x = x + attn + bo_ref[l]                      # residual 1

        # ---------------- MLP block (pre-LN, exact GELU) ----------------
        xn2 = _layernorm(x, ln2_g_ref[l], ln2_b_ref[l])
        hid = _gelu_exact(jnp.dot(xn2, w_fc1_ref[l], preferred_element_type=f32)
                          + b_fc1_ref[l])
        x = x + jnp.dot(hid, w_fc2_ref[l], preferred_element_type=f32) + b_fc2_ref[l]

    # final LayerNorm (ViTModel.layernorm) + classifier head (lane-padded to 128)
    xf = _layernorm(x, ln_f_g_ref[...], ln_f_b_ref[...])
    o_ref[...] = (jnp.dot(xf, head_w_ref[...], preferred_element_type=f32)
                  + head_b_ref[...]).astype(o_ref.dtype)


# ------------------------------ parameter init --------------------------------
def init_params(key):
    def normal(k, shape, scale=0.02):
        return scale * jax.random.normal(k, shape, dtype=jnp.float32)

    keys = iter(jax.random.split(key, 16 + 16 * LAYERS))
    params = {
        "patch_w": normal(next(keys), (PATCH_DIM, HIDDEN)),   # conv weight, flattened (c,ph,pw)
        "patch_b": normal(next(keys), (HIDDEN,)),
        "cls": normal(next(keys), (1, 1, HIDDEN)),
        "pos": normal(next(keys), (1, SEQ, HIDDEN)),
        "ln_f_g": jnp.ones((HIDDEN,), jnp.float32),
        "ln_f_b": jnp.zeros((HIDDEN,), jnp.float32),
        "head_w": normal(next(keys), (HIDDEN, NUM_CLASSES)),
        "head_b": jnp.zeros((NUM_CLASSES,), jnp.float32),
        "layers": [],
    }
    for _ in range(LAYERS):
        params["layers"].append({
            "ln1_g": jnp.ones((HIDDEN,), jnp.float32),
            "ln1_b": jnp.zeros((HIDDEN,), jnp.float32),
            "wq": normal(next(keys), (HIDDEN, HIDDEN)), "bq": normal(next(keys), (HIDDEN,)),
            "wk": normal(next(keys), (HIDDEN, HIDDEN)), "bk": normal(next(keys), (HIDDEN,)),
            "wv": normal(next(keys), (HIDDEN, HIDDEN)), "bv": normal(next(keys), (HIDDEN,)),
            "wo": normal(next(keys), (HIDDEN, HIDDEN)), "bo": normal(next(keys), (HIDDEN,)),
            "ln2_g": jnp.ones((HIDDEN,), jnp.float32),
            "ln2_b": jnp.zeros((HIDDEN,), jnp.float32),
            "w_fc1": normal(next(keys), (HIDDEN, MLP)), "b_fc1": normal(next(keys), (MLP,)),
            "w_fc2": normal(next(keys), (MLP, HIDDEN)), "b_fc2": normal(next(keys), (HIDDEN,)),
        })
    return params


# ------------------------------ host-side plumbing -----------------------------
def patchify(x):
    """NCHW -> (B, N, C*P*P) with PyTorch Conv2d(kernel=stride=P) flattening order."""
    B, C, H, W = x.shape
    gh, gw = H // PATCH, W // PATCH
    x = x.reshape(B, C, gh, PATCH, gw, PATCH)
    x = x.transpose(0, 2, 4, 1, 3, 5)                 # (B, gh, gw, C, P, P)
    return x.reshape(B, gh * gw, C * PATCH * PATCH)


def _prep_inputs(params, x):
    """Build the padded token slab, fused additive term, and attention mask."""
    B = x.shape[0]
    patches = patchify(x)                                        # (B, NP, PD)
    tokens = jnp.zeros((B, SEQ_PAD, PATCH_DIM), jnp.float32)
    tokens = tokens.at[:, 1:1 + NUM_PATCHES, :].set(patches)     # row 0 = CLS slot (zeros)
    tokens = tokens.reshape(B * SEQ_PAD, PATCH_DIM)

    # additive term: row0 -> cls + pos[0]; rows 1..SEQ-1 -> patch_b + pos[s]; pad rows -> 0
    tok_add = jnp.zeros((SEQ_PAD, HIDDEN), jnp.float32)
    tok_add = tok_add.at[0].set(params["cls"][0, 0] + params["pos"][0, 0])
    tok_add = tok_add.at[1:SEQ].set(params["patch_b"][None, :] + params["pos"][0, 1:SEQ])
    tok_add = jnp.tile(tok_add, (B, 1))                          # (B*SEQ_PAD, HIDDEN)

    # block-diagonal attention bias: attend only within the same image, pad keys masked
    r = jnp.arange(B * SEQ_PAD)
    same_img = (r[:, None] // SEQ_PAD) == (r[None, :] // SEQ_PAD)
    valid_key = (r[None, :] % SEQ_PAD) < SEQ
    attn_bias = jnp.where(same_img & valid_key, 0.0, NEG_INF).astype(jnp.float32)
    return tokens, tok_add, attn_bias


def _stack_layers(params):
    L = params["layers"]

    def vec(name, width):
        return jnp.stack([lp[name].reshape(1, width) for lp in L])

    w_qkv = jnp.stack([jnp.concatenate([lp["wq"], lp["wk"], lp["wv"]], axis=1) for lp in L])
    b_qkv = jnp.stack([jnp.concatenate([lp["bq"], lp["bk"], lp["bv"]]).reshape(1, 3 * HIDDEN)
                       for lp in L])
    return dict(
        ln1_g=vec("ln1_g", HIDDEN), ln1_b=vec("ln1_b", HIDDEN),
        w_qkv=w_qkv, b_qkv=b_qkv,
        wo=jnp.stack([lp["wo"] for lp in L]), bo=vec("bo", HIDDEN),
        ln2_g=vec("ln2_g", HIDDEN), ln2_b=vec("ln2_b", HIDDEN),
        w_fc1=jnp.stack([lp["w_fc1"] for lp in L]), b_fc1=vec("b_fc1", MLP),
        w_fc2=jnp.stack([lp["w_fc2"] for lp in L]), b_fc2=vec("b_fc2", HIDDEN),
    )


def full_vit_forward(params, x):
    """x: (B, C, H, W) float32 NCHW -> logits (B, NUM_CLASSES)."""
    B = x.shape[0]
    tokens, tok_add, attn_bias = _prep_inputs(params, x)
    sp = _stack_layers(params)

    # lane-dense classifier weights (pad NUM_CLASSES=5 -> 128 columns)
    head_w = jnp.zeros((HIDDEN, CLS_PAD), jnp.float32).at[:, :NUM_CLASSES].set(params["head_w"])
    head_b = jnp.zeros((1, CLS_PAD), jnp.float32).at[:, :NUM_CLASSES].set(
        params["head_b"].reshape(1, NUM_CLASSES))

    args = (tokens, tok_add, attn_bias, params["patch_w"],
            sp["ln1_g"], sp["ln1_b"], sp["w_qkv"], sp["b_qkv"], sp["wo"], sp["bo"],
            sp["ln2_g"], sp["ln2_b"], sp["w_fc1"], sp["b_fc1"], sp["w_fc2"], sp["b_fc2"],
            params["ln_f_g"].reshape(1, HIDDEN), params["ln_f_b"].reshape(1, HIDDEN),
            head_w, head_b)

    vmem_spec = pl.BlockSpec(memory_space=pltpu.MemorySpace.VMEM)
    out = pl.pallas_call(
        _vit_kernel,
        out_shape=jax.ShapeDtypeStruct((B * SEQ_PAD, CLS_PAD), jnp.float32),
        in_specs=[vmem_spec] * len(args),
        out_specs=vmem_spec,
    )(*args)

    # CLS token row of every image, real class columns only
    logits = out.reshape(B, SEQ_PAD, CLS_PAD)[:, 0, :NUM_CLASSES]
    return logits


# ------------------------------------ main --------------------------------------
if __name__ == "__main__":
    key = jax.random.PRNGKey(0)
    k_param, k_x = jax.random.split(key)
    params = init_params(k_param)
    x = jax.random.normal(k_x, (BATCH, CHANNELS, IMAGE, IMAGE), dtype=jnp.float32)

    logits = jax.jit(full_vit_forward)(params, x)
    logits = jax.block_until_ready(logits)
    assert logits.shape == (BATCH, NUM_CLASSES) and logits.dtype == jnp.float32
    assert bool(jnp.all(jnp.isfinite(logits)))
    print("KERNEL_OK")
</pallas_src>

<mosaic_0001>
module attributes {stable_mosaic.version = 11 : i64} {
  func.func @_vit_kernel(%arg0: memref<16x192xf32, #tpu.memory_space<vmem>>, %arg1: memref<16x32xf32, #tpu.memory_space<vmem>>, %arg2: memref<16x16xf32, #tpu.memory_space<vmem>>, %arg3: memref<192x32xf32, #tpu.memory_space<vmem>>, %arg4: memref<2x1x32xf32, #tpu.memory_space<vmem>>, %arg5: memref<2x1x32xf32, #tpu.memory_space<vmem>>, %arg6: memref<2x32x96xf32, #tpu.memory_space<vmem>>, %arg7: memref<2x1x96xf32, #tpu.memory_space<vmem>>, %arg8: memref<2x32x32xf32, #tpu.memory_space<vmem>>, %arg9: memref<2x1x32xf32, #tpu.memory_space<vmem>>, %arg10: memref<2x1x32xf32, #tpu.memory_space<vmem>>, %arg11: memref<2x1x32xf32, #tpu.memory_space<vmem>>, %arg12: memref<2x32x128xf32, #tpu.memory_space<vmem>>, %arg13: memref<2x1x128xf32, #tpu.memory_space<vmem>>, %arg14: memref<2x128x32xf32, #tpu.memory_space<vmem>>, %arg15: memref<2x1x32xf32, #tpu.memory_space<vmem>>, %arg16: memref<1x32xf32, #tpu.memory_space<vmem>>, %arg17: memref<1x32xf32, #tpu.memory_space<vmem>>, %arg18: memref<32x128xf32, #tpu.memory_space<vmem>>, %arg19: memref<1x128xf32, #tpu.memory_space<vmem>>, %arg20: memref<16x128xf32, #tpu.memory_space<vmem>>) attributes {dimension_semantics = [], scalar_prefetch = 0 : i64, scratch_operands = 0 : i64, tpu.core_type = #tpu.core_type<tc>} {
    %c0 = arith.constant 0 : index
    %c0_0 = arith.constant 0 : index
    %0 = vector.load %arg0[%c0, %c0_0] : memref<16x192xf32, #tpu.memory_space<vmem>>, vector<16x192xf32>
    %c0_1 = arith.constant 0 : index
    %c0_2 = arith.constant 0 : index
    %1 = vector.load %arg3[%c0_1, %c0_2] : memref<192x32xf32, #tpu.memory_space<vmem>>, vector<192x32xf32>
    %cst = arith.constant dense<0.000000e+00> : vector<16x32xf32>
    %2 = tpu.matmul %0, %1, %cst {dimension_numbers = #tpu.dot_dimension_numbers<[1], [0], [0], [1], [0, 0, 1, 1], [], []>} : vector<16x192xf32>, vector<192x32xf32>, vector<16x32xf32> -> vector<16x32xf32>
    %c0_3 = arith.constant 0 : index
    %c0_4 = arith.constant 0 : index
    %3 = vector.load %arg1[%c0_3, %c0_4] : memref<16x32xf32, #tpu.memory_space<vmem>>, vector<16x32xf32>
    %4 = arith.addf %2, %3 : vector<16x32xf32>
    %c0_5 = arith.constant 0 : index
    %c0_6 = arith.constant 0 : index
    %5 = vector.load %arg2[%c0_5, %c0_6] : memref<16x16xf32, #tpu.memory_space<vmem>>, vector<16x16xf32>
    %c0_7 = arith.constant 0 : index
    %c0_8 = arith.constant 0 : index
    %c0_9 = arith.constant 0 : index
    %6 = vector.load %arg4[%c0_7, %c0_8, %c0_9] : memref<2x1x32xf32, #tpu.memory_space<vmem>>, vector<1x1x32xf32>
    %7 = vector.shape_cast %6 : vector<1x1x32xf32> to vector<1x32xf32>
    %c0_10 = arith.constant 0 : index
    %c0_11 = arith.constant 0 : index
    %c0_12 = arith.constant 0 : index
    %8 = vector.load %arg5[%c0_10, %c0_11, %c0_12] : memref<2x1x32xf32, #tpu.memory_space<vmem>>, vector<1x1x32xf32>
    %9 = vector.shape_cast %8 : vector<1x1x32xf32> to vector<1x32xf32>
    %cst_13 = arith.constant dense<0.000000e+00> : vector<16xf32>
    %10 = vector.multi_reduction <add>, %4, %cst_13 [1] : vector<16x32xf32> to vector<16xf32>
    %11 = vector.shape_cast %10 : vector<16xf32> to vector<16x1xf32>
    %cst_14 = arith.constant 3.200000e+01 : f32
    %12 = vector.broadcast %cst_14 : f32 to vector<16x1xf32>
    %13 = arith.divf %11, %12 : vector<16x1xf32>
    %14 = vector.broadcast %13 : vector<16x1xf32> to vector<16x32xf32>
    %15 = arith.subf %4, %14 : vector<16x32xf32>
    %16 = arith.mulf %15, %15 : vector<16x32xf32>
    %cst_15 = arith.constant dense<0.000000e+00> : vector<16xf32>
    %17 = vector.multi_reduction <add>, %16, %cst_15 [1] : vector<16x32xf32> to vector<16xf32>
    %18 = vector.shape_cast %17 : vector<16xf32> to vector<16x1xf32>
    %cst_16 = arith.constant 3.200000e+01 : f32
    %19 = vector.broadcast %cst_16 : f32 to vector<16x1xf32>
    %20 = arith.divf %18, %19 : vector<16x1xf32>
    %21 = vector.broadcast %13 : vector<16x1xf32> to vector<16x32xf32>
    %22 = arith.subf %4, %21 : vector<16x32xf32>
    %cst_17 = arith.constant 9.99999996E-13 : f32
    %23 = vector.broadcast %cst_17 : f32 to vector<16x1xf32>
    %24 = arith.addf %20, %23 : vector<16x1xf32>
    %25 = math.rsqrt %24 : vector<16x1xf32>
    %26 = vector.broadcast %25 : vector<16x1xf32> to vector<16x32xf32>
    %27 = arith.mulf %22, %26 : vector<16x32xf32>
    %28 = vector.broadcast %7 : vector<1x32xf32> to vector<16x32xf32>
    %29 = arith.mulf %27, %28 : vector<16x32xf32>
    %30 = vector.broadcast %9 : vector<1x32xf32> to vector<16x32xf32>
    %31 = arith.addf %29, %30 : vector<16x32xf32>
    %c0_18 = arith.constant 0 : index
    %c0_19 = arith.constant 0 : index
    %c0_20 = arith.constant 0 : index
    %32 = vector.load %arg6[%c0_18, %c0_19, %c0_20] : memref<2x32x96xf32, #tpu.memory_space<vmem>>, vector<1x32x96xf32>
    %33 = vector.shape_cast %32 : vector<1x32x96xf32> to vector<32x96xf32>
    %cst_21 = arith.constant dense<0.000000e+00> : vector<16x96xf32>
    %34 = tpu.matmul %31, %33, %cst_21 {dimension_numbers = #tpu.dot_dimension_numbers<[1], [0], [0], [1], [0, 0, 1, 1], [], []>} : vector<16x32xf32>, vector<32x96xf32>, vector<16x96xf32> -> vector<16x96xf32>
    %c0_22 = arith.constant 0 : index
    %c0_23 = arith.constant 0 : index
    %c0_24 = arith.constant 0 : index
    %35 = vector.load %arg7[%c0_22, %c0_23, %c0_24] : memref<2x1x96xf32, #tpu.memory_space<vmem>>, vector<1x1x96xf32>
    %36 = vector.shape_cast %35 : vector<1x1x96xf32> to vector<1x96xf32>
    %37 = vector.broadcast %36 : vector<1x96xf32> to vector<16x96xf32>
    %38 = arith.addf %34, %37 : vector<16x96xf32>
    %c0_25 = arith.constant 0 : index
    %c0_26 = arith.constant 0 : index
    %c0_27 = arith.constant 0 : index
    %39 = vector.load %arg8[%c0_25, %c0_26, %c0_27] : memref<2x32x32xf32, #tpu.memory_space<vmem>>, vector<1x32x32xf32>
    %40 = vector.shape_cast %39 : vector<1x32x32xf32> to vector<32x32xf32>
    %cst_28 = arith.constant 0.000000e+00 : f32
    %41 = vector.broadcast %cst_28 : f32 to vector<16x32xf32>
    %42 = vector.extract_strided_slice %38 {offsets = [0, 0], sizes = [16, 8], strides = [1, 1]} : vector<16x96xf32> to vector<16x8xf32>
    %43 = vector.extract_strided_slice %38 {offsets = [0, 32], sizes = [16, 8], strides = [1, 1]} : vector<16x96xf32> to vector<16x8xf32>
    %44 = vector.extract_strided_slice %38 {offsets = [0, 64], sizes = [16, 8], strides = [1, 1]} : vector<16x96xf32> to vector<16x8xf32>
    %cst_29 = arith.constant dense<0.000000e+00> : vector<16x16xf32>
    %45 = tpu.matmul %42, %43, %cst_29 {dimension_numbers = #tpu.dot_dimension_numbers<[1], [1], [0], [0], [0, 0, 1, 0], [], []>} : vector<16x8xf32>, vector<16x8xf32>, vector<16x16xf32> -> vector<16x16xf32>
    %cst_30 = arith.constant 0.353553385 : f32
    %46 = vector.broadcast %cst_30 : f32 to vector<16x16xf32>
    %47 = arith.mulf %45, %46 : vector<16x16xf32>
    %48 = arith.addf %47, %5 : vector<16x16xf32>
    %cst_31 = arith.constant dense<0xFF800000> : vector<16xf32>
    %49 = vector.multi_reduction <maximumf>, %48, %cst_31 [1] : vector<16x16xf32> to vector<16xf32>
    %50 = vector.shape_cast %49 : vector<16xf32> to vector<16x1xf32>
    %51 = vector.broadcast %50 : vector<16x1xf32> to vector<16x16xf32>
    %52 = arith.subf %48, %51 : vector<16x16xf32>
    %53 = math.exp %52 : vector<16x16xf32>
    %cst_32 = arith.constant dense<0.000000e+00> : vector<16xf32>
    %54 = vector.multi_reduction <add>, %53, %cst_32 [1] : vector<16x16xf32> to vector<16xf32>
    %55 = vector.shape_cast %54 : vector<16xf32> to vector<16x1xf32>
    %56 = vector.broadcast %55 : vector<16x1xf32> to vector<16x16xf32>
    %57 = arith.divf %53, %56 : vector<16x16xf32>
    %cst_33 = arith.constant dense<0.000000e+00> : vector<16x8xf32>
    %58 = tpu.matmul %57, %44, %cst_33 {dimension_numbers = #tpu.dot_dimension_numbers<[1], [0], [0], [1], [0, 0, 1, 1], [], []>} : vector<16x16xf32>, vector<16x8xf32>, vector<16x8xf32> -> vector<16x8xf32>
    %59 = vector.extract_strided_slice %40 {offsets = [0, 0], sizes = [8, 32], strides = [1, 1]} : vector<32x32xf32> to vector<8x32xf32>
    %cst_34 = arith.constant dense<0.000000e+00> : vector<16x32xf32>
    %60 = tpu.matmul %58, %59, %cst_34 {dimension_numbers = #tpu.dot_dimension_numbers<[1], [0], [0], [1], [0, 0, 1, 1], [], []>} : vector<16x8xf32>, vector<8x32xf32>, vector<16x32xf32> -> vector<16x32xf32>
    %61 = arith.addf %41, %60 : vector<16x32xf32>
    %62 = vector.extract_strided_slice %38 {offsets = [0, 8], sizes = [16, 8], strides = [1, 1]} : vector<16x96xf32> to vector<16x8xf32>
    %63 = vector.extract_strided_slice %38 {offsets = [0, 40], sizes = [16, 8], strides = [1, 1]} : vector<16x96xf32> to vector<16x8xf32>
    %64 = vector.extract_strided_slice %38 {offsets = [0, 72], sizes = [16, 8], strides = [1, 1]} : vector<16x96xf32> to vector<16x8xf32>
    %cst_35 = arith.constant dense<0.000000e+00> : vector<16x16xf32>
    %65 = tpu.matmul %62, %63, %cst_35 {dimension_numbers = #tpu.dot_dimension_numbers<[1], [1], [0], [0], [0, 0, 1, 0], [], []>} : vector<16x8xf32>, vector<16x8xf32>, vector<16x16xf32> -> vector<16x16xf32>
    %cst_36 = arith.constant 0.353553385 : f32
    %66 = vector.broadcast %cst_36 : f32 to vector<16x16xf32>
    %67 = arith.mulf %65, %66 : vector<16x16xf32>
    %68 = arith.addf %67, %5 : vector<16x16xf32>
    %cst_37 = arith.constant dense<0xFF800000> : vector<16xf32>
    %69 = vector.multi_reduction <maximumf>, %68, %cst_37 [1] : vector<16x16xf32> to vector<16xf32>
    %70 = vector.shape_cast %69 : vector<16xf32> to vector<16x1xf32>
    %71 = vector.broadcast %70 : vector<16x1xf32> to vector<16x16xf32>
    %72 = arith.subf %68, %71 : vector<16x16xf32>
    %73 = math.exp %72 : vector<16x16xf32>
    %cst_38 = arith.constant dense<0.000000e+00> : vector<16xf32>
    %74 = vector.multi_reduction <add>, %73, %cst_38 [1] : vector<16x16xf32> to vector<16xf32>
    %75 = vector.shape_cast %74 : vector<16xf32> to vector<16x1xf32>
    %76 = vector.broadcast %75 : vector<16x1xf32> to vector<16x16xf32>
    %77 = arith.divf %73, %76 : vector<16x16xf32>
    %cst_39 = arith.constant dense<0.000000e+00> : vector<16x8xf32>
    %78 = tpu.matmul %77, %64, %cst_39 {dimension_numbers = #tpu.dot_dimension_numbers<[1], [0], [0], [1], [0, 0, 1, 1], [], []>} : vector<16x16xf32>, vector<16x8xf32>, vector<16x8xf32> -> vector<16x8xf32>
    %79 = vector.extract_strided_slice %40 {offsets = [8, 0], sizes = [8, 32], strides = [1, 1]} : vector<32x32xf32> to vector<8x32xf32>
    %cst_40 = arith.constant dense<0.000000e+00> : vector<16x32xf32>
    %80 = tpu.matmul %78, %79, %cst_40 {dimension_numbers = #tpu.dot_dimension_numbers<[1], [0], [0], [1], [0, 0, 1, 1], [], []>} : vector<16x8xf32>, vector<8x32xf32>, vector<16x32xf32> -> vector<16x32xf32>
    %81 = arith.addf %61, %80 : vector<16x32xf32>
    %82 = vector.extract_strided_slice %38 {offsets = [0, 16], sizes = [16, 8], strides = [1, 1]} : vector<16x96xf32> to vector<16x8xf32>
    %83 = vector.extract_strided_slice %38 {offsets = [0, 48], sizes = [16, 8], strides = [1, 1]} : vector<16x96xf32> to vector<16x8xf32>
    %84 = vector.extract_strided_slice %38 {offsets = [0, 80], sizes = [16, 8], strides = [1, 1]} : vector<16x96xf32> to vector<16x8xf32>
    %cst_41 = arith.constant dense<0.000000e+00> : vector<16x16xf32>
    %85 = tpu.matmul %82, %83, %cst_41 {dimension_numbers = #tpu.dot_dimension_numbers<[1], [1], [0], [0], [0, 0, 1, 0], [], []>} : vector<16x8xf32>, vector<16x8xf32>, vector<16x16xf32> -> vector<16x16xf32>
    %cst_42 = arith.constant 0.353553385 : f32
    %86 = vector.broadcast %cst_42 : f32 to vector<16x16xf32>
    %87 = arith.mulf %85, %86 : vector<16x16xf32>
    %88 = arith.addf %87, %5 : vector<16x16xf32>
    %cst_43 = arith.constant dense<0xFF800000> : vector<16xf32>
    %89 = vector.multi_reduction <maximumf>, %88, %cst_43 [1] : vector<16x16xf32> to vector<16xf32>
    %90 = vector.shape_cast %89 : vector<16xf32> to vector<16x1xf32>
    %91 = vector.broadcast %90 : vector<16x1xf32> to vector<16x16xf32>
    %92 = arith.subf %88, %91 : vector<16x16xf32>
    %93 = math.exp %92 : vector<16x16xf32>
    %cst_44 = arith.constant dense<0.000000e+00> : vector<16xf32>
    %94 = vector.multi_reduction <add>, %93, %cst_44 [1] : vector<16x16xf32> to vector<16xf32>
    %95 = vector.shape_cast %94 : vector<16xf32> to vector<16x1xf32>
    %96 = vector.broadcast %95 : vector<16x1xf32> to vector<16x16xf32>
    %97 = arith.divf %93, %96 : vector<16x16xf32>
    %cst_45 = arith.constant dense<0.000000e+00> : vector<16x8xf32>
    %98 = tpu.matmul %97, %84, %cst_45 {dimension_numbers = #tpu.dot_dimension_numbers<[1], [0], [0], [1], [0, 0, 1, 1], [], []>} : vector<16x16xf32>, vector<16x8xf32>, vector<16x8xf32> -> vector<16x8xf32>
    %99 = vector.extract_strided_slice %40 {offsets = [16, 0], sizes = [8, 32], strides = [1, 1]} : vector<32x32xf32> to vector<8x32xf32>
    %cst_46 = arith.constant dense<0.000000e+00> : vector<16x32xf32>
    %100 = tpu.matmul %98, %99, %cst_46 {dimension_numbers = #tpu.dot_dimension_numbers<[1], [0], [0], [1], [0, 0, 1, 1], [], []>} : vector<16x8xf32>, vector<8x32xf32>, vector<16x32xf32> -> vector<16x32xf32>
    %101 = arith.addf %81, %100 : vector<16x32xf32>
    %102 = vector.extract_strided_slice %38 {offsets = [0, 24], sizes = [16, 8], strides = [1, 1]} : vector<16x96xf32> to vector<16x8xf32>
    %103 = vector.extract_strided_slice %38 {offsets = [0, 56], sizes = [16, 8], strides = [1, 1]} : vector<16x96xf32> to vector<16x8xf32>
    %104 = vector.extract_strided_slice %38 {offsets = [0, 88], sizes = [16, 8], strides = [1, 1]} : vector<16x96xf32> to vector<16x8xf32>
    %cst_47 = arith.constant dense<0.000000e+00> : vector<16x16xf32>
    %105 = tpu.matmul %102, %103, %cst_47 {dimension_numbers = #tpu.dot_dimension_numbers<[1], [1], [0], [0], [0, 0, 1, 0], [], []>} : vector<16x8xf32>, vector<16x8xf32>, vector<16x16xf32> -> vector<16x16xf32>
    %cst_48 = arith.constant 0.353553385 : f32
    %106 = vector.broadcast %cst_48 : f32 to vector<16x16xf32>
    %107 = arith.mulf %105, %106 : vector<16x16xf32>
    %108 = arith.addf %107, %5 : vector<16x16xf32>
    %cst_49 = arith.constant dense<0xFF800000> : vector<16xf32>
    %109 = vector.multi_reduction <maximumf>, %108, %cst_49 [1] : vector<16x16xf32> to vector<16xf32>
    %110 = vector.shape_cast %109 : vector<16xf32> to vector<16x1xf32>
    %111 = vector.broadcast %110 : vector<16x1xf32> to vector<16x16xf32>
    %112 = arith.subf %108, %111 : vector<16x16xf32>
    %113 = math.exp %112 : vector<16x16xf32>
    %cst_50 = arith.constant dense<0.000000e+00> : vector<16xf32>
    %114 = vector.multi_reduction <add>, %113, %cst_50 [1] : vector<16x16xf32> to vector<16xf32>
    %115 = vector.shape_cast %114 : vector<16xf32> to vector<16x1xf32>
    %116 = vector.broadcast %115 : vector<16x1xf32> to vector<16x16xf32>
    %117 = arith.divf %113, %116 : vector<16x16xf32>
    %cst_51 = arith.constant dense<0.000000e+00> : vector<16x8xf32>
    %118 = tpu.matmul %117, %104, %cst_51 {dimension_numbers = #tpu.dot_dimension_numbers<[1], [0], [0], [1], [0, 0, 1, 1], [], []>} : vector<16x16xf32>, vector<16x8xf32>, vector<16x8xf32> -> vector<16x8xf32>
    %119 = vector.extract_strided_slice %40 {offsets = [24, 0], sizes = [8, 32], strides = [1, 1]} : vector<32x32xf32> to vector<8x32xf32>
    %cst_52 = arith.constant dense<0.000000e+00> : vector<16x32xf32>
    %120 = tpu.matmul %118, %119, %cst_52 {dimension_numbers = #tpu.dot_dimension_numbers<[1], [0], [0], [1], [0, 0, 1, 1], [], []>} : vector<16x8xf32>, vector<8x32xf32>, vector<16x32xf32> -> vector<16x32xf32>
    %121 = arith.addf %101, %120 : vector<16x32xf32>
    %122 = arith.addf %4, %121 : vector<16x32xf32>
    %c0_53 = arith.constant 0 : index
    %c0_54 = arith.constant 0 : index
    %c0_55 = arith.constant 0 : index
    %123 = vector.load %arg9[%c0_53, %c0_54, %c0_55] : memref<2x1x32xf32, #tpu.memory_space<vmem>>, vector<1x1x32xf32>
    %124 = vector.shape_cast %123 : vector<1x1x32xf32> to vector<1x32xf32>
    %125 = vector.broadcast %124 : vector<1x32xf32> to vector<16x32xf32>
    %126 = arith.addf %122, %125 : vector<16x32xf32>
    %c0_56 = arith.constant 0 : index
    %c0_57 = arith.constant 0 : index
    %c0_58 = arith.constant 0 : index
    %127 = vector.load %arg10[%c0_56, %c0_57, %c0_58] : memref<2x1x32xf32, #tpu.memory_space<vmem>>, vector<1x1x32xf32>
    %128 = vector.shape_cast %127 : vector<1x1x32xf32> to vector<1x32xf32>
    %c0_59 = arith.constant 0 : index
    %c0_60 = arith.constant 0 : index
    %c0_61 = arith.constant 0 : index
    %129 = vector.load %arg11[%c0_59, %c0_60, %c0_61] : memref<2x1x32xf32, #tpu.memory_space<vmem>>, vector<1x1x32xf32>
    %130 = vector.shape_cast %129 : vector<1x1x32xf32> to vector<1x32xf32>
    %cst_62 = arith.constant dense<0.000000e+00> : vector<16xf32>
    %131 = vector.multi_reduction <add>, %126, %cst_62 [1] : vector<16x32xf32> to vector<16xf32>
    %132 = vector.shape_cast %131 : vector<16xf32> to vector<16x1xf32>
    %cst_63 = arith.constant 3.200000e+01 : f32
    %133 = vector.broadcast %cst_63 : f32 to vector<16x1xf32>
    %134 = arith.divf %132, %133 : vector<16x1xf32>
    %135 = vector.broadcast %134 : vector<16x1xf32> to vector<16x32xf32>
    %136 = arith.subf %126, %135 : vector<16x32xf32>
    %137 = arith.mulf %136, %136 : vector<16x32xf32>
    %cst_64 = arith.constant dense<0.000000e+00> : vector<16xf32>
    %138 = vector.multi_reduction <add>, %137, %cst_64 [1] : vector<16x32xf32> to vector<16xf32>
    %139 = vector.shape_cast %138 : vector<16xf32> to vector<16x1xf32>
    %cst_65 = arith.constant 3.200000e+01 : f32
    %140 = vector.broadcast %cst_65 : f32 to vector<16x1xf32>
    %141 = arith.divf %139, %140 : vector<16x1xf32>
    %142 = vector.broadcast %134 : vector<16x1xf32> to vector<16x32xf32>
    %143 = arith.subf %126, %142 : vector<16x32xf32>
    %cst_66 = arith.constant 9.99999996E-13 : f32
    %144 = vector.broadcast %cst_66 : f32 to vector<16x1xf32>
    %145 = arith.addf %141, %144 : vector<16x1xf32>
    %146 = math.rsqrt %145 : vector<16x1xf32>
    %147 = vector.broadcast %146 : vector<16x1xf32> to vector<16x32xf32>
    %148 = arith.mulf %143, %147 : vector<16x32xf32>
    %149 = vector.broadcast %128 : vector<1x32xf32> to vector<16x32xf32>
    %150 = arith.mulf %148, %149 : vector<16x32xf32>
    %151 = vector.broadcast %130 : vector<1x32xf32> to vector<16x32xf32>
    %152 = arith.addf %150, %151 : vector<16x32xf32>
    %c0_67 = arith.constant 0 : index
    %c0_68 = arith.constant 0 : index
    %c0_69 = arith.constant 0 : index
    %153 = vector.load %arg12[%c0_67, %c0_68, %c0_69] : memref<2x32x128xf32, #tpu.memory_space<vmem>>, vector<1x32x128xf32>
    %154 = vector.shape_cast %153 : vector<1x32x128xf32> to vector<32x128xf32>
    %cst_70 = arith.constant dense<0.000000e+00> : vector<16x128xf32>
    %155 = tpu.matmul %152, %154, %cst_70 {dimension_numbers = #tpu.dot_dimension_numbers<[1], [0], [0], [1], [0, 0, 1, 1], [], []>} : vector<16x32xf32>, vector<32x128xf32>, vector<16x128xf32> -> vector<16x128xf32>
    %c0_71 = arith.constant 0 : index
    %c0_72 = arith.constant 0 : index
    %c0_73 = arith.constant 0 : index
    %156 = vector.load %arg13[%c0_71, %c0_72, %c0_73] : memref<2x1x128xf32, #tpu.memory_space<vmem>>, vector<1x1x128xf32>
    %157 = vector.shape_cast %156 : vector<1x1x128xf32> to vector<1x128xf32>
    %158 = vector.broadcast %157 : vector<1x128xf32> to vector<16x128xf32>
    %159 = arith.addf %155, %158 : vector<16x128xf32>
    %cst_74 = arith.constant 5.000000e-01 : f32
    %160 = vector.broadcast %cst_74 : f32 to vector<16x128xf32>
    %161 = arith.mulf %160, %159 : vector<16x128xf32>
    %cst_75 = arith.constant 0.707106769 : f32
    %162 = vector.broadcast %cst_75 : f32 to vector<16x128xf32>
    %163 = arith.mulf %159, %162 : vector<16x128xf32>
    %164 = math.erf %163 : vector<16x128xf32>
    %cst_76 = arith.constant 1.000000e+00 : f32
    %165 = vector.broadcast %cst_76 : f32 to vector<16x128xf32>
    %166 = arith.addf %165, %164 : vector<16x128xf32>
    %167 = arith.mulf %161, %166 : vector<16x128xf32>
    %c0_77 = arith.constant 0 : index
    %c0_78 = arith.constant 0 : index
    %c0_79 = arith.constant 0 : index
    %168 = vector.load %arg14[%c0_77, %c0_78, %c0_79] : memref<2x128x32xf32, #tpu.memory_space<vmem>>, vector<1x128x32xf32>
    %169 = vector.shape_cast %168 : vector<1x128x32xf32> to vector<128x32xf32>
    %cst_80 = arith.constant dense<0.000000e+00> : vector<16x32xf32>
    %170 = tpu.matmul %167, %169, %cst_80 {dimension_numbers = #tpu.dot_dimension_numbers<[1], [0], [0], [1], [0, 0, 1, 1], [], []>} : vector<16x128xf32>, vector<128x32xf32>, vector<16x32xf32> -> vector<16x32xf32>
    %171 = arith.addf %126, %170 : vector<16x32xf32>
    %c0_81 = arith.constant 0 : index
    %c0_82 = arith.constant 0 : index
    %c0_83 = arith.constant 0 : index
    %172 = vector.load %arg15[%c0_81, %c0_82, %c0_83] : memref<2x1x32xf32, #tpu.memory_space<vmem>>, vector<1x1x32xf32>
    %173 = vector.shape_cast %172 : vector<1x1x32xf32> to vector<1x32xf32>
    %174 = vector.broadcast %173 : vector<1x32xf32> to vector<16x32xf32>
    %175 = arith.addf %171, %174 : vector<16x32xf32>
    %c1 = arith.constant 1 : index
    %c0_84 = arith.constant 0 : index
    %c0_85 = arith.constant 0 : index
    %176 = vector.load %arg4[%c1, %c0_84, %c0_85] : memref<2x1x32xf32, #tpu.memory_space<vmem>>, vector<1x1x32xf32>
    %177 = vector.shape_cast %176 : vector<1x1x32xf32> to vector<1x32xf32>
    %c1_86 = arith.constant 1 : index
    %c0_87 = arith.constant 0 : index
    %c0_88 = arith.constant 0 : index
    %178 = vector.load %arg5[%c1_86, %c0_87, %c0_88] : memref<2x1x32xf32, #tpu.memory_space<vmem>>, vector<1x1x32xf32>
    %179 = vector.shape_cast %178 : vector<1x1x32xf32> to vector<1x32xf32>
    %cst_89 = arith.constant dense<0.000000e+00> : vector<16xf32>
    %180 = vector.multi_reduction <add>, %175, %cst_89 [1] : vector<16x32xf32> to vector<16xf32>
    %181 = vector.shape_cast %180 : vector<16xf32> to vector<16x1xf32>
    %cst_90 = arith.constant 3.200000e+01 : f32
    %182 = vector.broadcast %cst_90 : f32 to vector<16x1xf32>
    %183 = arith.divf %181, %182 : vector<16x1xf32>
    %184 = vector.broadcast %183 : vector<16x1xf32> to vector<16x32xf32>
    %185 = arith.subf %175, %184 : vector<16x32xf32>
    %186 = arith.mulf %185, %185 : vector<16x32xf32>
    %cst_91 = arith.constant dense<0.000000e+00> : vector<16xf32>
    %187 = vector.multi_reduction <add>, %186, %cst_91 [1] : vector<16x32xf32> to vector<16xf32>
    %188 = vector.shape_cast %187 : vector<16xf32> to vector<16x1xf32>
    %cst_92 = arith.constant 3.200000e+01 : f32
    %189 = vector.broadcast %cst_92 : f32 to vector<16x1xf32>
    %190 = arith.divf %188, %189 : vector<16x1xf32>
    %191 = vector.broadcast %183 : vector<16x1xf32> to vector<16x32xf32>
    %192 = arith.subf %175, %191 : vector<16x32xf32>
    %cst_93 = arith.constant 9.99999996E-13 : f32
    %193 = vector.broadcast %cst_93 : f32 to vector<16x1xf32>
    %194 = arith.addf %190, %193 : vector<16x1xf32>
    %195 = math.rsqrt %194 : vector<16x1xf32>
    %196 = vector.broadcast %195 : vector<16x1xf32> to vector<16x32xf32>
    %197 = arith.mulf %192, %196 : vector<16x32xf32>
    %198 = vector.broadcast %177 : vector<1x32xf32> to vector<16x32xf32>
    %199 = arith.mulf %197, %198 : vector<16x32xf32>
    %200 = vector.broadcast %179 : vector<1x32xf32> to vector<16x32xf32>
    %201 = arith.addf %199, %200 : vector<16x32xf32>
    %c1_94 = arith.constant 1 : index
    %c0_95 = arith.constant 0 : index
    %c0_96 = arith.constant 0 : index
    %202 = vector.load %arg6[%c1_94, %c0_95, %c0_96] : memref<2x32x96xf32, #tpu.memory_space<vmem>>, vector<1x32x96xf32>
    %203 = vector.shape_cast %202 : vector<1x32x96xf32> to vector<32x96xf32>
    %cst_97 = arith.constant dense<0.000000e+00> : vector<16x96xf32>
    %204 = tpu.matmul %201, %203, %cst_97 {dimension_numbers = #tpu.dot_dimension_numbers<[1], [0], [0], [1], [0, 0, 1, 1], [], []>} : vector<16x32xf32>, vector<32x96xf32>, vector<16x96xf32> -> vector<16x96xf32>
    %c1_98 = arith.constant 1 : index
    %c0_99 = arith.constant 0 : index
    %c0_100 = arith.constant 0 : index
    %205 = vector.load %arg7[%c1_98, %c0_99, %c0_100] : memref<2x1x96xf32, #tpu.memory_space<vmem>>, vector<1x1x96xf32>
    %206 = vector.shape_cast %205 : vector<1x1x96xf32> to vector<1x96xf32>
    %207 = vector.broadcast %206 : vector<1x96xf32> to vector<16x96xf32>
    %208 = arith.addf %204, %207 : vector<16x96xf32>
    %c1_101 = arith.constant 1 : index
    %c0_102 = arith.constant 0 : index
    %c0_103 = arith.constant 0 : index
    %209 = vector.load %arg8[%c1_101, %c0_102, %c0_103] : memref<2x32x32xf32, #tpu.memory_space<vmem>>, vector<1x32x32xf32>
    %210 = vector.shape_cast %209 : vector<1x32x32xf32> to vector<32x32xf32>
    %cst_104 = arith.constant 0.000000e+00 : f32
    %211 = vector.broadcast %cst_104 : f32 to vector<16x32xf32>
    %212 = vector.extract_strided_slice %208 {offsets = [0, 0], sizes = [16, 8], strides = [1, 1]} : vector<16x96xf32> to vector<16x8xf32>
    %213 = vector.extract_strided_slice %208 {offsets = [0, 32], sizes = [16, 8], strides = [1, 1]} : vector<16x96xf32> to vector<16x8xf32>
    %214 = vector.extract_strided_slice %208 {offsets = [0, 64], sizes = [16, 8], strides = [1, 1]} : vector<16x96xf32> to vector<16x8xf32>
    %cst_105 = arith.constant dense<0.000000e+00> : vector<16x16xf32>
    %215 = tpu.matmul %212, %213, %cst_105 {dimension_numbers = #tpu.dot_dimension_numbers<[1], [1], [0], [0], [0, 0, 1, 0], [], []>} : vector<16x8xf32>, vector<16x8xf32>, vector<16x16xf32> -> vector<16x16xf32>
    %cst_106 = arith.constant 0.353553385 : f32
    %216 = vector.broadcast %cst_106 : f32 to vector<16x16xf32>
    %217 = arith.mulf %215, %216 : vector<16x16xf32>
    %218 = arith.addf %217, %5 : vector<16x16xf32>
    %cst_107 = arith.constant dense<0xFF800000> : vector<16xf32>
    %219 = vector.multi_reduction <maximumf>, %218, %cst_107 [1] : vector<16x16xf32> to vector<16xf32>
    %220 = vector.shape_cast %219 : vector<16xf32> to vector<16x1xf32>
    %221 = vector.broadcast %220 : vector<16x1xf32> to vector<16x16xf32>
    %222 = arith.subf %218, %221 : vector<16x16xf32>
    %223 = math.exp %222 : vector<16x16xf32>
    %cst_108 = arith.constant dense<0.000000e+00> : vector<16xf32>
    %224 = vector.multi_reduction <add>, %223, %cst_108 [1] : vector<16x16xf32> to vector<16xf32>
    %225 = vector.shape_cast %224 : vector<16xf32> to vector<16x1xf32>
    %226 = vector.broadcast %225 : vector<16x1xf32> to vector<16x16xf32>
    %227 = arith.divf %223, %226 : vector<16x16xf32>
    %cst_109 = arith.constant dense<0.000000e+00> : vector<16x8xf32>
    %228 = tpu.matmul %227, %214, %cst_109 {dimension_numbers = #tpu.dot_dimension_numbers<[1], [0], [0], [1], [0, 0, 1, 1], [], []>} : vector<16x16xf32>, vector<16x8xf32>, vector<16x8xf32> -> vector<16x8xf32>
    %229 = vector.extract_strided_slice %210 {offsets = [0, 0], sizes = [8, 32], strides = [1, 1]} : vector<32x32xf32> to vector<8x32xf32>
    %cst_110 = arith.constant dense<0.000000e+00> : vector<16x32xf32>
    %230 = tpu.matmul %228, %229, %cst_110 {dimension_numbers = #tpu.dot_dimension_numbers<[1], [0], [0], [1], [0, 0, 1, 1], [], []>} : vector<16x8xf32>, vector<8x32xf32>, vector<16x32xf32> -> vector<16x32xf32>
    %231 = arith.addf %211, %230 : vector<16x32xf32>
    %232 = vector.extract_strided_slice %208 {offsets = [0, 8], sizes = [16, 8], strides = [1, 1]} : vector<16x96xf32> to vector<16x8xf32>
    %233 = vector.extract_strided_slice %208 {offsets = [0, 40], sizes = [16, 8], strides = [1, 1]} : vector<16x96xf32> to vector<16x8xf32>
    %234 = vector.extract_strided_slice %208 {offsets = [0, 72], sizes = [16, 8], strides = [1, 1]} : vector<16x96xf32> to vector<16x8xf32>
    %cst_111 = arith.constant dense<0.000000e+00> : vector<16x16xf32>
    %235 = tpu.matmul %232, %233, %cst_111 {dimension_numbers = #tpu.dot_dimension_numbers<[1], [1], [0], [0], [0, 0, 1, 0], [], []>} : vector<16x8xf32>, vector<16x8xf32>, vector<16x16xf32> -> vector<16x16xf32>
    %cst_112 = arith.constant 0.353553385 : f32
    %236 = vector.broadcast %cst_112 : f32 to vector<16x16xf32>
    %237 = arith.mulf %235, %236 : vector<16x16xf32>
    %238 = arith.addf %237, %5 : vector<16x16xf32>
    %cst_113 = arith.constant dense<0xFF800000> : vector<16xf32>
    %239 = vector.multi_reduction <maximumf>, %238, %cst_113 [1] : vector<16x16xf32> to vector<16xf32>
    %240 = vector.shape_cast %239 : vector<16xf32> to vector<16x1xf32>
    %241 = vector.broadcast %240 : vector<16x1xf32> to vector<16x16xf32>
    %242 = arith.subf %238, %241 : vector<16x16xf32>
    %243 = math.exp %242 : vector<16x16xf32>
    %cst_114 = arith.constant dense<0.000000e+00> : vector<16xf32>
    %244 = vector.multi_reduction <add>, %243, %cst_114 [1] : vector<16x16xf32> to vector<16xf32>
    %245 = vector.shape_cast %244 : vector<16xf32> to vector<16x1xf32>
    %246 = vector.broadcast %245 : vector<16x1xf32> to vector<16x16xf32>
    %247 = arith.divf %243, %246 : vector<16x16xf32>
    %cst_115 = arith.constant dense<0.000000e+00> : vector<16x8xf32>
    %248 = tpu.matmul %247, %234, %cst_115 {dimension_numbers = #tpu.dot_dimension_numbers<[1], [0], [0], [1], [0, 0, 1, 1], [], []>} : vector<16x16xf32>, vector<16x8xf32>, vector<16x8xf32> -> vector<16x8xf32>
    %249 = vector.extract_strided_slice %210 {offsets = [8, 0], sizes = [8, 32], strides = [1, 1]} : vector<32x32xf32> to vector<8x32xf32>
    %cst_116 = arith.constant dense<0.000000e+00> : vector<16x32xf32>
    %250 = tpu.matmul %248, %249, %cst_116 {dimension_numbers = #tpu.dot_dimension_numbers<[1], [0], [0], [1], [0, 0, 1, 1], [], []>} : vector<16x8xf32>, vector<8x32xf32>, vector<16x32xf32> -> vector<16x32xf32>
    %251 = arith.addf %231, %250 : vector<16x32xf32>
    %252 = vector.extract_strided_slice %208 {offsets = [0, 16], sizes = [16, 8], strides = [1, 1]} : vector<16x96xf32> to vector<16x8xf32>
    %253 = vector.extract_strided_slice %208 {offsets = [0, 48], sizes = [16, 8], strides = [1, 1]} : vector<16x96xf32> to vector<16x8xf32>
    %254 = vector.extract_strided_slice %208 {offsets = [0, 80], sizes = [16, 8], strides = [1, 1]} : vector<16x96xf32> to vector<16x8xf32>
    %cst_117 = arith.constant dense<0.000000e+00> : vector<16x16xf32>
    %255 = tpu.matmul %252, %253, %cst_117 {dimension_numbers = #tpu.dot_dimension_numbers<[1], [1], [0], [0], [0, 0, 1, 0], [], []>} : vector<16x8xf32>, vector<16x8xf32>, vector<16x16xf32> -> vector<16x16xf32>
    %cst_118 = arith.constant 0.353553385 : f32
    %256 = vector.broadcast %cst_118 : f32 to vector<16x16xf32>
    %257 = arith.mulf %255, %256 : vector<16x16xf32>
    %258 = arith.addf %257, %5 : vector<16x16xf32>
    %cst_119 = arith.constant dense<0xFF800000> : vector<16xf32>
    %259 = vector.multi_reduction <maximumf>, %258, %cst_119 [1] : vector<16x16xf32> to vector<16xf32>
    %260 = vector.shape_cast %259 : vector<16xf32> to vector<16x1xf32>
    %261 = vector.broadcast %260 : vector<16x1xf32> to vector<16x16xf32>
    %262 = arith.subf %258, %261 : vector<16x16xf32>
    %263 = math.exp %262 : vector<16x16xf32>
    %cst_120 = arith.constant dense<0.000000e+00> : vector<16xf32>
    %264 = vector.multi_reduction <add>, %263, %cst_120 [1] : vector<16x16xf32> to vector<16xf32>
    %265 = vector.shape_cast %264 : vector<16xf32> to vector<16x1xf32>
    %266 = vector.broadcast %265 : vector<16x1xf32> to vector<16x16xf32>
    %267 = arith.divf %263, %266 : vector<16x16xf32>
    %cst_121 = arith.constant dense<0.000000e+00> : vector<16x8xf32>
    %268 = tpu.matmul %267, %254, %cst_121 {dimension_numbers = #tpu.dot_dimension_numbers<[1], [0], [0], [1], [0, 0, 1, 1], [], []>} : vector<16x16xf32>, vector<16x8xf32>, vector<16x8xf32> -> vector<16x8xf32>
    %269 = vector.extract_strided_slice %210 {offsets = [16, 0], sizes = [8, 32], strides = [1, 1]} : vector<32x32xf32> to vector<8x32xf32>
    %cst_122 = arith.constant dense<0.000000e+00> : vector<16x32xf32>
    %270 = tpu.matmul %268, %269, %cst_122 {dimension_numbers = #tpu.dot_dimension_numbers<[1], [0], [0], [1], [0, 0, 1, 1], [], []>} : vector<16x8xf32>, vector<8x32xf32>, vector<16x32xf32> -> vector<16x32xf32>
    %271 = arith.addf %251, %270 : vector<16x32xf32>
    %272 = vector.extract_strided_slice %208 {offsets = [0, 24], sizes = [16, 8], strides = [1, 1]} : vector<16x96xf32> to vector<16x8xf32>
    %273 = vector.extract_strided_slice %208 {offsets = [0, 56], sizes = [16, 8], strides = [1, 1]} : vector<16x96xf32> to vector<16x8xf32>
    %274 = vector.extract_strided_slice %208 {offsets = [0, 88], sizes = [16, 8], strides = [1, 1]} : vector<16x96xf32> to vector<16x8xf32>
    %cst_123 = arith.constant dense<0.000000e+00> : vector<16x16xf32>
    %275 = tpu.matmul %272, %273, %cst_123 {dimension_numbers = #tpu.dot_dimension_numbers<[1], [1], [0], [0], [0, 0, 1, 0], [], []>} : vector<16x8xf32>, vector<16x8xf32>, vector<16x16xf32> -> vector<16x16xf32>
    %cst_124 = arith.constant 0.353553385 : f32
    %276 = vector.broadcast %cst_124 : f32 to vector<16x16xf32>
    %277 = arith.mulf %275, %276 : vector<16x16xf32>
    %278 = arith.addf %277, %5 : vector<16x16xf32>
    %cst_125 = arith.constant dense<0xFF800000> : vector<16xf32>
    %279 = vector.multi_reduction <maximumf>, %278, %cst_125 [1] : vector<16x16xf32> to vector<16xf32>
    %280 = vector.shape_cast %279 : vector<16xf32> to vector<16x1xf32>
    %281 = vector.broadcast %280 : vector<16x1xf32> to vector<16x16xf32>
    %282 = arith.subf %278, %281 : vector<16x16xf32>
    %283 = math.exp %282 : vector<16x16xf32>
    %cst_126 = arith.constant dense<0.000000e+00> : vector<16xf32>
    %284 = vector.multi_reduction <add>, %283, %cst_126 [1] : vector<16x16xf32> to vector<16xf32>
    %285 = vector.shape_cast %284 : vector<16xf32> to vector<16x1xf32>
    %286 = vector.broadcast %285 : vector<16x1xf32> to vector<16x16xf32>
    %287 = arith.divf %283, %286 : vector<16x16xf32>
    %cst_127 = arith.constant dense<0.000000e+00> : vector<16x8xf32>
    %288 = tpu.matmul %287, %274, %cst_127 {dimension_numbers = #tpu.dot_dimension_numbers<[1], [0], [0], [1], [0, 0, 1, 1], [], []>} : vector<16x16xf32>, vector<16x8xf32>, vector<16x8xf32> -> vector<16x8xf32>
    %289 = vector.extract_strided_slice %210 {offsets = [24, 0], sizes = [8, 32], strides = [1, 1]} : vector<32x32xf32> to vector<8x32xf32>
    %cst_128 = arith.constant dense<0.000000e+00> : vector<16x32xf32>
    %290 = tpu.matmul %288, %289, %cst_128 {dimension_numbers = #tpu.dot_dimension_numbers<[1], [0], [0], [1], [0, 0, 1, 1], [], []>} : vector<16x8xf32>, vector<8x32xf32>, vector<16x32xf32> -> vector<16x32xf32>
    %291 = arith.addf %271, %290 : vector<16x32xf32>
    %292 = arith.addf %175, %291 : vector<16x32xf32>
    %c1_129 = arith.constant 1 : index
    %c0_130 = arith.constant 0 : index
    %c0_131 = arith.constant 0 : index
    %293 = vector.load %arg9[%c1_129, %c0_130, %c0_131] : memref<2x1x32xf32, #tpu.memory_space<vmem>>, vector<1x1x32xf32>
    %294 = vector.shape_cast %293 : vector<1x1x32xf32> to vector<1x32xf32>
    %295 = vector.broadcast %294 : vector<1x32xf32> to vector<16x32xf32>
    %296 = arith.addf %292, %295 : vector<16x32xf32>
    %c1_132 = arith.constant 1 : index
    %c0_133 = arith.constant 0 : index
    %c0_134 = arith.constant 0 : index
    %297 = vector.load %arg10[%c1_132, %c0_133, %c0_134] : memref<2x1x32xf32, #tpu.memory_space<vmem>>, vector<1x1x32xf32>
    %298 = vector.shape_cast %297 : vector<1x1x32xf32> to vector<1x32xf32>
    %c1_135 = arith.constant 1 : index
    %c0_136 = arith.constant 0 : index
    %c0_137 = arith.constant 0 : index
    %299 = vector.load %arg11[%c1_135, %c0_136, %c0_137] : memref<2x1x32xf32, #tpu.memory_space<vmem>>, vector<1x1x32xf32>
    %300 = vector.shape_cast %299 : vector<1x1x32xf32> to vector<1x32xf32>
    %cst_138 = arith.constant dense<0.000000e+00> : vector<16xf32>
    %301 = vector.multi_reduction <add>, %296, %cst_138 [1] : vector<16x32xf32> to vector<16xf32>
    %302 = vector.shape_cast %301 : vector<16xf32> to vector<16x1xf32>
    %cst_139 = arith.constant 3.200000e+01 : f32
    %303 = vector.broadcast %cst_139 : f32 to vector<16x1xf32>
    %304 = arith.divf %302, %303 : vector<16x1xf32>
    %305 = vector.broadcast %304 : vector<16x1xf32> to vector<16x32xf32>
    %306 = arith.subf %296, %305 : vector<16x32xf32>
    %307 = arith.mulf %306, %306 : vector<16x32xf32>
    %cst_140 = arith.constant dense<0.000000e+00> : vector<16xf32>
    %308 = vector.multi_reduction <add>, %307, %cst_140 [1] : vector<16x32xf32> to vector<16xf32>
    %309 = vector.shape_cast %308 : vector<16xf32> to vector<16x1xf32>
    %cst_141 = arith.constant 3.200000e+01 : f32
    %310 = vector.broadcast %cst_141 : f32 to vector<16x1xf32>
    %311 = arith.divf %309, %310 : vector<16x1xf32>
    %312 = vector.broadcast %304 : vector<16x1xf32> to vector<16x32xf32>
    %313 = arith.subf %296, %312 : vector<16x32xf32>
    %cst_142 = arith.constant 9.99999996E-13 : f32
    %314 = vector.broadcast %cst_142 : f32 to vector<16x1xf32>
    %315 = arith.addf %311, %314 : vector<16x1xf32>
    %316 = math.rsqrt %315 : vector<16x1xf32>
    %317 = vector.broadcast %316 : vector<16x1xf32> to vector<16x32xf32>
    %318 = arith.mulf %313, %317 : vector<16x32xf32>
    %319 = vector.broadcast %298 : vector<1x32xf32> to vector<16x32xf32>
    %320 = arith.mulf %318, %319 : vector<16x32xf32>
    %321 = vector.broadcast %300 : vector<1x32xf32> to vector<16x32xf32>
    %322 = arith.addf %320, %321 : vector<16x32xf32>
    %c1_143 = arith.constant 1 : index
    %c0_144 = arith.constant 0 : index
    %c0_145 = arith.constant 0 : index
    %323 = vector.load %arg12[%c1_143, %c0_144, %c0_145] : memref<2x32x128xf32, #tpu.memory_space<vmem>>, vector<1x32x128xf32>
    %324 = vector.shape_cast %323 : vector<1x32x128xf32> to vector<32x128xf32>
    %cst_146 = arith.constant dense<0.000000e+00> : vector<16x128xf32>
    %325 = tpu.matmul %322, %324, %cst_146 {dimension_numbers = #tpu.dot_dimension_numbers<[1], [0], [0], [1], [0, 0, 1, 1], [], []>} : vector<16x32xf32>, vector<32x128xf32>, vector<16x128xf32> -> vector<16x128xf32>
    %c1_147 = arith.constant 1 : index
    %c0_148 = arith.constant 0 : index
    %c0_149 = arith.constant 0 : index
    %326 = vector.load %arg13[%c1_147, %c0_148, %c0_149] : memref<2x1x128xf32, #tpu.memory_space<vmem>>, vector<1x1x128xf32>
    %327 = vector.shape_cast %326 : vector<1x1x128xf32> to vector<1x128xf32>
    %328 = vector.broadcast %327 : vector<1x128xf32> to vector<16x128xf32>
    %329 = arith.addf %325, %328 : vector<16x128xf32>
    %cst_150 = arith.constant 5.000000e-01 : f32
    %330 = vector.broadcast %cst_150 : f32 to vector<16x128xf32>
    %331 = arith.mulf %330, %329 : vector<16x128xf32>
    %cst_151 = arith.constant 0.707106769 : f32
    %332 = vector.broadcast %cst_151 : f32 to vector<16x128xf32>
    %333 = arith.mulf %329, %332 : vector<16x128xf32>
    %334 = math.erf %333 : vector<16x128xf32>
    %cst_152 = arith.constant 1.000000e+00 : f32
    %335 = vector.broadcast %cst_152 : f32 to vector<16x128xf32>
    %336 = arith.addf %335, %334 : vector<16x128xf32>
    %337 = arith.mulf %331, %336 : vector<16x128xf32>
    %c1_153 = arith.constant 1 : index
    %c0_154 = arith.constant 0 : index
    %c0_155 = arith.constant 0 : index
    %338 = vector.load %arg14[%c1_153, %c0_154, %c0_155] : memref<2x128x32xf32, #tpu.memory_space<vmem>>, vector<1x128x32xf32>
    %339 = vector.shape_cast %338 : vector<1x128x32xf32> to vector<128x32xf32>
    %cst_156 = arith.constant dense<0.000000e+00> : vector<16x32xf32>
    %340 = tpu.matmul %337, %339, %cst_156 {dimension_numbers = #tpu.dot_dimension_numbers<[1], [0], [0], [1], [0, 0, 1, 1], [], []>} : vector<16x128xf32>, vector<128x32xf32>, vector<16x32xf32> -> vector<16x32xf32>
    %341 = arith.addf %296, %340 : vector<16x32xf32>
    %c1_157 = arith.constant 1 : index
    %c0_158 = arith.constant 0 : index
    %c0_159 = arith.constant 0 : index
    %342 = vector.load %arg15[%c1_157, %c0_158, %c0_159] : memref<2x1x32xf32, #tpu.memory_space<vmem>>, vector<1x1x32xf32>
    %343 = vector.shape_cast %342 : vector<1x1x32xf32> to vector<1x32xf32>
    %344 = vector.broadcast %343 : vector<1x32xf32> to vector<16x32xf32>
    %345 = arith.addf %341, %344 : vector<16x32xf32>
    %c0_160 = arith.constant 0 : index
    %c0_161 = arith.constant 0 : index
    %346 = vector.load %arg16[%c0_160, %c0_161] : memref<1x32xf32, #tpu.memory_space<vmem>>, vector<1x32xf32>
    %c0_162 = arith.constant 0 : index
    %c0_163 = arith.constant 0 : index
    %347 = vector.load %arg17[%c0_162, %c0_163] : memref<1x32xf32, #tpu.memory_space<vmem>>, vector<1x32xf32>
    %cst_164 = arith.constant dense<0.000000e+00> : vector<16xf32>
    %348 = vector.multi_reduction <add>, %345, %cst_164 [1] : vector<16x32xf32> to vector<16xf32>
    %349 = vector.shape_cast %348 : vector<16xf32> to vector<16x1xf32>
    %cst_165 = arith.constant 3.200000e+01 : f32
    %350 = vector.broadcast %cst_165 : f32 to vector<16x1xf32>
    %351 = arith.divf %349, %350 : vector<16x1xf32>
    %352 = vector.broadcast %351 : vector<16x1xf32> to vector<16x32xf32>
    %353 = arith.subf %345, %352 : vector<16x32xf32>
    %354 = arith.mulf %353, %353 : vector<16x32xf32>
    %cst_166 = arith.constant dense<0.000000e+00> : vector<16xf32>
    %355 = vector.multi_reduction <add>, %354, %cst_166 [1] : vector<16x32xf32> to vector<16xf32>
    %356 = vector.shape_cast %355 : vector<16xf32> to vector<16x1xf32>
    %cst_167 = arith.constant 3.200000e+01 : f32
    %357 = vector.broadcast %cst_167 : f32 to vector<16x1xf32>
    %358 = arith.divf %356, %357 : vector<16x1xf32>
    %359 = vector.broadcast %351 : vector<16x1xf32> to vector<16x32xf32>
    %360 = arith.subf %345, %359 : vector<16x32xf32>
    %cst_168 = arith.constant 9.99999996E-13 : f32
    %361 = vector.broadcast %cst_168 : f32 to vector<16x1xf32>
    %362 = arith.addf %358, %361 : vector<16x1xf32>
    %363 = math.rsqrt %362 : vector<16x1xf32>
    %364 = vector.broadcast %363 : vector<16x1xf32> to vector<16x32xf32>
    %365 = arith.mulf %360, %364 : vector<16x32xf32>
    %366 = vector.broadcast %346 : vector<1x32xf32> to vector<16x32xf32>
    %367 = arith.mulf %365, %366 : vector<16x32xf32>
    %368 = vector.broadcast %347 : vector<1x32xf32> to vector<16x32xf32>
    %369 = arith.addf %367, %368 : vector<16x32xf32>
    %c0_169 = arith.constant 0 : index
    %c0_170 = arith.constant 0 : index
    %370 = vector.load %arg18[%c0_169, %c0_170] : memref<32x128xf32, #tpu.memory_space<vmem>>, vector<32x128xf32>
    %cst_171 = arith.constant dense<0.000000e+00> : vector<16x128xf32>
    %371 = tpu.matmul %369, %370, %cst_171 {dimension_numbers = #tpu.dot_dimension_numbers<[1], [0], [0], [1], [0, 0, 1, 1], [], []>} : vector<16x32xf32>, vector<32x128xf32>, vector<16x128xf32> -> vector<16x128xf32>
    %c0_172 = arith.constant 0 : index
    %c0_173 = arith.constant 0 : index
    %372 = vector.load %arg19[%c0_172, %c0_173] : memref<1x128xf32, #tpu.memory_space<vmem>>, vector<1x128xf32>
    %373 = vector.broadcast %372 : vector<1x128xf32> to vector<16x128xf32>
    %374 = arith.addf %371, %373 : vector<16x128xf32>
    %c0_174 = arith.constant 0 : index
    %c0_175 = arith.constant 0 : index
    %375 = vector.load %arg20[%c0_174, %c0_175] : memref<16x128xf32, #tpu.memory_space<vmem>>, vector<16x128xf32>
    tpu.vector_store %arg20[%c0_174, %c0_175], %374 {strides = array<i32>} : memref<16x128xf32, #tpu.memory_space<vmem>>, vector<16x128xf32>,
    return
  }
}

</mosaic_0001>

<llo_original>
// kernel: full_vit_forward.1
$region0: #{full_vit_forward.1}
  #allocation0 [shape = 'u32[]', space=smem, size = 0x4, offset = 0x4, fixed_abs, tag = 'smem constant byte address 0x4 - core index']
  #allocation1 [shape = 'u32[144,128]{1,0:T(1,128)}', space=vmem, size = 0x12000, scoped, tag = 'internal scratch']
  %s0 = inlined_call_operand.vmem [shape: f32[16,192], index: 0, kind: input, shape index: {}]
  %s1 = inlined_call_operand.vmem [shape: f32[16,32], index: 1, kind: input, shape index: {}]
  %s2 = inlined_call_operand.vmem [shape: f32[16,16], index: 2, kind: input, shape index: {}]
  %s3 = inlined_call_operand.vmem [shape: f32[192,32], index: 3, kind: input, shape index: {}]
  %s4 = inlined_call_operand.vmem [shape: f32[2,1,32], index: 4, kind: input, shape index: {}]
  %s5 = inlined_call_operand.vmem [shape: f32[2,1,32], index: 5, kind: input, shape index: {}]
  %s6 = inlined_call_operand.vmem [shape: f32[2,32,96], index: 6, kind: input, shape index: {}]
  %s7 = inlined_call_operand.vmem [shape: f32[2,1,96], index: 7, kind: input, shape index: {}]
  %s8 = inlined_call_operand.vmem [shape: f32[2,32,32], index: 8, kind: input, shape index: {}]
  %s9 = inlined_call_operand.vmem [shape: f32[2,1,32], index: 9, kind: input, shape index: {}]
  %s10 = inlined_call_operand.vmem [shape: f32[2,1,32], index: 10, kind: input, shape index: {}]
  %s11 = inlined_call_operand.vmem [shape: f32[2,1,32], index: 11, kind: input, shape index: {}]
  %s12 = inlined_call_operand.vmem [shape: f32[2,32,128], index: 12, kind: input, shape index: {}]
  %s13 = inlined_call_operand.vmem [shape: f32[2,1,128], index: 13, kind: input, shape index: {}]
  %s14 = inlined_call_operand.vmem [shape: f32[2,128,32], index: 14, kind: input, shape index: {}]
  %s15 = inlined_call_operand.vmem [shape: f32[2,1,32], index: 15, kind: input, shape index: {}]
  %s16 = inlined_call_operand.vmem [shape: f32[1,32], index: 16, kind: input, shape index: {}]
  %s17 = inlined_call_operand.vmem [shape: f32[1,32], index: 17, kind: input, shape index: {}]
  %s18 = inlined_call_operand.vmem [shape: f32[32,128], index: 18, kind: input, shape index: {}]
  %s19 = inlined_call_operand.vmem [shape: f32[1,128], index: 19, kind: input, shape index: {}]
  %s20 = inlined_call_operand.vmem [shape: f32[16,128], index: 20, kind: output, shape index: {}]
  %s21 = sld [smem:[#allocation0]]
  $region90: #{full_vit_forward.1} parent=0
    _
  %s23 = ssub.s32 1, %s21
  %s24 = scalar_select 0, %s23, %s21
  // Predicated region
  $region2: #{full_vit_forward.1} parent=0 // pred_check
    _
  $region3: #{full_vit_forward.1} parent=0 // pred_check_branch
    %26 = sbr.rel (0) target = $region5
  $region4: #{full_vit_forward.1} parent=0 // pred_region
    _
  $region5: #{full_vit_forward.1} parent=0 // pred_fallthru
    _
  // Predicated region
  $region6: #{full_vit_forward.1} parent=0 // pred_check
    _
  $region7: #{full_vit_forward.1} parent=0 // pred_check_branch
    %28 = sbr.rel (0) target = $region9
  $region8: #{full_vit_forward.1} parent=0 // pred_region
    _
  $region9: #{full_vit_forward.1} parent=0 // pred_fallthru
    _
  // Predicated region
  $region10: #{full_vit_forward.1} parent=0 // pred_check
    _
  $region11: #{full_vit_forward.1} parent=0 // pred_check_branch
    %30 = sbr.rel (0) target = $region13
  $region12: #{full_vit_forward.1} parent=0 // pred_region
    _
  $region13: #{full_vit_forward.1} parent=0 // pred_fallthru
    _
  // Predicated region
  $region14: #{full_vit_forward.1} parent=0 // pred_check
    _
  $region15: #{full_vit_forward.1} parent=0 // pred_check_branch
    %32 = sbr.rel (0) target = $region17
  $region16: #{full_vit_forward.1} parent=0 // pred_region
    _
  $region17: #{full_vit_forward.1} parent=0 // pred_fallthru
    _
  // Predicated region
  $region18: #{full_vit_forward.1} parent=0 // pred_check
    _
  $region19: #{full_vit_forward.1} parent=0 // pred_check_branch
    %34 = sbr.rel (0) target = $region21
  $region20: #{full_vit_forward.1} parent=0 // pred_region
    _
  $region21: #{full_vit_forward.1} parent=0 // pred_fallthru
    _
  // Predicated region
  $region22: #{full_vit_forward.1} parent=0 // pred_check
    _
  $region23: #{full_vit_forward.1} parent=0 // pred_check_branch
    %36 = sbr.rel (0) target = $region25
  $region24: #{full_vit_forward.1} parent=0 // pred_region
    _
  $region25: #{full_vit_forward.1} parent=0 // pred_fallthru
    _
  // Predicated region
  $region26: #{full_vit_forward.1} parent=0 // pred_check
    _
  $region27: #{full_vit_forward.1} parent=0 // pred_check_branch
    %38 = sbr.rel (0) target = $region29
  $region28: #{full_vit_forward.1} parent=0 // pred_region
    _
  $region29: #{full_vit_forward.1} parent=0 // pred_fallthru
    _
  // Predicated region
  $region30: #{full_vit_forward.1} parent=0 // pred_check
    _
  $region31: #{full_vit_forward.1} parent=0 // pred_check_branch
    %40 = sbr.rel (0) target = $region33
  $region32: #{full_vit_forward.1} parent=0 // pred_region
    _
  $region33: #{full_vit_forward.1} parent=0 // pred_fallthru
    _
  // Predicated region
  $region34: #{full_vit_forward.1} parent=0 // pred_check
    _
  $region35: #{full_vit_forward.1} parent=0 // pred_check_branch
    %42 = sbr.rel (0) target = $region37
  $region36: #{full_vit_forward.1} parent=0 // pred_region
    _
  $region37: #{full_vit_forward.1} parent=0 // pred_fallthru
    _
  // Predicated region
  $region38: #{full_vit_forward.1} parent=0 // pred_check
    _
  $region39: #{full_vit_forward.1} parent=0 // pred_check_branch
    %44 = sbr.rel (0) target = $region41
  $region40: #{full_vit_forward.1} parent=0 // pred_region
    _
  $region41: #{full_vit_forward.1} parent=0 // pred_fallthru
    _
  // Predicated region
  $region42: #{full_vit_forward.1} parent=0 // pred_check
    _
  $region43: #{full_vit_forward.1} parent=0 // pred_check_branch
    %46 = sbr.rel (0) target = $region45
  $region44: #{full_vit_forward.1} parent=0 // pred_region
    _
  $region45: #{full_vit_forward.1} parent=0 // pred_fallthru
    _
  // Predicated region
  $region46: #{full_vit_forward.1} parent=0 // pred_check
    _
  $region47: #{full_vit_forward.1} parent=0 // pred_check_branch
    %48 = sbr.rel (0) target = $region49
  $region48: #{full_vit_forward.1} parent=0 // pred_region
    _
  $region49: #{full_vit_forward.1} parent=0 // pred_fallthru
    _
  // Predicated region
  $region50: #{full_vit_forward.1} parent=0 // pred_check
    _
  $region51: #{full_vit_forward.1} parent=0 // pred_check_branch
    %50 = sbr.rel (0) target = $region53
  $region52: #{full_vit_forward.1} parent=0 // pred_region
    _
  $region53: #{full_vit_forward.1} parent=0 // pred_fallthru
    _
  // Predicated region
  $region54: #{full_vit_forward.1} parent=0 // pred_check
    _
  $region55: #{full_vit_forward.1} parent=0 // pred_check_branch
    %52 = sbr.rel (0) target = $region57
  $region56: #{full_vit_forward.1} parent=0 // pred_region
    _
  $region57: #{full_vit_forward.1} parent=0 // pred_fallthru
    _
  // Predicated region
  $region58: #{full_vit_forward.1} parent=0 // pred_check
    _
  $region59: #{full_vit_forward.1} parent=0 // pred_check_branch
    %54 = sbr.rel (0) target = $region61
  $region60: #{full_vit_forward.1} parent=0 // pred_region
    _
  $region61: #{full_vit_forward.1} parent=0 // pred_fallthru
    _
  // Predicated region
  $region62: #{full_vit_forward.1} parent=0 // pred_check
    _
  $region63: #{full_vit_forward.1} parent=0 // pred_check_branch
    %56 = sbr.rel (0) target = $region65
  $region64: #{full_vit_forward.1} parent=0 // pred_region
    _
  $region65: #{full_vit_forward.1} parent=0 // pred_fallthru
    _
  // Predicated region
  $region66: #{full_vit_forward.1} parent=0 // pred_check
    _
  $region67: #{full_vit_forward.1} parent=0 // pred_check_branch
    %58 = sbr.rel (0) target = $region69
  $region68: #{full_vit_forward.1} parent=0 // pred_region
    _
  $region69: #{full_vit_forward.1} parent=0 // pred_fallthru
    _
  // Predicated region
  $region70: #{full_vit_forward.1} parent=0 // pred_check
    _
  $region71: #{full_vit_forward.1} parent=0 // pred_check_branch
    %60 = sbr.rel (0) target = $region73
  $region72: #{full_vit_forward.1} parent=0 // pred_region
    _
  $region73: #{full_vit_forward.1} parent=0 // pred_fallthru
    _
  // Predicated region
  $region74: #{full_vit_forward.1} parent=0 // pred_check
    _
  $region75: #{full_vit_forward.1} parent=0 // pred_check_branch
    %62 = sbr.rel (0) target = $region77
  $region76: #{full_vit_forward.1} parent=0 // pred_region
    _
  $region77: #{full_vit_forward.1} parent=0 // pred_fallthru
    _
  // Predicated region
  $region78: #{full_vit_forward.1} parent=0 // pred_check
    _
  $region79: #{full_vit_forward.1} parent=0 // pred_check_branch
    %64 = sbr.rel (0) target = $region81
  $region80: #{full_vit_forward.1} parent=0 // pred_region
    _
  $region81: #{full_vit_forward.1} parent=0 // pred_fallthru
    _
  %v65 = vld [vmem:[%s0] sm:$0xff]
  %v66 = vld [vmem:[%s0 + $0x8] sm:$0xff]
  %v67 = vld [vmem:[%s0 + $0x10] sm:$0xff]
  %v68 = vld [vmem:[%s0 + $0x18] sm:$0xff]
  %v69 = vld [vmem:[%s3] sm:$0xff]
  %v70 = vld [vmem:[%s3 + $0x8] sm:$0xff]
  %v71 = vld [vmem:[%s3 + $0x10] sm:$0xff]
  %v72 = vld [vmem:[%s3 + $0x18] sm:$0xff]
  %v73 = vld [vmem:[%s3 + $0x20] sm:$0xff]
  %v74 = vld [vmem:[%s3 + $0x28] sm:$0xff]
  %v75 = vld [vmem:[%s3 + $0x30] sm:$0xff]
  %v76 = vld [vmem:[%s3 + $0x38] sm:$0xff]
  %v77 = vld [vmem:[%s3 + $0x40] sm:$0xff]
  %v78 = vld [vmem:[%s3 + $0x48] sm:$0xff]
  %v79 = vld [vmem:[%s3 + $0x50] sm:$0xff]
  %v80 = vld [vmem:[%s3 + $0x58] sm:$0xff]
  %v81 = vld [vmem:[%s3 + $0x60] sm:$0xff]
  %v82 = vld [vmem:[%s3 + $0x68] sm:$0xff]
  %v83 = vld [vmem:[%s3 + $0x70] sm:$0xff]
  %v84 = vld [vmem:[%s3 + $0x78] sm:$0xff]
  %v85 = vld [vmem:[%s3 + $0x80] sm:$0xff]
  %v86 = vld [vmem:[%s3 + $0x88] sm:$0xff]
  %v87 = vld [vmem:[%s3 + $0x90] sm:$0xff]
  %v88 = vld [vmem:[%s3 + $0x98] sm:$0xff]
  %v89 = vld [vmem:[%s3 + $0xa0] sm:$0xff]
  %v90 = vld [vmem:[%s3 + $0xa8] sm:$0xff]
  %v91 = vld [vmem:[%s3 + $0xb0] sm:$0xff]
  %v92 = vld [vmem:[%s3 + $0xb8] sm:$0xff]
  %v93 = vld [vmem:[%s1] sm:$0xff]
  %v94 = vld [vmem:[%s1 + $0x8] sm:$0xff]
  %vm95 = vcmask 523264
  %v97 = vsel %vm95, %v66, 0
  %v100 = vsel %vm95, %v68, 0
  %102 = vmatprep.subr.mxu0 0.0
  %103 = vmatpush1.msra.mxu0 %v84
  %104 = vmatprep.subr.mxu0 0.0
  %105 = vmatpush1.msra.mxu0 %v83
  %106 = vmatprep.subr.mxu0 0.0
  %107 = vmatpush1.msra.mxu0 %v82
  %108 = vmatprep.subr.mxu0 0.0
  %109 = vmatpush1.msra.mxu0 %v81
  %110 = vmatprep.subr.mxu0 0.0
  %111 = vmatpush1.msra.mxu0 %v80
  %112 = vmatprep.subr.mxu0 0.0
  %113 = vmatpush1.msra.mxu0 %v79
  %114 = vmatprep.subr.mxu0 0.0
  %115 = vmatpush1.msra.mxu0 %v78
  %116 = vmatprep.subr.mxu0 0.0
  %117 = vmatpush1.msra.mxu0 %v77
  %118 = vmatprep.subr.mxu0 0.0
  %119 = vmatpush1.msra.mxu0 %v76
  %120 = vmatprep.subr.mxu0 0.0
  %121 = vmatpush1.msra.mxu0 %v75
  %122 = vmatprep.subr.mxu0 0.0
  %123 = vmatpush1.msra.mxu0 %v74
  %124 = vmatprep.subr.mxu0 0.0
  %125 = vmatpush1.msra.mxu0 %v73
  %126 = vmatprep.subr.mxu0 0.0
  %127 = vmatpush1.msra.mxu0 %v72
  %128 = vmatprep.subr.mxu0 0.0
  %129 = vmatpush1.msra.mxu0 %v71
  %130 = vmatprep.subr.mxu0 0.0
  %131 = vmatpush1.msra.mxu0 %v70
  %132 = vmatprep.subr.mxu0 0.0
  %133 = vmatpush1.msra.mxu0 %v69
  %134 = vmatprep.subr.mxu0 0.0
  %135 = vmatpush2.msra.mxu0 0.0
  %136 = vmatprep.subr.mxu0 0.0
  %137 = vmatpush2.msra.mxu0 0.0
  %138 = vmatprep.subr.mxu0 0.0
  %139 = vmatpush2.msra.mxu0 0.0
  %140 = vmatprep.subr.mxu0 0.0
  %141 = vmatpush2.msra.mxu0 0.0
  %142 = vmatprep.subr.mxu0 0.0
  %143 = vmatpush2.msra.mxu0 0.0
  %144 = vmatprep.subr.mxu0 0.0
  %145 = vmatpush2.msra.mxu0 0.0
  %146 = vmatprep.subr.mxu0 0.0
  %147 = vmatpush2.msra.mxu0 0.0
  %148 = vmatprep.subr.mxu0 0.0
  %149 = vmatpush2.msra.mxu0 0.0
  %150 = vmatprep.subr.mxu0 0.0
  %151 = vmatpush2.msra.mxu0 %v92
  %152 = vmatprep.subr.mxu0 0.0
  %153 = vmatpush2.msra.mxu0 %v91
  %154 = vmatprep.subr.mxu0 0.0
  %155 = vmatpush2.msra.mxu0 %v90
  %156 = vmatprep.subr.mxu0 0.0
  %157 = vmatpush2.msra.mxu0 %v89
  %158 = vmatprep.subr.mxu0 0.0
  %159 = vmatpush2.msra.mxu0 %v88
  %160 = vmatprep.subr.mxu0 0.0
  %161 = vmatpush2.msra.mxu0 %v87
  %162 = vmatprep.subr.mxu0 0.0
  %163 = vmatpush2.msra.mxu0 %v86
  %164 = vmatprep.subr.mxu0 0.0
  %165 = vmatpush2.msra.mxu0 %v85
  %166 = vmatprep.mubr.f32.mxu0 %v97
  %167 = vmatmul.mubr.f32.gmra.mxu0 %v65
  %v168 = vpop.f32.mrf.mxu0
  %v169 = vadd.f32 %v93, %v168
  %v170 = vpop.f32.mrf.mxu0
  %171 = vmatprep.mubr.f32.mxu0 %v100
  %172 = vmatmul.mubr.f32.gmra.mxu0 %v67
  %v173 = vpop.f32.mrf.mxu0
  %v174 = vadd.f32 %v94, %v173
  %v175 = vpop.f32.mrf.mxu0
  %176 = vdwg.mxu0
  %v177 = vld [vmem:[%s2] sm:$0xff]
  %v178 = vld [vmem:[%s2 + $0x8] sm:$0xff]
  %v179 = vld [vmem:[%s4] sm:$0x1]
  %v180 = vld [vmem:[%s5] sm:$0x1]
  %vm181 = vcmask 261120
  %v182 = vsel %vm181, %v169, 0.0
  %183 = vadd.xlane.f32.xlu0 %v182
  %v184 = vpop.xlane.xlu0 %183
  %v185 = vsel %vm181, %v174, 0.0
  %186 = vadd.xlane.f32.xlu0 %v185
  %v187 = vpop.xlane.xlu0 %186
  %v188 = vrcp.pop 32.0
  %v189 = vmul.f32 %v184, %v188
  %v190 = vmul.f32 %v187, %v188
  %v191 = vsub.f32 %v169, %v189
  %v192 = vsub.f32 %v174, %v190
  %v193 = vmul.f32 %v191, %v191
  %v194 = vmul.f32 %v192, %v192
  %v195 = vsel %vm181, %v193, 0.0
  %196 = vadd.xlane.f32.xlu0 %v195
  %v197 = vpop.xlane.xlu0 %196
  %v198 = vsel %vm181, %v194, 0.0
  %199 = vadd.xlane.f32.xlu0 %v198
  %v200 = vpop.xlane.xlu0 %199
  %v201 = vmul.f32 %v197, %v188
  %v202 = vmul.f32 %v200, %v188
  %v203 = vadd.f32 %v201, 1e-12
  %v204 = vadd.f32 %v202, 1e-12
  %v205 = vrsqrt.pop %v203
  %v206 = vrsqrt.pop %v204
  %v207 = vmul.f32 %v191, %v205
  %v208 = vmul.f32 %v192, %v206
  %v210 = vlaneseq
  %v211 = vshrl.u32 %v210, 7
  %v212 = vsub.s32 0, %v211
  %v213 = vrot.slane %v179, %v212
  %v215 = vmul.f32 %v207, %v213
  %v216 = vmul.f32 %v208, %v213
  %v218 = vlaneseq
  %v219 = vshrl.u32 %v218, 7
  %v220 = vsub.s32 0, %v219
  %v221 = vrot.slane %v180, %v220
  %v223 = vadd.f32 %v215, %v221
  %v224 = vadd.f32 %v216, %v221
  %v225 = vld [vmem:[%s6] sm:$0xff]
  %v226 = vld [vmem:[%s6 + $0x8] sm:$0xff]
  %v227 = vld [vmem:[%s6 + $0x10] sm:$0xff]
  %v228 = vld [vmem:[%s6 + $0x18] sm:$0xff]
  %v229 = vld [vmem:[%s7] sm:$0x1]
  %v231 = vlaneseq
  %v232 = vshrl.u32 %v231, 7
  %v233 = vsub.s32 0, %v232
  %v234 = vrot.slane %v229, %v233
  %v237 = vsel %vm181, %v223, 0
  %v240 = vsel %vm181, %v224, 0
  %242 = vmatprep.subr.mxu0 0.0
  %243 = vmatpush1.msra.mxu0 0.0
  %244 = vmatprep.subr.mxu0 0.0
  %245 = vmatpush1.msra.mxu0 0.0
  %246 = vmatprep.subr.mxu0 0.0
  %247 = vmatpush1.msra.mxu0 0.0
  %248 = vmatprep.subr.mxu0 0.0
  %249 = vmatpush1.msra.mxu0 0.0
  %250 = vmatprep.subr.mxu0 0.0
  %251 = vmatpush1.msra.mxu0 0.0
  %252 = vmatprep.subr.mxu0 0.0
  %253 = vmatpush1.msra.mxu0 0.0
  %254 = vmatprep.subr.mxu0 0.0
  %255 = vmatpush1.msra.mxu0 0.0
  %256 = vmatprep.subr.mxu0 0.0
  %257 = vmatpush1.msra.mxu0 0.0
  %258 = vmatprep.subr.mxu0 0.0
  %259 = vmatpush1.msra.mxu0 0.0
  %260 = vmatprep.subr.mxu0 0.0
  %261 = vmatpush1.msra.mxu0 0.0
  %262 = vmatprep.subr.mxu0 0.0
  %263 = vmatpush1.msra.mxu0 0.0
  %264 = vmatprep.subr.mxu0 0.0
  %265 = vmatpush1.msra.mxu0 0.0
  %266 = vmatprep.subr.mxu0 0.0
  %267 = vmatpush1.msra.mxu0 %v228
  %268 = vmatprep.subr.mxu0 0.0
  %269 = vmatpush1.msra.mxu0 %v227
  %270 = vmatprep.subr.mxu0 0.0
  %271 = vmatpush1.msra.mxu0 %v226
  %272 = vmatprep.subr.mxu0 0.0
  %273 = vmatpush1.msra.mxu0 %v225
  %274 = vmatprep.subr.mxu0 0.0
  %275 = vmatpush2.msra.mxu0 0.0
  %276 = vmatprep.subr.mxu0 0.0
  %277 = vmatpush2.msra.mxu0 0.0
  %278 = vmatprep.subr.mxu0 0.0
  %279 = vmatpush2.msra.mxu0 0.0
  %280 = vmatprep.subr.mxu0 0.0
  %281 = vmatpush2.msra.mxu0 0.0
  %282 = vmatprep.subr.mxu0 0.0
  %283 = vmatpush2.msra.mxu0 0.0
  %284 = vmatprep.subr.mxu0 0.0
  %285 = vmatpush2.msra.mxu0 0.0
  %286 = vmatprep.subr.mxu0 0.0
  %287 = vmatpush2.msra.mxu0 0.0
  %288 = vmatprep.subr.mxu0 0.0
  %289 = vmatpush2.msra.mxu0 0.0
  %290 = vmatprep.subr.mxu0 0.0
  %291 = vmatpush2.msra.mxu0 0.0
  %292 = vmatprep.subr.mxu0 0.0
  %293 = vmatpush2.msra.mxu0 0.0
  %294 = vmatprep.subr.mxu0 0.0
  %295 = vmatpush2.msra.mxu0 0.0
  %296 = vmatprep.subr.mxu0 0.0
  %297 = vmatpush2.msra.mxu0 0.0
  %298 = vmatprep.subr.mxu0 0.0
  %299 = vmatpush2.msra.mxu0 0.0
  %300 = vmatprep.subr.mxu0 0.0
  %301 = vmatpush2.msra.mxu0 0.0
  %302 = vmatprep.subr.mxu0 0.0
  %303 = vmatpush2.msra.mxu0 0.0
  %304 = vmatprep.subr.mxu0 0.0
  %305 = vmatpush2.msra.mxu0 0.0
  %306 = vmatprep.mubr.f32.mxu0 0.0
  %307 = vmatmul.mubr.f32.gmra.mxu0 %v237
  %v308 = vpop.f32.mrf.mxu0
  %v309 = vadd.f32 %v234, %v308
  %v310 = vpop.f32.mrf.mxu0
  %311 = vmatprep.mubr.f32.mxu0 0.0
  %312 = vmatmul.mubr.f32.gmra.mxu0 %v240
  %v313 = vpop.f32.mrf.mxu0
  %v314 = vadd.f32 %v234, %v313
  %v315 = vpop.f32.mrf.mxu0
  %316 = vdwg.mxu0
  %v317 = vld [vmem:[%s8] sm:$0xff]
  %v318 = vld [vmem:[%s8 + $0x8] sm:$0xff]
  %v319 = vld [vmem:[%s8 + $0x10] sm:$0xff]
  %v320 = vld [vmem:[%s8 + $0x18] sm:$0xff]
  %323 = vrot.lane.b32.xlu0 %v309, 96
  %v324 = vpop.permute.xlu0 %323
  %325 = vrot.lane.b32.xlu0 %v314, 96
  %v326 = vpop.permute.xlu0 %325
  %vm327 = vcmask 64512
  %v328 = vsel %vm327, %v309, 0
  %v330 = vsel %vm327, %v314, 0
  %v332 = vsel %vm327, %v324, 0
  %v334 = vsel %vm327, %v326, 0
  %336 = vmatprep.subr.mxu0 0.0
  %337 = vmatpush1.xpose.msra.mxu0 0.0
  %338 = vmatprep.subr.mxu0 0.0
  %339 = vmatpush1.xpose.msra.mxu0 0.0
  %340 = vmatprep.subr.mxu0 0.0
  %341 = vmatpush1.xpose.msra.mxu0 0.0
  %342 = vmatprep.subr.mxu0 0.0
  %343 = vmatpush1.xpose.msra.mxu0 0.0
  %344 = vmatprep.subr.mxu0 0.0
  %345 = vmatpush1.xpose.msra.mxu0 0.0
  %346 = vmatprep.subr.mxu0 0.0
  %347 = vmatpush1.xpose.msra.mxu0 0.0
  %348 = vmatprep.subr.mxu0 0.0
  %349 = vmatpush1.xpose.msra.mxu0 0.0
  %350 = vmatprep.subr.mxu0 0.0
  %351 = vmatpush1.xpose.msra.mxu0 0.0
  %352 = vmatprep.subr.mxu0 0.0
  %353 = vmatpush1.xpose.msra.mxu0 0.0
  %354 = vmatprep.subr.mxu0 0.0
  %355 = vmatpush1.xpose.msra.mxu0 0.0
  %356 = vmatprep.subr.mxu0 0.0
  %357 = vmatpush1.xpose.msra.mxu0 0.0
  %358 = vmatprep.subr.mxu0 0.0
  %359 = vmatpush1.xpose.msra.mxu0 0.0
  %360 = vmatprep.subr.mxu0 0.0
  %361 = vmatpush1.xpose.msra.mxu0 0.0
  %362 = vmatprep.subr.mxu0 0.0
  %363 = vmatpush1.xpose.msra.mxu0 0.0
  %364 = vmatprep.subr.mxu0 0.0
  %365 = vmatpush1.xpose.msra.mxu0 %v334
  %366 = vmatprep.subr.mxu0 0.0
  %367 = vmatpush1.xpose.msra.mxu0 %v332
  %368 = vmatprep.subr.mxu0 0.0
  %369 = vmatpush2.xpose.msra.mxu0 0.0
  %370 = vmatprep.subr.mxu0 0.0
  %371 = vmatpush2.xpose.msra.mxu0 0.0
  %372 = vmatprep.subr.mxu0 0.0
  %373 = vmatpush2.xpose.msra.mxu0 0.0
  %374 = vmatprep.subr.mxu0 0.0
  %375 = vmatpush2.xpose.msra.mxu0 0.0
  %376 = vmatprep.subr.mxu0 0.0
  %377 = vmatpush2.xpose.msra.mxu0 0.0
  %378 = vmatprep.subr.mxu0 0.0
  %379 = vmatpush2.xpose.msra.mxu0 0.0
  %380 = vmatprep.subr.mxu0 0.0
  %381 = vmatpush2.xpose.msra.mxu0 0.0
  %382 = vmatprep.subr.mxu0 0.0
  %383 = vmatpush2.xpose.msra.mxu0 0.0
  %384 = vmatprep.subr.mxu0 0.0
  %385 = vmatpush2.xpose.msra.mxu0 0.0
  %386 = vmatprep.subr.mxu0 0.0
  %387 = vmatpush2.xpose.msra.mxu0 0.0
  %388 = vmatprep.subr.mxu0 0.0
  %389 = vmatpush2.xpose.msra.mxu0 0.0
  %390 = vmatprep.subr.mxu0 0.0
  %391 = vmatpush2.xpose.msra.mxu0 0.0
  %392 = vmatprep.subr.mxu0 0.0
  %393 = vmatpush2.xpose.msra.mxu0 0.0
  %394 = vmatprep.subr.mxu0 0.0
  %395 = vmatpush2.xpose.msra.mxu0 0.0
  %396 = vmatprep.subr.mxu0 0.0
  %397 = vmatpush2.xpose.msra.mxu0 0.0
  %398 = vmatprep.subr.mxu0 0.0
  %399 = vmatpush2.xpose.msra.mxu0 0.0
  %400 = vmatprep.mubr.f32.mxu0 0.0
  %401 = vmatmul.mubr.f32.gmra.mxu0 %v328
  %v402 = vpop.f32.mrf.mxu0
  %v403 = vadd.f32 0.0, %v402
  %v404 = vpop.f32.mrf.mxu0
  %405 = vmatprep.mubr.f32.mxu0 0.0
  %406 = vmatmul.mubr.f32.gmra.mxu0 %v330
  %v407 = vpop.f32.mrf.mxu0
  %v408 = vadd.f32 0.0, %v407
  %v409 = vpop.f32.mrf.mxu0
  %410 = vdwg.mxu0
  %v411 = vmul.f32 %v403, 0.35355338
  %v412 = vmul.f32 %v408, 0.35355338
  %v413 = vadd.f32 %v411, %v177
  %v414 = vadd.f32 %v412, %v178
  %vm415 = vcmask 130048
  %v416 = vsel %vm415, %v413, -inf
  %417 = vmax.xlane.f32.xlu0 %v416
  %v418 = vpop.xlane.xlu0 %417
  %v419 = vsel %vm415, %v414, -inf
  %420 = vmax.xlane.f32.xlu0 %v419
  %v421 = vpop.xlane.xlu0 %420
  %v422 = vsub.f32 %v413, %v418
  %v423 = vsub.f32 %v414, %v421
  %v424 = vmul.f32 %v422, 1.442695
  %v425 = vpow.pop %v424
  %v426 = vmul.f32 %v423, 1.442695
  %v427 = vpow.pop %v426
  %v428 = vsel %vm415, %v425, 0.0
  %429 = vadd.xlane.f32.xlu0 %v428
  %v430 = vpop.xlane.xlu0 %429
  %v431 = vsel %vm415, %v427, 0.0
  %432 = vadd.xlane.f32.xlu0 %v431
  %v433 = vpop.xlane.xlu0 %432
  %v434 = vrcp.pop %v430
  %v435 = vmul.f32 %v425, %v434
  %v436 = vrcp.pop %v433
  %v437 = vmul.f32 %v427, %v436
  %438 = vrot.lane.b32.xlu0 %v309, 64
  %v439 = vpop.permute.xlu0 %438
  %440 = vrot.lane.b32.xlu0 %v314, 64
  %v441 = vpop.permute.xlu0 %440
  %v445 = vsel %vm415, %v435, 0
  %v448 = vsel %vm415, %v437, 0
  %450 = vmatprep.subr.mxu0 0.0
  %451 = vmatpush1.msra.mxu0 0.0
  %452 = vmatprep.subr.mxu0 0.0
  %453 = vmatpush1.msra.mxu0 0.0
  %454 = vmatprep.subr.mxu0 0.0
  %455 = vmatpush1.msra.mxu0 0.0
  %456 = vmatprep.subr.mxu0 0.0
  %457 = vmatpush1.msra.mxu0 0.0
  %458 = vmatprep.subr.mxu0 0.0
  %459 = vmatpush1.msra.mxu0 0.0
  %460 = vmatprep.subr.mxu0 0.0
  %461 = vmatpush1.msra.mxu0 0.0
  %462 = vmatprep.subr.mxu0 0.0
  %463 = vmatpush1.msra.mxu0 0.0
  %464 = vmatprep.subr.mxu0 0.0
  %465 = vmatpush1.msra.mxu0 0.0
  %466 = vmatprep.subr.mxu0 0.0
  %467 = vmatpush1.msra.mxu0 0.0
  %468 = vmatprep.subr.mxu0 0.0
  %469 = vmatpush1.msra.mxu0 0.0
  %470 = vmatprep.subr.mxu0 0.0
  %471 = vmatpush1.msra.mxu0 0.0
  %472 = vmatprep.subr.mxu0 0.0
  %473 = vmatpush1.msra.mxu0 0.0
  %474 = vmatprep.subr.mxu0 0.0
  %475 = vmatpush1.msra.mxu0 0.0
  %476 = vmatprep.subr.mxu0 0.0
  %477 = vmatpush1.msra.mxu0 0.0
  %478 = vmatprep.subr.mxu0 0.0
  %479 = vmatpush1.msra.mxu0 %v441
  %480 = vmatprep.subr.mxu0 0.0
  %481 = vmatpush1.msra.mxu0 %v439
  %482 = vmatprep.subr.mxu0 0.0
  %483 = vmatpush2.msra.mxu0 0.0
  %484 = vmatprep.subr.mxu0 0.0
  %485 = vmatpush2.msra.mxu0 0.0
  %486 = vmatprep.subr.mxu0 0.0
  %487 = vmatpush2.msra.mxu0 0.0
  %488 = vmatprep.subr.mxu0 0.0
  %489 = vmatpush2.msra.mxu0 0.0
  %490 = vmatprep.subr.mxu0 0.0
  %491 = vmatpush2.msra.mxu0 0.0
  %492 = vmatprep.subr.mxu0 0.0
  %493 = vmatpush2.msra.mxu0 0.0
  %494 = vmatprep.subr.mxu0 0.0
  %495 = vmatpush2.msra.mxu0 0.0
  %496 = vmatprep.subr.mxu0 0.0
  %497 = vmatpush2.msra.mxu0 0.0
  %498 = vmatprep.subr.mxu0 0.0
  %499 = vmatpush2.msra.mxu0 0.0
  %500 = vmatprep.subr.mxu0 0.0
  %501 = vmatpush2.msra.mxu0 0.0
  %502 = vmatprep.subr.mxu0 0.0
  %503 = vmatpush2.msra.mxu0 0.0
  %504 = vmatprep.subr.mxu0 0.0
  %505 = vmatpush2.msra.mxu0 0.0
  %506 = vmatprep.subr.mxu0 0.0
  %507 = vmatpush2.msra.mxu0 0.0
  %508 = vmatprep.subr.mxu0 0.0
  %509 = vmatpush2.msra.mxu0 0.0
  %510 = vmatprep.subr.mxu0 0.0
  %511 = vmatpush2.msra.mxu0 0.0
  %512 = vmatprep.subr.mxu0 0.0
  %513 = vmatpush2.msra.mxu0 0.0
  %514 = vmatprep.mubr.f32.mxu0 0.0
  %515 = vmatmul.mubr.f32.gmra.mxu0 %v445
  %v516 = vpop.f32.mrf.mxu0
  %v517 = vadd.f32 0.0, %v516
  %v518 = vpop.f32.mrf.mxu0
  %519 = vmatprep.mubr.f32.mxu0 0.0
  %520 = vmatmul.mubr.f32.gmra.mxu0 %v448
  %v521 = vpop.f32.mrf.mxu0
  %v522 = vadd.f32 0.0, %v521
  %v523 = vpop.f32.mrf.mxu0
  %524 = vdwg.mxu0
  %525 = vrot.lane.b32.xlu0 %v309, 120
  %v526 = vpop.permute.xlu0 %525
  %527 = vrot.lane.b32.xlu0 %v314, 120
  %v528 = vpop.permute.xlu0 %527
  %529 = vrot.lane.b32.xlu0 %v309, 88
  %v530 = vpop.permute.xlu0 %529
  %531 = vrot.lane.b32.xlu0 %v314, 88
  %v532 = vpop.permute.xlu0 %531
  %v533 = vsel %vm327, %v526, 0
  %v535 = vsel %vm327, %v528, 0
  %v537 = vsel %vm327, %v530, 0
  %v539 = vsel %vm327, %v532, 0
  %541 = vmatprep.subr.mxu0 0.0
  %542 = vmatpush1.xpose.msra.mxu0 0.0
  %543 = vmatprep.subr.mxu0 0.0
  %544 = vmatpush1.xpose.msra.mxu0 0.0
  %545 = vmatprep.subr.mxu0 0.0
  %546 = vmatpush1.xpose.msra.mxu0 0.0
  %547 = vmatprep.subr.mxu0 0.0
  %548 = vmatpush1.xpose.msra.mxu0 0.0
  %549 = vmatprep.subr.mxu0 0.0
  %550 = vmatpush1.xpose.msra.mxu0 0.0
  %551 = vmatprep.subr.mxu0 0.0
  %552 = vmatpush1.xpose.msra.mxu0 0.0
  %553 = vmatprep.subr.mxu0 0.0
  %554 = vmatpush1.xpose.msra.mxu0 0.0
  %555 = vmatprep.subr.mxu0 0.0
  %556 = vmatpush1.xpose.msra.mxu0 0.0
  %557 = vmatprep.subr.mxu0 0.0
  %558 = vmatpush1.xpose.msra.mxu0 0.0
  %559 = vmatprep.subr.mxu0 0.0
  %560 = vmatpush1.xpose.msra.mxu0 0.0
  %561 = vmatprep.subr.mxu0 0.0
  %562 = vmatpush1.xpose.msra.mxu0 0.0
  %563 = vmatprep.subr.mxu0 0.0
  %564 = vmatpush1.xpose.msra.mxu0 0.0
  %565 = vmatprep.subr.mxu0 0.0
  %566 = vmatpush1.xpose.msra.mxu0 0.0
  %567 = vmatprep.subr.mxu0 0.0
  %568 = vmatpush1.xpose.msra.mxu0 0.0
  %569 = vmatprep.subr.mxu0 0.0
  %570 = vmatpush1.xpose.msra.mxu0 %v539
  %571 = vmatprep.subr.mxu0 0.0
  %572 = vmatpush1.xpose.msra.mxu0 %v537
  %573 = vmatprep.subr.mxu0 0.0
  %574 = vmatpush2.xpose.msra.mxu0 0.0
  %575 = vmatprep.subr.mxu0 0.0
  %576 = vmatpush2.xpose.msra.mxu0 0.0
  %577 = vmatprep.subr.mxu0 0.0
  %578 = vmatpush2.xpose.msra.mxu0 0.0
  %579 = vmatprep.subr.mxu0 0.0
  %580 = vmatpush2.xpose.msra.mxu0 0.0
  %581 = vmatprep.subr.mxu0 0.0
  %582 = vmatpush2.xpose.msra.mxu0 0.0
  %583 = vmatprep.subr.mxu0 0.0
  %584 = vmatpush2.xpose.msra.mxu0 0.0
  %585 = vmatprep.subr.mxu0 0.0
  %586 = vmatpush2.xpose.msra.mxu0 0.0
  %587 = vmatprep.subr.mxu0 0.0
  %588 = vmatpush2.xpose.msra.mxu0 0.0
  %589 = vmatprep.subr.mxu0 0.0
  %590 = vmatpush2.xpose.msra.mxu0 0.0
  %591 = vmatprep.subr.mxu0 0.0
  %592 = vmatpush2.xpose.msra.mxu0 0.0
  %593 = vmatprep.subr.mxu0 0.0
  %594 = vmatpush2.xpose.msra.mxu0 0.0
  %595 = vmatprep.subr.mxu0 0.0
  %596 = vmatpush2.xpose.msra.mxu0 0.0
  %597 = vmatprep.subr.mxu0 0.0
  %598 = vmatpush2.xpose.msra.mxu0 0.0
  %599 = vmatprep.subr.mxu0 0.0
  %600 = vmatpush2.xpose.msra.mxu0 0.0
  %601 = vmatprep.subr.mxu0 0.0
  %602 = vmatpush2.xpose.msra.mxu0 0.0
  %603 = vmatprep.subr.mxu0 0.0
  %604 = vmatpush2.xpose.msra.mxu0 0.0
  %605 = vmatprep.mubr.f32.mxu0 0.0
  %606 = vmatmul.mubr.f32.gmra.mxu0 %v533
  %v607 = vpop.f32.mrf.mxu0
  %v608 = vadd.f32 0.0, %v607
  %v609 = vpop.f32.mrf.mxu0
  %610 = vmatprep.mubr.f32.mxu0 0.0
  %611 = vmatmul.mubr.f32.gmra.mxu0 %v535
  %v612 = vpop.f32.mrf.mxu0
  %v613 = vadd.f32 0.0, %v612
  %v614 = vpop.f32.mrf.mxu0
  %615 = vdwg.mxu0
  %v616 = vmul.f32 %v608, 0.35355338
  %v617 = vmul.f32 %v613, 0.35355338
  %v618 = vadd.f32 %v616, %v177
  %v619 = vadd.f32 %v617, %v178
  %v620 = vsel %vm415, %v618, -inf
  %621 = vmax.xlane.f32.xlu0 %v620
  %v622 = vpop.xlane.xlu0 %621
  %v623 = vsel %vm415, %v619, -inf
  %624 = vmax.xlane.f32.xlu0 %v623
  %v625 = vpop.xlane.xlu0 %624
  %v626 = vsub.f32 %v618, %v622
  %v627 = vsub.f32 %v619, %v625
  %v628 = vmul.f32 %v626, 1.442695
  %v629 = vpow.pop %v628
  %v630 = vmul.f32 %v627, 1.442695
  %v631 = vpow.pop %v630
  %v632 = vsel %vm415, %v629, 0.0
  %633 = vadd.xlane.f32.xlu0 %v632
  %v634 = vpop.xlane.xlu0 %633
  %v635 = vsel %vm415, %v631, 0.0
  %636 = vadd.xlane.f32.xlu0 %v635
  %v637 = vpop.xlane.xlu0 %636
  %v638 = vrcp.pop %v634
  %v639 = vmul.f32 %v629, %v638
  %v640 = vrcp.pop %v637
  %v641 = vmul.f32 %v631, %v640
  %642 = vrot.lane.b32.xlu0 %v309, 56
  %v643 = vpop.permute.xlu0 %642
  %644 = vrot.lane.b32.xlu0 %v314, 56
  %v645 = vpop.permute.xlu0 %644
  %v649 = vsel %vm415, %v639, 0
  %v652 = vsel %vm415, %v641, 0
  %654 = vmatprep.subr.mxu0 0.0
  %655 = vmatpush1.msra.mxu0 0.0
  %656 = vmatprep.subr.mxu0 0.0
  %657 = vmatpush1.msra.mxu0 0.0
  %658 = vmatprep.subr.mxu0 0.0
  %659 = vmatpush1.msra.mxu0 0.0
  %660 = vmatprep.subr.mxu0 0.0
  %661 = vmatpush1.msra.mxu0 0.0
  %662 = vmatprep.subr.mxu0 0.0
  %663 = vmatpush1.msra.mxu0 0.0
  %664 = vmatprep.subr.mxu0 0.0
  %665 = vmatpush1.msra.mxu0 0.0
  %666 = vmatprep.subr.mxu0 0.0
  %667 = vmatpush1.msra.mxu0 0.0
  %668 = vmatprep.subr.mxu0 0.0
  %669 = vmatpush1.msra.mxu0 0.0
  %670 = vmatprep.subr.mxu0 0.0
  %671 = vmatpush1.msra.mxu0 0.0
  %672 = vmatprep.subr.mxu0 0.0
  %673 = vmatpush1.msra.mxu0 0.0
  %674 = vmatprep.subr.mxu0 0.0
  %675 = vmatpush1.msra.mxu0 0.0
  %676 = vmatprep.subr.mxu0 0.0
  %677 = vmatpush1.msra.mxu0 0.0
  %678 = vmatprep.subr.mxu0 0.0
  %679 = vmatpush1.msra.mxu0 0.0
  %680 = vmatprep.subr.mxu0 0.0
  %681 = vmatpush1.msra.mxu0 0.0
  %682 = vmatprep.subr.mxu0 0.0
  %683 = vmatpush1.msra.mxu0 %v645
  %684 = vmatprep.subr.mxu0 0.0
  %685 = vmatpush1.msra.mxu0 %v643
  %686 = vmatprep.subr.mxu0 0.0
  %687 = vmatpush2.msra.mxu0 0.0
  %688 = vmatprep.subr.mxu0 0.0
  %689 = vmatpush2.msra.mxu0 0.0
  %690 = vmatprep.subr.mxu0 0.0
  %691 = vmatpush2.msra.mxu0 0.0
  %692 = vmatprep.subr.mxu0 0.0
  %693 = vmatpush2.msra.mxu0 0.0
  %694 = vmatprep.subr.mxu0 0.0
  %695 = vmatpush2.msra.mxu0 0.0
  %696 = vmatprep.subr.mxu0 0.0
  %697 = vmatpush2.msra.mxu0 0.0
  %698 = vmatprep.subr.mxu0 0.0
  %699 = vmatpush2.msra.mxu0 0.0
  %700 = vmatprep.subr.mxu0 0.0
  %701 = vmatpush2.msra.mxu0 0.0
  %702 = vmatprep.subr.mxu0 0.0
  %703 = vmatpush2.msra.mxu0 0.0
  %704 = vmatprep.subr.mxu0 0.0
  %705 = vmatpush2.msra.mxu0 0.0
  %706 = vmatprep.subr.mxu0 0.0
  %707 = vmatpush2.msra.mxu0 0.0
  %708 = vmatprep.subr.mxu0 0.0
  %709 = vmatpush2.msra.mxu0 0.0
  %710 = vmatprep.subr.mxu0 0.0
  %711 = vmatpush2.msra.mxu0 0.0
  %712 = vmatprep.subr.mxu0 0.0
  %713 = vmatpush2.msra.mxu0 0.0
  %714 = vmatprep.subr.mxu0 0.0
  %715 = vmatpush2.msra.mxu0 0.0
  %716 = vmatprep.subr.mxu0 0.0
  %717 = vmatpush2.msra.mxu0 0.0
  %718 = vmatprep.mubr.f32.mxu0 0.0
  %719 = vmatmul.mubr.f32.gmra.mxu0 %v649
  %v720 = vpop.f32.mrf.mxu0
  %v721 = vadd.f32 0.0, %v720
  %v722 = vpop.f32.mrf.mxu0
  %723 = vmatprep.mubr.f32.mxu0 0.0
  %724 = vmatmul.mubr.f32.gmra.mxu0 %v652
  %v725 = vpop.f32.mrf.mxu0
  %v726 = vadd.f32 0.0, %v725
  %v727 = vpop.f32.mrf.mxu0
  %728 = vdwg.mxu0
  %v730 = vsel %vm327, %v721, 0
  %v733 = vsel %vm327, %v726, 0
  %735 = vmatprep.subr.mxu0 0.0
  %736 = vmatpush1.msra.mxu0 0.0
  %737 = vmatprep.subr.mxu0 0.0
  %738 = vmatpush1.msra.mxu0 0.0
  %739 = vmatprep.subr.mxu0 0.0
  %740 = vmatpush1.msra.mxu0 0.0
  %741 = vmatprep.subr.mxu0 0.0
  %742 = vmatpush1.msra.mxu0 0.0
  %743 = vmatprep.subr.mxu0 0.0
  %744 = vmatpush1.msra.mxu0 0.0
  %745 = vmatprep.subr.mxu0 0.0
  %746 = vmatpush1.msra.mxu0 0.0
  %747 = vmatprep.subr.mxu0 0.0
  %748 = vmatpush1.msra.mxu0 0.0
  %749 = vmatprep.subr.mxu0 0.0
  %750 = vmatpush1.msra.mxu0 0.0
  %751 = vmatprep.subr.mxu0 0.0
  %752 = vmatpush1.msra.mxu0 0.0
  %753 = vmatprep.subr.mxu0 0.0
  %754 = vmatpush1.msra.mxu0 0.0
  %755 = vmatprep.subr.mxu0 0.0
  %756 = vmatpush1.msra.mxu0 0.0
  %757 = vmatprep.subr.mxu0 0.0
  %758 = vmatpush1.msra.mxu0 0.0
  %759 = vmatprep.subr.mxu0 0.0
  %760 = vmatpush1.msra.mxu0 0.0
  %761 = vmatprep.subr.mxu0 0.0
  %762 = vmatpush1.msra.mxu0 0.0
  %763 = vmatprep.subr.mxu0 0.0
  %764 = vmatpush1.msra.mxu0 0.0
  %765 = vmatprep.subr.mxu0 0.0
  %766 = vmatpush1.msra.mxu0 %v318
  %767 = vmatprep.subr.mxu0 0.0
  %768 = vmatpush2.msra.mxu0 0.0
  %769 = vmatprep.subr.mxu0 0.0
  %770 = vmatpush2.msra.mxu0 0.0
  %771 = vmatprep.subr.mxu0 0.0
  %772 = vmatpush2.msra.mxu0 0.0
  %773 = vmatprep.subr.mxu0 0.0
  %774 = vmatpush2.msra.mxu0 0.0
  %775 = vmatprep.subr.mxu0 0.0
  %776 = vmatpush2.msra.mxu0 0.0
  %777 = vmatprep.subr.mxu0 0.0
  %778 = vmatpush2.msra.mxu0 0.0
  %779 = vmatprep.subr.mxu0 0.0
  %780 = vmatpush2.msra.mxu0 0.0
  %781 = vmatprep.subr.mxu0 0.0
  %782 = vmatpush2.msra.mxu0 0.0
  %783 = vmatprep.subr.mxu0 0.0
  %784 = vmatpush2.msra.mxu0 0.0
  %785 = vmatprep.subr.mxu0 0.0
  %786 = vmatpush2.msra.mxu0 0.0
  %787 = vmatprep.subr.mxu0 0.0
  %788 = vmatpush2.msra.mxu0 0.0
  %789 = vmatprep.subr.mxu0 0.0
  %790 = vmatpush2.msra.mxu0 0.0
  %791 = vmatprep.subr.mxu0 0.0
  %792 = vmatpush2.msra.mxu0 0.0
  %793 = vmatprep.subr.mxu0 0.0
  %794 = vmatpush2.msra.mxu0 0.0
  %795 = vmatprep.subr.mxu0 0.0
  %796 = vmatpush2.msra.mxu0 0.0
  %797 = vmatprep.subr.mxu0 0.0
  %798 = vmatpush2.msra.mxu0 0.0
  %799 = vmatprep.mubr.f32.mxu0 0.0
  %800 = vmatmul.mubr.f32.gmra.mxu0 %v730
  %v801 = vpop.f32.mrf.mxu0
  %v802 = vadd.f32 0.0, %v801
  %v803 = vpop.f32.mrf.mxu0
  %804 = vmatprep.mubr.f32.mxu0 0.0
  %805 = vmatmul.mubr.f32.gmra.mxu0 %v733
  %v806 = vpop.f32.mrf.mxu0
  %v807 = vadd.f32 0.0, %v806
  %v808 = vpop.f32.mrf.mxu0
  %809 = vdwg.mxu0
  %v811 = vsel %vm327, %v517, 0
  %v814 = vsel %vm327, %v522, 0
  %816 = vmatprep.subr.mxu0 0.0
  %817 = vmatpush1.msra.mxu0 0.0
  %818 = vmatprep.subr.mxu0 0.0
  %819 = vmatpush1.msra.mxu0 0.0
  %820 = vmatprep.subr.mxu0 0.0
  %821 = vmatpush1.msra.mxu0 0.0
  %822 = vmatprep.subr.mxu0 0.0
  %823 = vmatpush1.msra.mxu0 0.0
  %824 = vmatprep.subr.mxu0 0.0
  %825 = vmatpush1.msra.mxu0 0.0
  %826 = vmatprep.subr.mxu0 0.0
  %827 = vmatpush1.msra.mxu0 0.0
  %828 = vmatprep.subr.mxu0 0.0
  %829 = vmatpush1.msra.mxu0 0.0
  %830 = vmatprep.subr.mxu0 0.0
  %831 = vmatpush1.msra.mxu0 0.0
  %832 = vmatprep.subr.mxu0 0.0
  %833 = vmatpush1.msra.mxu0 0.0
  %834 = vmatprep.subr.mxu0 0.0
  %835 = vmatpush1.msra.mxu0 0.0
  %836 = vmatprep.subr.mxu0 0.0
  %837 = vmatpush1.msra.mxu0 0.0
  %838 = vmatprep.subr.mxu0 0.0
  %839 = vmatpush1.msra.mxu0 0.0
  %840 = vmatprep.subr.mxu0 0.0
  %841 = vmatpush1.msra.mxu0 0.0
  %842 = vmatprep.subr.mxu0 0.0
  %843 = vmatpush1.msra.mxu0 0.0
  %844 = vmatprep.subr.mxu0 0.0
  %845 = vmatpush1.msra.mxu0 0.0
  %846 = vmatprep.subr.mxu0 0.0
  %847 = vmatpush1.msra.mxu0 %v317
  %848 = vmatprep.subr.mxu0 0.0
  %849 = vmatpush2.msra.mxu0 0.0
  %850 = vmatprep.subr.mxu0 0.0
  %851 = vmatpush2.msra.mxu0 0.0
  %852 = vmatprep.subr.mxu0 0.0
  %853 = vmatpush2.msra.mxu0 0.0
  %854 = vmatprep.subr.mxu0 0.0
  %855 = vmatpush2.msra.mxu0 0.0
  %856 = vmatprep.subr.mxu0 0.0
  %857 = vmatpush2.msra.mxu0 0.0
  %858 = vmatprep.subr.mxu0 0.0
  %859 = vmatpush2.msra.mxu0 0.0
  %860 = vmatprep.subr.mxu0 0.0
  %861 = vmatpush2.msra.mxu0 0.0
  %862 = vmatprep.subr.mxu0 0.0
  %863 = vmatpush2.msra.mxu0 0.0
  %864 = vmatprep.subr.mxu0 0.0
  %865 = vmatpush2.msra.mxu0 0.0
  %866 = vmatprep.subr.mxu0 0.0
  %867 = vmatpush2.msra.mxu0 0.0
  %868 = vmatprep.subr.mxu0 0.0
  %869 = vmatpush2.msra.mxu0 0.0
  %870 = vmatprep.subr.mxu0 0.0
  %871 = vmatpush2.msra.mxu0 0.0
  %872 = vmatprep.subr.mxu0 0.0
  %873 = vmatpush2.msra.mxu0 0.0
  %874 = vmatprep.subr.mxu0 0.0
  %875 = vmatpush2.msra.mxu0 0.0
  %876 = vmatprep.subr.mxu0 0.0
  %877 = vmatpush2.msra.mxu0 0.0
  %878 = vmatprep.subr.mxu0 0.0
  %879 = vmatpush2.msra.mxu0 0.0
  %880 = vmatprep.mubr.f32.mxu0 0.0
  %881 = vmatmul.mubr.f32.gmra.mxu0 %v811
  %v882 = vpop.f32.mrf.mxu0
  %v883 = vadd.f32 %v802, %v882
  %v884 = vpop.f32.mrf.mxu0
  %885 = vmatprep.mubr.f32.mxu0 0.0
  %886 = vmatmul.mubr.f32.gmra.mxu0 %v814
  %v887 = vpop.f32.mrf.mxu0
  %v888 = vadd.f32 %v807, %v887
  %v889 = vpop.f32.mrf.mxu0
  %890 = vdwg.mxu0
  %891 = vrot.lane.b32.xlu0 %v309, 112
  %v892 = vpop.permute.xlu0 %891
  %893 = vrot.lane.b32.xlu0 %v314, 112
  %v894 = vpop.permute.xlu0 %893
  %895 = vrot.lane.b32.xlu0 %v309, 80
  %v896 = vpop.permute.xlu0 %895
  %897 = vrot.lane.b32.xlu0 %v314, 80
  %v898 = vpop.permute.xlu0 %897
  %v899 = vsel %vm327, %v892, 0
  %v901 = vsel %vm327, %v894, 0
  %v903 = vsel %vm327, %v896, 0
  %v905 = vsel %vm327, %v898, 0
  %907 = vmatprep.subr.mxu0 0.0
  %908 = vmatpush1.xpose.msra.mxu0 0.0
  %909 = vmatprep.subr.mxu0 0.0
  %910 = vmatpush1.xpose.msra.mxu0 0.0
  %911 = vmatprep.subr.mxu0 0.0
  %912 = vmatpush1.xpose.msra.mxu0 0.0
  %913 = vmatprep.subr.mxu0 0.0
  %914 = vmatpush1.xpose.msra.mxu0 0.0
  %915 = vmatprep.subr.mxu0 0.0
  %916 = vmatpush1.xpose.msra.mxu0 0.0
  %917 = vmatprep.subr.mxu0 0.0
  %918 = vmatpush1.xpose.msra.mxu0 0.0
  %919 = vmatprep.subr.mxu0 0.0
  %920 = vmatpush1.xpose.msra.mxu0 0.0
  %921 = vmatprep.subr.mxu0 0.0
  %922 = vmatpush1.xpose.msra.mxu0 0.0
  %923 = vmatprep.subr.mxu0 0.0
  %924 = vmatpush1.xpose.msra.mxu0 0.0
  %925 = vmatprep.subr.mxu0 0.0
  %926 = vmatpush1.xpose.msra.mxu0 0.0
  %927 = vmatprep.subr.mxu0 0.0
  %928 = vmatpush1.xpose.msra.mxu0 0.0
  %929 = vmatprep.subr.mxu0 0.0
  %930 = vmatpush1.xpose.msra.mxu0 0.0
  %931 = vmatprep.subr.mxu0 0.0
  %932 = vmatpush1.xpose.msra.mxu0 0.0
  %933 = vmatprep.subr.mxu0 0.0
  %934 = vmatpush1.xpose.msra.mxu0 0.0
  %935 = vmatprep.subr.mxu0 0.0
  %936 = vmatpush1.xpose.msra.mxu0 %v905
  %937 = vmatprep.subr.mxu0 0.0
  %938 = vmatpush1.xpose.msra.mxu0 %v903
  %939 = vmatprep.subr.mxu0 0.0
  %940 = vmatpush2.xpose.msra.mxu0 0.0
  %941 = vmatprep.subr.mxu0 0.0
  %942 = vmatpush2.xpose.msra.mxu0 0.0
  %943 = vmatprep.subr.mxu0 0.0
  %944 = vmatpush2.xpose.msra.mxu0 0.0
  %945 = vmatprep.subr.mxu0 0.0
  %946 = vmatpush2.xpose.msra.mxu0 0.0
  %947 = vmatprep.subr.mxu0 0.0
  %948 = vmatpush2.xpose.msra.mxu0 0.0
  %949 = vmatprep.subr.mxu0 0.0
  %950 = vmatpush2.xpose.msra.mxu0 0.0
  %951 = vmatprep.subr.mxu0 0.0
  %952 = vmatpush2.xpose.msra.mxu0 0.0
  %953 = vmatprep.subr.mxu0 0.0
  %954 = vmatpush2.xpose.msra.mxu0 0.0
  %955 = vmatprep.subr.mxu0 0.0
  %956 = vmatpush2.xpose.msra.mxu0 0.0
  %957 = vmatprep.subr.mxu0 0.0
  %958 = vmatpush2.xpose.msra.mxu0 0.0
  %959 = vmatprep.subr.mxu0 0.0
  %960 = vmatpush2.xpose.msra.mxu0 0.0
  %961 = vmatprep.subr.mxu0 0.0
  %962 = vmatpush2.xpose.msra.mxu0 0.0
  %963 = vmatprep.subr.mxu0 0.0
  %964 = vmatpush2.xpose.msra.mxu0 0.0
  %965 = vmatprep.subr.mxu0 0.0
  %966 = vmatpush2.xpose.msra.mxu0 0.0
  %967 = vmatprep.subr.mxu0 0.0
  %968 = vmatpush2.xpose.msra.mxu0 0.0
  %969 = vmatprep.subr.mxu0 0.0
  %970 = vmatpush2.xpose.msra.mxu0 0.0
  %971 = vmatprep.mubr.f32.mxu0 0.0
  %972 = vmatmul.mubr.f32.gmra.mxu0 %v899
  %v973 = vpop.f32.mrf.mxu0
  %v974 = vadd.f32 0.0, %v973
  %v975 = vpop.f32.mrf.mxu0
  %976 = vmatprep.mubr.f32.mxu0 0.0
  %977 = vmatmul.mubr.f32.gmra.mxu0 %v901
  %v978 = vpop.f32.mrf.mxu0
  %v979 = vadd.f32 0.0, %v978
  %v980 = vpop.f32.mrf.mxu0
  %981 = vdwg.mxu0
  %v982 = vmul.f32 %v974, 0.35355338
  %v983 = vmul.f32 %v979, 0.35355338
  %v984 = vadd.f32 %v982, %v177
  %v985 = vadd.f32 %v983, %v178
  %v986 = vsel %vm415, %v984, -inf
  %987 = vmax.xlane.f32.xlu0 %v986
  %v988 = vpop.xlane.xlu0 %987
  %v989 = vsel %vm415, %v985, -inf
  %990 = vmax.xlane.f32.xlu0 %v989
  %v991 = vpop.xlane.xlu0 %990
  %v992 = vsub.f32 %v984, %v988
  %v993 = vsub.f32 %v985, %v991
  %v994 = vmul.f32 %v992, 1.442695
  %v995 = vpow.pop %v994
  %v996 = vmul.f32 %v993, 1.442695
  %v997 = vpow.pop %v996
  %v998 = vsel %vm415, %v995, 0.0
  %999 = vadd.xlane.f32.xlu0 %v998
  %v1000 = vpop.xlane.xlu0 %999
  %v1001 = vsel %vm415, %v997, 0.0
  %1002 = vadd.xlane.f32.xlu0 %v1001
  %v1003 = vpop.xlane.xlu0 %1002
  %v1004 = vrcp.pop %v1000
  %v1005 = vmul.f32 %v995, %v1004
  %v1006 = vrcp.pop %v1003
  %v1007 = vmul.f32 %v997, %v1006
  %1008 = vrot.lane.b32.xlu0 %v309, 48
  %v1009 = vpop.permute.xlu0 %1008
  %1010 = vrot.lane.b32.xlu0 %v314, 48
  %v1011 = vpop.permute.xlu0 %1010
  %v1015 = vsel %vm415, %v1005, 0
  %v1018 = vsel %vm415, %v1007, 0
  %1020 = vmatprep.subr.mxu0 0.0
  %1021 = vmatpush1.msra.mxu0 0.0
  %1022 = vmatprep.subr.mxu0 0.0
  %1023 = vmatpush1.msra.mxu0 0.0
  %1024 = vmatprep.subr.mxu0 0.0
  %1025 = vmatpush1.msra.mxu0 0.0
  %1026 = vmatprep.subr.mxu0 0.0
  %1027 = vmatpush1.msra.mxu0 0.0
  %1028 = vmatprep.subr.mxu0 0.0
  %1029 = vmatpush1.msra.mxu0 0.0
  %1030 = vmatprep.subr.mxu0 0.0
  %1031 = vmatpush1.msra.mxu0 0.0
  %1032 = vmatprep.subr.mxu0 0.0
  %1033 = vmatpush1.msra.mxu0 0.0
  %1034 = vmatprep.subr.mxu0 0.0
  %1035 = vmatpush1.msra.mxu0 0.0
  %1036 = vmatprep.subr.mxu0 0.0
  %1037 = vmatpush1.msra.mxu0 0.0
  %1038 = vmatprep.subr.mxu0 0.0
  %1039 = vmatpush1.msra.mxu0 0.0
  %1040 = vmatprep.subr.mxu0 0.0
  %1041 = vmatpush1.msra.mxu0 0.0
  %1042 = vmatprep.subr.mxu0 0.0
  %1043 = vmatpush1.msra.mxu0 0.0
  %1044 = vmatprep.subr.mxu0 0.0
  %1045 = vmatpush1.msra.mxu0 0.0
  %1046 = vmatprep.subr.mxu0 0.0
  %1047 = vmatpush1.msra.mxu0 0.0
  %1048 = vmatprep.subr.mxu0 0.0
  %1049 = vmatpush1.msra.mxu0 %v1011
  %1050 = vmatprep.subr.mxu0 0.0
  %1051 = vmatpush1.msra.mxu0 %v1009
  %1052 = vmatprep.subr.mxu0 0.0
  %1053 = vmatpush2.msra.mxu0 0.0
  %1054 = vmatprep.subr.mxu0 0.0
  %1055 = vmatpush2.msra.mxu0 0.0
  %1056 = vmatprep.subr.mxu0 0.0
  %1057 = vmatpush2.msra.mxu0 0.0
  %1058 = vmatprep.subr.mxu0 0.0
  %1059 = vmatpush2.msra.mxu0 0.0
  %1060 = vmatprep.subr.mxu0 0.0
  %1061 = vmatpush2.msra.mxu0 0.0
  %1062 = vmatprep.subr.mxu0 0.0
  %1063 = vmatpush2.msra.mxu0 0.0
  %1064 = vmatprep.subr.mxu0 0.0
  %1065 = vmatpush2.msra.mxu0 0.0
  %1066 = vmatprep.subr.mxu0 0.0
  %1067 = vmatpush2.msra.mxu0 0.0
  %1068 = vmatprep.subr.mxu0 0.0
  %1069 = vmatpush2.msra.mxu0 0.0
  %1070 = vmatprep.subr.mxu0 0.0
  %1071 = vmatpush2.msra.mxu0 0.0
  %1072 = vmatprep.subr.mxu0 0.0
  %1073 = vmatpush2.msra.mxu0 0.0
  %1074 = vmatprep.subr.mxu0 0.0
  %1075 = vmatpush2.msra.mxu0 0.0
  %1076 = vmatprep.subr.mxu0 0.0
  %1077 = vmatpush2.msra.mxu0 0.0
  %1078 = vmatprep.subr.mxu0 0.0
  %1079 = vmatpush2.msra.mxu0 0.0
  %1080 = vmatprep.subr.mxu0 0.0
  %1081 = vmatpush2.msra.mxu0 0.0
  %1082 = vmatprep.subr.mxu0 0.0
  %1083 = vmatpush2.msra.mxu0 0.0
  %1084 = vmatprep.mubr.f32.mxu0 0.0
  %1085 = vmatmul.mubr.f32.gmra.mxu0 %v1015
  %v1086 = vpop.f32.mrf.mxu0
  %v1087 = vadd.f32 0.0, %v1086
  %v1088 = vpop.f32.mrf.mxu0
  %1089 = vmatprep.mubr.f32.mxu0 0.0
  %1090 = vmatmul.mubr.f32.gmra.mxu0 %v1018
  %v1091 = vpop.f32.mrf.mxu0
  %v1092 = vadd.f32 0.0, %v1091
  %v1093 = vpop.f32.mrf.mxu0
  %1094 = vdwg.mxu0
  %v1096 = vsel %vm327, %v1087, 0
  %v1099 = vsel %vm327, %v1092, 0
  %1101 = vmatprep.subr.mxu0 0.0
  %1102 = vmatpush1.msra.mxu0 0.0
  %1103 = vmatprep.subr.mxu0 0.0
  %1104 = vmatpush1.msra.mxu0 0.0
  %1105 = vmatprep.subr.mxu0 0.0
  %1106 = vmatpush1.msra.mxu0 0.0
  %1107 = vmatprep.subr.mxu0 0.0
  %1108 = vmatpush1.msra.mxu0 0.0
  %1109 = vmatprep.subr.mxu0 0.0
  %1110 = vmatpush1.msra.mxu0 0.0
  %1111 = vmatprep.subr.mxu0 0.0
  %1112 = vmatpush1.msra.mxu0 0.0
  %1113 = vmatprep.subr.mxu0 0.0
  %1114 = vmatpush1.msra.mxu0 0.0
  %1115 = vmatprep.subr.mxu0 0.0
  %1116 = vmatpush1.msra.mxu0 0.0
  %1117 = vmatprep.subr.mxu0 0.0
  %1118 = vmatpush1.msra.mxu0 0.0
  %1119 = vmatprep.subr.mxu0 0.0
  %1120 = vmatpush1.msra.mxu0 0.0
  %1121 = vmatprep.subr.mxu0 0.0
  %1122 = vmatpush1.msra.mxu0 0.0
  %1123 = vmatprep.subr.mxu0 0.0
  %1124 = vmatpush1.msra.mxu0 0.0
  %1125 = vmatprep.subr.mxu0 0.0
  %1126 = vmatpush1.msra.mxu0 0.0
  %1127 = vmatprep.subr.mxu0 0.0
  %1128 = vmatpush1.msra.mxu0 0.0
  %1129 = vmatprep.subr.mxu0 0.0
  %1130 = vmatpush1.msra.mxu0 0.0
  %1131 = vmatprep.subr.mxu0 0.0
  %1132 = vmatpush1.msra.mxu0 %v319
  %1133 = vmatprep.subr.mxu0 0.0
  %1134 = vmatpush2.msra.mxu0 0.0
  %1135 = vmatprep.subr.mxu0 0.0
  %1136 = vmatpush2.msra.mxu0 0.0
  %1137 = vmatprep.subr.mxu0 0.0
  %1138 = vmatpush2.msra.mxu0 0.0
  %1139 = vmatprep.subr.mxu0 0.0
  %1140 = vmatpush2.msra.mxu0 0.0
  %1141 = vmatprep.subr.mxu0 0.0
  %1142 = vmatpush2.msra.mxu0 0.0
  %1143 = vmatprep.subr.mxu0 0.0
  %1144 = vmatpush2.msra.mxu0 0.0
  %1145 = vmatprep.subr.mxu0 0.0
  %1146 = vmatpush2.msra.mxu0 0.0
  %1147 = vmatprep.subr.mxu0 0.0
  %1148 = vmatpush2.msra.mxu0 0.0
  %1149 = vmatprep.subr.mxu0 0.0
  %1150 = vmatpush2.msra.mxu0 0.0
  %1151 = vmatprep.subr.mxu0 0.0
  %1152 = vmatpush2.msra.mxu0 0.0
  %1153 = vmatprep.subr.mxu0 0.0
  %1154 = vmatpush2.msra.mxu0 0.0
  %1155 = vmatprep.subr.mxu0 0.0
  %1156 = vmatpush2.msra.mxu0 0.0
  %1157 = vmatprep.subr.mxu0 0.0
  %1158 = vmatpush2.msra.mxu0 0.0
  %1159 = vmatprep.subr.mxu0 0.0
  %1160 = vmatpush2.msra.mxu0 0.0
  %1161 = vmatprep.subr.mxu0 0.0
  %1162 = vmatpush2.msra.mxu0 0.0
  %1163 = vmatprep.subr.mxu0 0.0
  %1164 = vmatpush2.msra.mxu0 0.0
  %1165 = vmatprep.mubr.f32.mxu0 0.0
  %1166 = vmatmul.mubr.f32.gmra.mxu0 %v1096
  %v1167 = vpop.f32.mrf.mxu0
  %v1168 = vadd.f32 0.0, %v1167
  %v1169 = vpop.f32.mrf.mxu0
  %1170 = vmatprep.mubr.f32.mxu0 0.0
  %1171 = vmatmul.mubr.f32.gmra.mxu0 %v1099
  %v1172 = vpop.f32.mrf.mxu0
  %v1173 = vadd.f32 0.0, %v1172
  %v1174 = vpop.f32.mrf.mxu0
  %1175 = vdwg.mxu0
  %v1176 = vadd.f32 %v883, %v1168
  %v1177 = vadd.f32 %v888, %v1173
  %1178 = vrot.lane.b32.xlu0 %v309, 104
  %v1179 = vpop.permute.xlu0 %1178
  %1180 = vrot.lane.b32.xlu0 %v314, 104
  %v1181 = vpop.permute.xlu0 %1180
  %1182 = vrot.lane.b32.xlu0 %v309, 72
  %v1183 = vpop.permute.xlu0 %1182
  %1184 = vrot.lane.b32.xlu0 %v314, 72
  %v1185 = vpop.permute.xlu0 %1184
  %v1186 = vsel %vm327, %v1179, 0
  %v1188 = vsel %vm327, %v1181, 0
  %v1190 = vsel %vm327, %v1183, 0
  %v1192 = vsel %vm327, %v1185, 0
  %1194 = vmatprep.subr.mxu0 0.0
  %1195 = vmatpush1.xpose.msra.mxu0 0.0
  %1196 = vmatprep.subr.mxu0 0.0
  %1197 = vmatpush1.xpose.msra.mxu0 0.0
  %1198 = vmatprep.subr.mxu0 0.0
  %1199 = vmatpush1.xpose.msra.mxu0 0.0
  %1200 = vmatprep.subr.mxu0 0.0
  %1201 = vmatpush1.xpose.msra.mxu0 0.0
  %1202 = vmatprep.subr.mxu0 0.0
  %1203 = vmatpush1.xpose.msra.mxu0 0.0
  %1204 = vmatprep.subr.mxu0 0.0
  %1205 = vmatpush1.xpose.msra.mxu0 0.0
  %1206 = vmatprep.subr.mxu0 0.0
  %1207 = vmatpush1.xpose.msra.mxu0 0.0
  %1208 = vmatprep.subr.mxu0 0.0
  %1209 = vmatpush1.xpose.msra.mxu0 0.0
  %1210 = vmatprep.subr.mxu0 0.0
  %1211 = vmatpush1.xpose.msra.mxu0 0.0
  %1212 = vmatprep.subr.mxu0 0.0
  %1213 = vmatpush1.xpose.msra.mxu0 0.0
  %1214 = vmatprep.subr.mxu0 0.0
  %1215 = vmatpush1.xpose.msra.mxu0 0.0
  %1216 = vmatprep.subr.mxu0 0.0
  %1217 = vmatpush1.xpose.msra.mxu0 0.0
  %1218 = vmatprep.subr.mxu0 0.0
  %1219 = vmatpush1.xpose.msra.mxu0 0.0
  %1220 = vmatprep.subr.mxu0 0.0
  %1221 = vmatpush1.xpose.msra.mxu0 0.0
  %1222 = vmatprep.subr.mxu0 0.0
  %1223 = vmatpush1.xpose.msra.mxu0 %v1192
  %1224 = vmatprep.subr.mxu0 0.0
  %1225 = vmatpush1.xpose.msra.mxu0 %v1190
  %1226 = vmatprep.subr.mxu0 0.0
  %1227 = vmatpush2.xpose.msra.mxu0 0.0
  %1228 = vmatprep.subr.mxu0 0.0
  %1229 = vmatpush2.xpose.msra.mxu0 0.0
  %1230 = vmatprep.subr.mxu0 0.0
  %1231 = vmatpush2.xpose.msra.mxu0 0.0
  %1232 = vmatprep.subr.mxu0 0.0
  %1233 = vmatpush2.xpose.msra.mxu0 0.0
  %1234 = vmatprep.subr.mxu0 0.0
  %1235 = vmatpush2.xpose.msra.mxu0 0.0
  %1236 = vmatprep.subr.mxu0 0.0
  %1237 = vmatpush2.xpose.msra.mxu0 0.0
  %1238 = vmatprep.subr.mxu0 0.0
  %1239 = vmatpush2.xpose.msra.mxu0 0.0
  %1240 = vmatprep.subr.mxu0 0.0
  %1241 = vmatpush2.xpose.msra.mxu0 0.0
  %1242 = vmatprep.subr.mxu0 0.0
  %1243 = vmatpush2.xpose.msra.mxu0 0.0
  %1244 = vmatprep.subr.mxu0 0.0
  %1245 = vmatpush2.xpose.msra.mxu0 0.0
  %1246 = vmatprep.subr.mxu0 0.0
  %1247 = vmatpush2.xpose.msra.mxu0 0.0
  %1248 = vmatprep.subr.mxu0 0.0
  %1249 = vmatpush2.xpose.msra.mxu0 0.0
  %1250 = vmatprep.subr.mxu0 0.0
  %1251 = vmatpush2.xpose.msra.mxu0 0.0
  %1252 = vmatprep.subr.mxu0 0.0
  %1253 = vmatpush2.xpose.msra.mxu0 0.0
  %1254 = vmatprep.subr.mxu0 0.0
  %1255 = vmatpush2.xpose.msra.mxu0 0.0
  %1256 = vmatprep.subr.mxu0 0.0
  %1257 = vmatpush2.xpose.msra.mxu0 0.0
  %1258 = vmatprep.mubr.f32.mxu0 0.0
  %1259 = vmatmul.mubr.f32.gmra.mxu0 %v1186
  %v1260 = vpop.f32.mrf.mxu0
  %v1261 = vadd.f32 0.0, %v1260
  %v1262 = vpop.f32.mrf.mxu0
  %1263 = vmatprep.mubr.f32.mxu0 0.0
  %1264 = vmatmul.mubr.f32.gmra.mxu0 %v1188
  %v1265 = vpop.f32.mrf.mxu0
  %v1266 = vadd.f32 0.0, %v1265
  %v1267 = vpop.f32.mrf.mxu0
  %1268 = vdwg.mxu0
  %v1269 = vmul.f32 %v1261, 0.35355338
  %v1270 = vmul.f32 %v1266, 0.35355338
  %v1271 = vadd.f32 %v1269, %v177
  %v1272 = vadd.f32 %v1270, %v178
  %v1273 = vsel %vm415, %v1271, -inf
  %1274 = vmax.xlane.f32.xlu0 %v1273
  %v1275 = vpop.xlane.xlu0 %1274
  %v1276 = vsel %vm415, %v1272, -inf
  %1277 = vmax.xlane.f32.xlu0 %v1276
  %v1278 = vpop.xlane.xlu0 %1277
  %v1279 = vsub.f32 %v1271, %v1275
  %v1280 = vsub.f32 %v1272, %v1278
  %v1281 = vmul.f32 %v1279, 1.442695
  %v1282 = vpow.pop %v1281
  %v1283 = vmul.f32 %v1280, 1.442695
  %v1284 = vpow.pop %v1283
  %v1285 = vsel %vm415, %v1282, 0.0
  %1286 = vadd.xlane.f32.xlu0 %v1285
  %v1287 = vpop.xlane.xlu0 %1286
  %v1288 = vsel %vm415, %v1284, 0.0
  %1289 = vadd.xlane.f32.xlu0 %v1288
  %v1290 = vpop.xlane.xlu0 %1289
  %v1291 = vrcp.pop %v1287
  %v1292 = vmul.f32 %v1282, %v1291
  %v1293 = vrcp.pop %v1290
  %v1294 = vmul.f32 %v1284, %v1293
  %1295 = vrot.lane.b32.xlu0 %v309, 40
  %v1296 = vpop.permute.xlu0 %1295
  %1297 = vrot.lane.b32.xlu0 %v314, 40
  %v1298 = vpop.permute.xlu0 %1297
  %v1302 = vsel %vm415, %v1292, 0
  %v1305 = vsel %vm415, %v1294, 0
  %1307 = vmatprep.subr.mxu0 0.0
  %1308 = vmatpush1.msra.mxu0 0.0
  %1309 = vmatprep.subr.mxu0 0.0
  %1310 = vmatpush1.msra.mxu0 0.0
  %1311 = vmatprep.subr.mxu0 0.0
  %1312 = vmatpush1.msra.mxu0 0.0
  %1313 = vmatprep.subr.mxu0 0.0
  %1314 = vmatpush1.msra.mxu0 0.0
  %1315 = vmatprep.subr.mxu0 0.0
  %1316 = vmatpush1.msra.mxu0 0.0
  %1317 = vmatprep.subr.mxu0 0.0
  %1318 = vmatpush1.msra.mxu0 0.0
  %1319 = vmatprep.subr.mxu0 0.0
  %1320 = vmatpush1.msra.mxu0 0.0
  %1321 = vmatprep.subr.mxu0 0.0
  %1322 = vmatpush1.msra.mxu0 0.0
  %1323 = vmatprep.subr.mxu0 0.0
  %1324 = vmatpush1.msra.mxu0 0.0
  %1325 = vmatprep.subr.mxu0 0.0
  %1326 = vmatpush1.msra.mxu0 0.0
  %1327 = vmatprep.subr.mxu0 0.0
  %1328 = vmatpush1.msra.mxu0 0.0
  %1329 = vmatprep.subr.mxu0 0.0
  %1330 = vmatpush1.msra.mxu0 0.0
  %1331 = vmatprep.subr.mxu0 0.0
  %1332 = vmatpush1.msra.mxu0 0.0
  %1333 = vmatprep.subr.mxu0 0.0
  %1334 = vmatpush1.msra.mxu0 0.0
  %1335 = vmatprep.subr.mxu0 0.0
  %1336 = vmatpush1.msra.mxu0 %v1298
  %1337 = vmatprep.subr.mxu0 0.0
  %1338 = vmatpush1.msra.mxu0 %v1296
  %1339 = vmatprep.subr.mxu0 0.0
  %1340 = vmatpush2.msra.mxu0 0.0
  %1341 = vmatprep.subr.mxu0 0.0
  %1342 = vmatpush2.msra.mxu0 0.0
  %1343 = vmatprep.subr.mxu0 0.0
  %1344 = vmatpush2.msra.mxu0 0.0
  %1345 = vmatprep.subr.mxu0 0.0
  %1346 = vmatpush2.msra.mxu0 0.0
  %1347 = vmatprep.subr.mxu0 0.0
  %1348 = vmatpush2.msra.mxu0 0.0
  %1349 = vmatprep.subr.mxu0 0.0
  %1350 = vmatpush2.msra.mxu0 0.0
  %1351 = vmatprep.subr.mxu0 0.0
  %1352 = vmatpush2.msra.mxu0 0.0
  %1353 = vmatprep.subr.mxu0 0.0
  %1354 = vmatpush2.msra.mxu0 0.0
  %1355 = vmatprep.subr.mxu0 0.0
  %1356 = vmatpush2.msra.mxu0 0.0
  %1357 = vmatprep.subr.mxu0 0.0
  %1358 = vmatpush2.msra.mxu0 0.0
  %1359 = vmatprep.subr.mxu0 0.0
  %1360 = vmatpush2.msra.mxu0 0.0
  %1361 = vmatprep.subr.mxu0 0.0
  %1362 = vmatpush2.msra.mxu0 0.0
  %1363 = vmatprep.subr.mxu0 0.0
  %1364 = vmatpush2.msra.mxu0 0.0
  %1365 = vmatprep.subr.mxu0 0.0
  %1366 = vmatpush2.msra.mxu0 0.0
  %1367 = vmatprep.subr.mxu0 0.0
  %1368 = vmatpush2.msra.mxu0 0.0
  %1369 = vmatprep.subr.mxu0 0.0
  %1370 = vmatpush2.msra.mxu0 0.0
  %1371 = vmatprep.mubr.f32.mxu0 0.0
  %1372 = vmatmul.mubr.f32.gmra.mxu0 %v1302
  %v1373 = vpop.f32.mrf.mxu0
  %v1374 = vadd.f32 0.0, %v1373
  %v1375 = vpop.f32.mrf.mxu0
  %1376 = vmatprep.mubr.f32.mxu0 0.0
  %1377 = vmatmul.mubr.f32.gmra.mxu0 %v1305
  %v1378 = vpop.f32.mrf.mxu0
  %v1379 = vadd.f32 0.0, %v1378
  %v1380 = vpop.f32.mrf.mxu0
  %1381 = vdwg.mxu0
  %v1383 = vsel %vm327, %v1374, 0
  %v1386 = vsel %vm327, %v1379, 0
  %1388 = vmatprep.subr.mxu0 0.0
  %1389 = vmatpush1.msra.mxu0 0.0
  %1390 = vmatprep.subr.mxu0 0.0
  %1391 = vmatpush1.msra.mxu0 0.0
  %1392 = vmatprep.subr.mxu0 0.0
  %1393 = vmatpush1.msra.mxu0 0.0
  %1394 = vmatprep.subr.mxu0 0.0
  %1395 = vmatpush1.msra.mxu0 0.0
  %1396 = vmatprep.subr.mxu0 0.0
  %1397 = vmatpush1.msra.mxu0 0.0
  %1398 = vmatprep.subr.mxu0 0.0
  %1399 = vmatpush1.msra.mxu0 0.0
  %1400 = vmatprep.subr.mxu0 0.0
  %1401 = vmatpush1.msra.mxu0 0.0
  %1402 = vmatprep.subr.mxu0 0.0
  %1403 = vmatpush1.msra.mxu0 0.0
  %1404 = vmatprep.subr.mxu0 0.0
  %1405 = vmatpush1.msra.mxu0 0.0
  %1406 = vmatprep.subr.mxu0 0.0
  %1407 = vmatpush1.msra.mxu0 0.0
  %1408 = vmatprep.subr.mxu0 0.0
  %1409 = vmatpush1.msra.mxu0 0.0
  %1410 = vmatprep.subr.mxu0 0.0
  %1411 = vmatpush1.msra.mxu0 0.0
  %1412 = vmatprep.subr.mxu0 0.0
  %1413 = vmatpush1.msra.mxu0 0.0
  %1414 = vmatprep.subr.mxu0 0.0
  %1415 = vmatpush1.msra.mxu0 0.0
  %1416 = vmatprep.subr.mxu0 0.0
  %1417 = vmatpush1.msra.mxu0 0.0
  %1418 = vmatprep.subr.mxu0 0.0
  %1419 = vmatpush1.msra.mxu0 %v320
  %1420 = vmatprep.subr.mxu0 0.0
  %1421 = vmatpush2.msra.mxu0 0.0
  %1422 = vmatprep.subr.mxu0 0.0
  %1423 = vmatpush2.msra.mxu0 0.0
  %1424 = vmatprep.subr.mxu0 0.0
  %1425 = vmatpush2.msra.mxu0 0.0
  %1426 = vmatprep.subr.mxu0 0.0
  %1427 = vmatpush2.msra.mxu0 0.0
  %1428 = vmatprep.subr.mxu0 0.0
  %1429 = vmatpush2.msra.mxu0 0.0
  %1430 = vmatprep.subr.mxu0 0.0
  %1431 = vmatpush2.msra.mxu0 0.0
  %1432 = vmatprep.subr.mxu0 0.0
  %1433 = vmatpush2.msra.mxu0 0.0
  %1434 = vmatprep.subr.mxu0 0.0
  %1435 = vmatpush2.msra.mxu0 0.0
  %1436 = vmatprep.subr.mxu0 0.0
  %1437 = vmatpush2.msra.mxu0 0.0
  %1438 = vmatprep.subr.mxu0 0.0
  %1439 = vmatpush2.msra.mxu0 0.0
  %1440 = vmatprep.subr.mxu0 0.0
  %1441 = vmatpush2.msra.mxu0 0.0
  %1442 = vmatprep.subr.mxu0 0.0
  %1443 = vmatpush2.msra.mxu0 0.0
  %1444 = vmatprep.subr.mxu0 0.0
  %1445 = vmatpush2.msra.mxu0 0.0
  %1446 = vmatprep.subr.mxu0 0.0
  %1447 = vmatpush2.msra.mxu0 0.0
  %1448 = vmatprep.subr.mxu0 0.0
  %1449 = vmatpush2.msra.mxu0 0.0
  %1450 = vmatprep.subr.mxu0 0.0
  %1451 = vmatpush2.msra.mxu0 0.0
  %1452 = vmatprep.mubr.f32.mxu0 0.0
  %1453 = vmatmul.mubr.f32.gmra.mxu0 %v1383
  %v1454 = vpop.f32.mrf.mxu0
  %v1455 = vadd.f32 0.0, %v1454
  %v1456 = vpop.f32.mrf.mxu0
  %1457 = vmatprep.mubr.f32.mxu0 0.0
  %1458 = vmatmul.mubr.f32.gmra.mxu0 %v1386
  %v1459 = vpop.f32.mrf.mxu0
  %v1460 = vadd.f32 0.0, %v1459
  %v1461 = vpop.f32.mrf.mxu0
  %1462 = vdwg.mxu0
  %v1463 = vadd.f32 %v1176, %v1455
  %v1464 = vadd.f32 %v1177, %v1460
  %v1465 = vadd.f32 %v169, %v1463
  %v1466 = vadd.f32 %v174, %v1464
  %v1467 = vld [vmem:[%s9] sm:$0x1]
  %v1469 = vlaneseq
  %v1470 = vshrl.u32 %v1469, 7
  %v1471 = vsub.s32 0, %v1470
  %v1472 = vrot.slane %v1467, %v1471
  %v1474 = vadd.f32 %v1465, %v1472
  %v1475 = vadd.f32 %v1466, %v1472
  %v1476 = vld [vmem:[%s10] sm:$0x1]
  %v1477 = vld [vmem:[%s11] sm:$0x1]
  %v1478 = vsel %vm181, %v1474, 0.0
  %1479 = vadd.xlane.f32.xlu0 %v1478
  %v1480 = vpop.xlane.xlu0 %1479
  %v1481 = vsel %vm181, %v1475, 0.0
  %1482 = vadd.xlane.f32.xlu0 %v1481
  %v1483 = vpop.xlane.xlu0 %1482
  %v1484 = vmul.f32 %v1480, %v188
  %v1485 = vmul.f32 %v1483, %v188
  %v1486 = vsub.f32 %v1474, %v1484
  %v1487 = vsub.f32 %v1475, %v1485
  %v1488 = vmul.f32 %v1486, %v1486
  %v1489 = vmul.f32 %v1487, %v1487
  %v1490 = vsel %vm181, %v1488, 0.0
  %1491 = vadd.xlane.f32.xlu0 %v1490
  %v1492 = vpop.xlane.xlu0 %1491
  %v1493 = vsel %vm181, %v1489, 0.0
  %1494 = vadd.xlane.f32.xlu0 %v1493
  %v1495 = vpop.xlane.xlu0 %1494
  %v1496 = vmul.f32 %v1492, %v188
  %v1497 = vmul.f32 %v1495, %v188
  %v1498 = vadd.f32 %v1496, 1e-12
  %v1499 = vadd.f32 %v1497, 1e-12
  %v1500 = vrsqrt.pop %v1498
  %v1501 = vrsqrt.pop %v1499
  %v1502 = vmul.f32 %v1486, %v1500
  %v1503 = vmul.f32 %v1487, %v1501
  %v1505 = vlaneseq
  %v1506 = vshrl.u32 %v1505, 7
  %v1507 = vsub.s32 0, %v1506
  %v1508 = vrot.slane %v1476, %v1507
  %v1510 = vmul.f32 %v1502, %v1508
  %v1511 = vmul.f32 %v1503, %v1508
  %v1513 = vlaneseq
  %v1514 = vshrl.u32 %v1513, 7
  %v1515 = vsub.s32 0, %v1514
  %v1516 = vrot.slane %v1477, %v1515
  %v1518 = vadd.f32 %v1510, %v1516
  %v1519 = vadd.f32 %v1511, %v1516
  %v1520 = vld [vmem:[%s12] sm:$0xff]
  %v1521 = vld [vmem:[%s12 + $0x8] sm:$0xff]
  %v1522 = vld [vmem:[%s12 + $0x10] sm:$0xff]
  %v1523 = vld [vmem:[%s12 + $0x18] sm:$0xff]
  %v1524 = vld [vmem:[%s13] sm:$0x1]
  %v1526 = vlaneseq
  %v1527 = vshrl.u32 %v1526, 7
  %v1528 = vsub.s32 0, %v1527
  %v1529 = vrot.slane %v1524, %v1528
  %v1532 = vsel %vm181, %v1518, 0
  %v1535 = vsel %vm181, %v1519, 0
  %1537 = vmatprep.subr.mxu0 0.0
  %1538 = vmatpush1.msra.mxu0 0.0
  %1539 = vmatprep.subr.mxu0 0.0
  %1540 = vmatpush1.msra.mxu0 0.0
  %1541 = vmatprep.subr.mxu0 0.0
  %1542 = vmatpush1.msra.mxu0 0.0
  %1543 = vmatprep.subr.mxu0 0.0
  %1544 = vmatpush1.msra.mxu0 0.0
  %1545 = vmatprep.subr.mxu0 0.0
  %1546 = vmatpush1.msra.mxu0 0.0
  %1547 = vmatprep.subr.mxu0 0.0
  %1548 = vmatpush1.msra.mxu0 0.0
  %1549 = vmatprep.subr.mxu0 0.0
  %1550 = vmatpush1.msra.mxu0 0.0
  %1551 = vmatprep.subr.mxu0 0.0
  %1552 = vmatpush1.msra.mxu0 0.0
  %1553 = vmatprep.subr.mxu0 0.0
  %1554 = vmatpush1.msra.mxu0 0.0
  %1555 = vmatprep.subr.mxu0 0.0
  %1556 = vmatpush1.msra.mxu0 0.0
  %1557 = vmatprep.subr.mxu0 0.0
  %1558 = vmatpush1.msra.mxu0 0.0
  %1559 = vmatprep.subr.mxu0 0.0
  %1560 = vmatpush1.msra.mxu0 0.0
  %1561 = vmatprep.subr.mxu0 0.0
  %1562 = vmatpush1.msra.mxu0 %v1523
  %1563 = vmatprep.subr.mxu0 0.0
  %1564 = vmatpush1.msra.mxu0 %v1522
  %1565 = vmatprep.subr.mxu0 0.0
  %1566 = vmatpush1.msra.mxu0 %v1521
  %1567 = vmatprep.subr.mxu0 0.0
  %1568 = vmatpush1.msra.mxu0 %v1520
  %1569 = vmatprep.subr.mxu0 0.0
  %1570 = vmatpush2.msra.mxu0 0.0
  %1571 = vmatprep.subr.mxu0 0.0
  %1572 = vmatpush2.msra.mxu0 0.0
  %1573 = vmatprep.subr.mxu0 0.0
  %1574 = vmatpush2.msra.mxu0 0.0
  %1575 = vmatprep.subr.mxu0 0.0
  %1576 = vmatpush2.msra.mxu0 0.0
  %1577 = vmatprep.subr.mxu0 0.0
  %1578 = vmatpush2.msra.mxu0 0.0
  %1579 = vmatprep.subr.mxu0 0.0
  %1580 = vmatpush2.msra.mxu0 0.0
  %1581 = vmatprep.subr.mxu0 0.0
  %1582 = vmatpush2.msra.mxu0 0.0
  %1583 = vmatprep.subr.mxu0 0.0
  %1584 = vmatpush2.msra.mxu0 0.0
  %1585 = vmatprep.subr.mxu0 0.0
  %1586 = vmatpush2.msra.mxu0 0.0
  %1587 = vmatprep.subr.mxu0 0.0
  %1588 = vmatpush2.msra.mxu0 0.0
  %1589 = vmatprep.subr.mxu0 0.0
  %1590 = vmatpush2.msra.mxu0 0.0
  %1591 = vmatprep.subr.mxu0 0.0
  %1592 = vmatpush2.msra.mxu0 0.0
  %1593 = vmatprep.subr.mxu0 0.0
  %1594 = vmatpush2.msra.mxu0 0.0
  %1595 = vmatprep.subr.mxu0 0.0
  %1596 = vmatpush2.msra.mxu0 0.0
  %1597 = vmatprep.subr.mxu0 0.0
  %1598 = vmatpush2.msra.mxu0 0.0
  %1599 = vmatprep.subr.mxu0 0.0
  %1600 = vmatpush2.msra.mxu0 0.0
  %1601 = vmatprep.mubr.f32.mxu0 0.0
  %1602 = vmatmul.mubr.f32.gmra.mxu0 %v1532
  %v1603 = vpop.f32.mrf.mxu0
  %v1604 = vadd.f32 %v1529, %v1603
  %v1605 = vpop.f32.mrf.mxu0
  %1606 = vmatprep.mubr.f32.mxu0 0.0
  %1607 = vmatmul.mubr.f32.gmra.mxu0 %v1535
  %v1608 = vpop.f32.mrf.mxu0
  %v1609 = vadd.f32 %v1529, %v1608
  %v1610 = vpop.f32.mrf.mxu0
  %1611 = vdwg.mxu0
  %v1612 = vmul.f32 %v1604, 0.5
  %v1613 = vmul.f32 %v1609, 0.5
  %v1614 = vmul.f32 %v1604, 0.70710677
  %v1615 = vmul.f32 %v1609, 0.70710677
  %v1616 = verf.f32.pop %v1614
  %v1617 = verf.f32.pop %v1615
  %v1618 = vadd.f32 %v1616, 1.0
  %v1619 = vadd.f32 %v1617, 1.0
  %v1620 = vmul.f32 %v1612, %v1618
  %v1621 = vmul.f32 %v1613, %v1619
  %v1622 = vld [vmem:[%s14] sm:$0xff]
  %v1623 = vld [vmem:[%s14 + $0x8] sm:$0xff]
  %v1624 = vld [vmem:[%s14 + $0x10] sm:$0xff]
  %v1625 = vld [vmem:[%s14 + $0x18] sm:$0xff]
  %v1626 = vld [vmem:[%s14 + $0x20] sm:$0xff]
  %v1627 = vld [vmem:[%s14 + $0x28] sm:$0xff]
  %v1628 = vld [vmem:[%s14 + $0x30] sm:$0xff]
  %v1629 = vld [vmem:[%s14 + $0x38] sm:$0xff]
  %v1630 = vld [vmem:[%s14 + $0x40] sm:$0xff]
  %v1631 = vld [vmem:[%s14 + $0x48] sm:$0xff]
  %v1632 = vld [vmem:[%s14 + $0x50] sm:$0xff]
  %v1633 = vld [vmem:[%s14 + $0x58] sm:$0xff]
  %v1634 = vld [vmem:[%s14 + $0x60] sm:$0xff]
  %v1635 = vld [vmem:[%s14 + $0x68] sm:$0xff]
  %v1636 = vld [vmem:[%s14 + $0x70] sm:$0xff]
  %v1637 = vld [vmem:[%s14 + $0x78] sm:$0xff]
  %1638 = vmatprep.subr.mxu0 0.0
  %1639 = vmatpush1.msra.mxu0 %v1637
  %1640 = vmatprep.subr.mxu0 0.0
  %1641 = vmatpush1.msra.mxu0 %v1636
  %1642 = vmatprep.subr.mxu0 0.0
  %1643 = vmatpush1.msra.mxu0 %v1635
  %1644 = vmatprep.subr.mxu0 0.0
  %1645 = vmatpush1.msra.mxu0 %v1634
  %1646 = vmatprep.subr.mxu0 0.0
  %1647 = vmatpush1.msra.mxu0 %v1633
  %1648 = vmatprep.subr.mxu0 0.0
  %1649 = vmatpush1.msra.mxu0 %v1632
  %1650 = vmatprep.subr.mxu0 0.0
  %1651 = vmatpush1.msra.mxu0 %v1631
  %1652 = vmatprep.subr.mxu0 0.0
  %1653 = vmatpush1.msra.mxu0 %v1630
  %1654 = vmatprep.subr.mxu0 0.0
  %1655 = vmatpush1.msra.mxu0 %v1629
  %1656 = vmatprep.subr.mxu0 0.0
  %1657 = vmatpush1.msra.mxu0 %v1628
  %1658 = vmatprep.subr.mxu0 0.0
  %1659 = vmatpush1.msra.mxu0 %v1627
  %1660 = vmatprep.subr.mxu0 0.0
  %1661 = vmatpush1.msra.mxu0 %v1626
  %1662 = vmatprep.subr.mxu0 0.0
  %1663 = vmatpush1.msra.mxu0 %v1625
  %1664 = vmatprep.subr.mxu0 0.0
  %1665 = vmatpush1.msra.mxu0 %v1624
  %1666 = vmatprep.subr.mxu0 0.0
  %1667 = vmatpush1.msra.mxu0 %v1623
  %1668 = vmatprep.subr.mxu0 0.0
  %1669 = vmatpush1.msra.mxu0 %v1622
  %1670 = vmatprep.subr.mxu0 0.0
  %1671 = vmatpush2.msra.mxu0 0.0
  %1672 = vmatprep.subr.mxu0 0.0
  %1673 = vmatpush2.msra.mxu0 0.0
  %1674 = vmatprep.subr.mxu0 0.0
  %1675 = vmatpush2.msra.mxu0 0.0
  %1676 = vmatprep.subr.mxu0 0.0
  %1677 = vmatpush2.msra.mxu0 0.0
  %1678 = vmatprep.subr.mxu0 0.0
  %1679 = vmatpush2.msra.mxu0 0.0
  %1680 = vmatprep.subr.mxu0 0.0
  %1681 = vmatpush2.msra.mxu0 0.0
  %1682 = vmatprep.subr.mxu0 0.0
  %1683 = vmatpush2.msra.mxu0 0.0
  %1684 = vmatprep.subr.mxu0 0.0
  %1685 = vmatpush2.msra.mxu0 0.0
  %1686 = vmatprep.subr.mxu0 0.0
  %1687 = vmatpush2.msra.mxu0 0.0
  %1688 = vmatprep.subr.mxu0 0.0
  %1689 = vmatpush2.msra.mxu0 0.0
  %1690 = vmatprep.subr.mxu0 0.0
  %1691 = vmatpush2.msra.mxu0 0.0
  %1692 = vmatprep.subr.mxu0 0.0
  %1693 = vmatpush2.msra.mxu0 0.0
  %1694 = vmatprep.subr.mxu0 0.0
  %1695 = vmatpush2.msra.mxu0 0.0
  %1696 = vmatprep.subr.mxu0 0.0
  %1697 = vmatpush2.msra.mxu0 0.0
  %1698 = vmatprep.subr.mxu0 0.0
  %1699 = vmatpush2.msra.mxu0 0.0
  %1700 = vmatprep.subr.mxu0 0.0
  %1701 = vmatpush2.msra.mxu0 0.0
  %1702 = vmatprep.mubr.f32.mxu0 0.0
  %1703 = vmatmul.mubr.f32.gmra.mxu0 %v1620
  %v1704 = vpop.f32.mrf.mxu0
  %v1705 = vadd.f32 0.0, %v1704
  %v1706 = vpop.f32.mrf.mxu0
  %1707 = vmatprep.mubr.f32.mxu0 0.0
  %1708 = vmatmul.mubr.f32.gmra.mxu0 %v1621
  %v1709 = vpop.f32.mrf.mxu0
  %v1710 = vadd.f32 0.0, %v1709
  %v1711 = vpop.f32.mrf.mxu0
  %1712 = vdwg.mxu0
  %v1713 = vadd.f32 %v1474, %v1705
  %v1714 = vadd.f32 %v1475, %v1710
  %v1715 = vld [vmem:[%s15] sm:$0x1]
  %v1717 = vlaneseq
  %v1718 = vshrl.u32 %v1717, 7
  %v1719 = vsub.s32 0, %v1718
  %v1720 = vrot.slane %v1715, %v1719
  %v1722 = vadd.f32 %v1713, %v1720
  %v1723 = vadd.f32 %v1714, %v1720
  %s1724 = scalar_lea.vmem %s4, 1
  %v1725 = vld [vmem:[%s1724] sm:$0x1]
  %s1726 = scalar_lea.vmem %s5, 1
  %v1727 = vld [vmem:[%s1726] sm:$0x1]
  %v1728 = vsel %vm181, %v1722, 0.0
  %1729 = vadd.xlane.f32.xlu0 %v1728
  %v1730 = vpop.xlane.xlu0 %1729
  %v1731 = vsel %vm181, %v1723, 0.0
  %1732 = vadd.xlane.f32.xlu0 %v1731
  %v1733 = vpop.xlane.xlu0 %1732
  %v1734 = vmul.f32 %v1730, %v188
  %v1735 = vmul.f32 %v1733, %v188
  %v1736 = vsub.f32 %v1722, %v1734
  %v1737 = vsub.f32 %v1723, %v1735
  %v1738 = vmul.f32 %v1736, %v1736
  %v1739 = vmul.f32 %v1737, %v1737
  %v1740 = vsel %vm181, %v1738, 0.0
  %1741 = vadd.xlane.f32.xlu0 %v1740
  %v1742 = vpop.xlane.xlu0 %1741
  %v1743 = vsel %vm181, %v1739, 0.0
  %1744 = vadd.xlane.f32.xlu0 %v1743
  %v1745 = vpop.xlane.xlu0 %1744
  %v1746 = vmul.f32 %v1742, %v188
  %v1747 = vmul.f32 %v1745, %v188
  %v1748 = vadd.f32 %v1746, 1e-12
  %v1749 = vadd.f32 %v1747, 1e-12
  %v1750 = vrsqrt.pop %v1748
  %v1751 = vrsqrt.pop %v1749
  %v1752 = vmul.f32 %v1736, %v1750
  %v1753 = vmul.f32 %v1737, %v1751
  %v1755 = vlaneseq
  %v1756 = vshrl.u32 %v1755, 7
  %v1757 = vsub.s32 0, %v1756
  %v1758 = vrot.slane %v1725, %v1757
  %v1760 = vmul.f32 %v1752, %v1758
  %v1761 = vmul.f32 %v1753, %v1758
  %v1763 = vlaneseq
  %v1764 = vshrl.u32 %v1763, 7
  %v1765 = vsub.s32 0, %v1764
  %v1766 = vrot.slane %v1727, %v1765
  %v1768 = vadd.f32 %v1760, %v1766
  %v1769 = vadd.f32 %v1761, %v1766
  %s1770 = scalar_lea.vmem %s6, 32
  %v1771 = vld [vmem:[%s1770] sm:$0xff]
  %v1772 = vld [vmem:[%s1770 + $0x8] sm:$0xff]
  %v1773 = vld [vmem:[%s1770 + $0x10] sm:$0xff]
  %v1774 = vld [vmem:[%s1770 + $0x18] sm:$0xff]
  %s1775 = scalar_lea.vmem %s7, 1
  %v1776 = vld [vmem:[%s1775] sm:$0x1]
  %v1778 = vlaneseq
  %v1779 = vshrl.u32 %v1778, 7
  %v1780 = vsub.s32 0, %v1779
  %v1781 = vrot.slane %v1776, %v1780
  %v1784 = vsel %vm181, %v1768, 0
  %v1787 = vsel %vm181, %v1769, 0
  %1789 = vmatprep.subr.mxu0 0.0
  %1790 = vmatpush1.msra.mxu0 0.0
  %1791 = vmatprep.subr.mxu0 0.0
  %1792 = vmatpush1.msra.mxu0 0.0
  %1793 = vmatprep.subr.mxu0 0.0
  %1794 = vmatpush1.msra.mxu0 0.0
  %1795 = vmatprep.subr.mxu0 0.0
  %1796 = vmatpush1.msra.mxu0 0.0
  %1797 = vmatprep.subr.mxu0 0.0
  %1798 = vmatpush1.msra.mxu0 0.0
  %1799 = vmatprep.subr.mxu0 0.0
  %1800 = vmatpush1.msra.mxu0 0.0
  %1801 = vmatprep.subr.mxu0 0.0
  %1802 = vmatpush1.msra.mxu0 0.0
  %1803 = vmatprep.subr.mxu0 0.0
  %1804 = vmatpush1.msra.mxu0 0.0
  %1805 = vmatprep.subr.mxu0 0.0
  %1806 = vmatpush1.msra.mxu0 0.0
  %1807 = vmatprep.subr.mxu0 0.0
  %1808 = vmatpush1.msra.mxu0 0.0
  %1809 = vmatprep.subr.mxu0 0.0
  %1810 = vmatpush1.msra.mxu0 0.0
  %1811 = vmatprep.subr.mxu0 0.0
  %1812 = vmatpush1.msra.mxu0 0.0
  %1813 = vmatprep.subr.mxu0 0.0
  %1814 = vmatpush1.msra.mxu0 %v1774
  %1815 = vmatprep.subr.mxu0 0.0
  %1816 = vmatpush1.msra.mxu0 %v1773
  %1817 = vmatprep.subr.mxu0 0.0
  %1818 = vmatpush1.msra.mxu0 %v1772
  %1819 = vmatprep.subr.mxu0 0.0
  %1820 = vmatpush1.msra.mxu0 %v1771
  %1821 = vmatprep.subr.mxu0 0.0
  %1822 = vmatpush2.msra.mxu0 0.0
  %1823 = vmatprep.subr.mxu0 0.0
  %1824 = vmatpush2.msra.mxu0 0.0
  %1825 = vmatprep.subr.mxu0 0.0
  %1826 = vmatpush2.msra.mxu0 0.0
  %1827 = vmatprep.subr.mxu0 0.0
  %1828 = vmatpush2.msra.mxu0 0.0
  %1829 = vmatprep.subr.mxu0 0.0
  %1830 = vmatpush2.msra.mxu0 0.0
  %1831 = vmatprep.subr.mxu0 0.0
  %1832 = vmatpush2.msra.mxu0 0.0
  %1833 = vmatprep.subr.mxu0 0.0
  %1834 = vmatpush2.msra.mxu0 0.0
  %1835 = vmatprep.subr.mxu0 0.0
  %1836 = vmatpush2.msra.mxu0 0.0
  %1837 = vmatprep.subr.mxu0 0.0
  %1838 = vmatpush2.msra.mxu0 0.0
  %1839 = vmatprep.subr.mxu0 0.0
  %1840 = vmatpush2.msra.mxu0 0.0
  %1841 = vmatprep.subr.mxu0 0.0
  %1842 = vmatpush2.msra.mxu0 0.0
  %1843 = vmatprep.subr.mxu0 0.0
  %1844 = vmatpush2.msra.mxu0 0.0
  %1845 = vmatprep.subr.mxu0 0.0
  %1846 = vmatpush2.msra.mxu0 0.0
  %1847 = vmatprep.subr.mxu0 0.0
  %1848 = vmatpush2.msra.mxu0 0.0
  %1849 = vmatprep.subr.mxu0 0.0
  %1850 = vmatpush2.msra.mxu0 0.0
  %1851 = vmatprep.subr.mxu0 0.0
  %1852 = vmatpush2.msra.mxu0 0.0
  %1853 = vmatprep.mubr.f32.mxu0 0.0
  %1854 = vmatmul.mubr.f32.gmra.mxu0 %v1784
  %v1855 = vpop.f32.mrf.mxu0
  %v1856 = vadd.f32 %v1781, %v1855
  %v1857 = vpop.f32.mrf.mxu0
  %1858 = vmatprep.mubr.f32.mxu0 0.0
  %1859 = vmatmul.mubr.f32.gmra.mxu0 %v1787
  %v1860 = vpop.f32.mrf.mxu0
  %v1861 = vadd.f32 %v1781, %v1860
  %v1862 = vpop.f32.mrf.mxu0
  %1863 = vdwg.mxu0
  %s1864 = scalar_lea.vmem %s8, 32
  %v1865 = vld [vmem:[%s1864] sm:$0xff]
  %v1866 = vld [vmem:[%s1864 + $0x8] sm:$0xff]
  %v1867 = vld [vmem:[%s1864 + $0x10] sm:$0xff]
  %v1868 = vld [vmem:[%s1864 + $0x18] sm:$0xff]
  %1871 = vrot.lane.b32.xlu0 %v1856, 96
  %v1872 = vpop.permute.xlu0 %1871
  %1873 = vrot.lane.b32.xlu0 %v1861, 96
  %v1874 = vpop.permute.xlu0 %1873
  %v1875 = vsel %vm327, %v1856, 0
  %v1877 = vsel %vm327, %v1861, 0
  %v1879 = vsel %vm327, %v1872, 0
  %v1881 = vsel %vm327, %v1874, 0
  %1883 = vmatprep.subr.mxu0 0.0
  %1884 = vmatpush1.xpose.msra.mxu0 0.0
  %1885 = vmatprep.subr.mxu0 0.0
  %1886 = vmatpush1.xpose.msra.mxu0 0.0
  %1887 = vmatprep.subr.mxu0 0.0
  %1888 = vmatpush1.xpose.msra.mxu0 0.0
  %1889 = vmatprep.subr.mxu0 0.0
  %1890 = vmatpush1.xpose.msra.mxu0 0.0
  %1891 = vmatprep.subr.mxu0 0.0
  %1892 = vmatpush1.xpose.msra.mxu0 0.0
  %1893 = vmatprep.subr.mxu0 0.0
  %1894 = vmatpush1.xpose.msra.mxu0 0.0
  %1895 = vmatprep.subr.mxu0 0.0
  %1896 = vmatpush1.xpose.msra.mxu0 0.0
  %1897 = vmatprep.subr.mxu0 0.0
  %1898 = vmatpush1.xpose.msra.mxu0 0.0
  %1899 = vmatprep.subr.mxu0 0.0
  %1900 = vmatpush1.xpose.msra.mxu0 0.0
  %1901 = vmatprep.subr.mxu0 0.0
  %1902 = vmatpush1.xpose.msra.mxu0 0.0
  %1903 = vmatprep.subr.mxu0 0.0
  %1904 = vmatpush1.xpose.msra.mxu0 0.0
  %1905 = vmatprep.subr.mxu0 0.0
  %1906 = vmatpush1.xpose.msra.mxu0 0.0
  %1907 = vmatprep.subr.mxu0 0.0
  %1908 = vmatpush1.xpose.msra.mxu0 0.0
  %1909 = vmatprep.subr.mxu0 0.0
  %1910 = vmatpush1.xpose.msra.mxu0 0.0
  %1911 = vmatprep.subr.mxu0 0.0
  %1912 = vmatpush1.xpose.msra.mxu0 %v1881
  %1913 = vmatprep.subr.mxu0 0.0
  %1914 = vmatpush1.xpose.msra.mxu0 %v1879
  %1915 = vmatprep.subr.mxu0 0.0
  %1916 = vmatpush2.xpose.msra.mxu0 0.0
  %1917 = vmatprep.subr.mxu0 0.0
  %1918 = vmatpush2.xpose.msra.mxu0 0.0
  %1919 = vmatprep.subr.mxu0 0.0
  %1920 = vmatpush2.xpose.msra.mxu0 0.0
  %1921 = vmatprep.subr.mxu0 0.0
  %1922 = vmatpush2.xpose.msra.mxu0 0.0
  %1923 = vmatprep.subr.mxu0 0.0
  %1924 = vmatpush2.xpose.msra.mxu0 0.0
  %1925 = vmatprep.subr.mxu0 0.0
  %1926 = vmatpush2.xpose.msra.mxu0 0.0
  %1927 = vmatprep.subr.mxu0 0.0
  %1928 = vmatpush2.xpose.msra.mxu0 0.0
  %1929 = vmatprep.subr.mxu0 0.0
  %1930 = vmatpush2.xpose.msra.mxu0 0.0
  %1931 = vmatprep.subr.mxu0 0.0
  %1932 = vmatpush2.xpose.msra.mxu0 0.0
  %1933 = vmatprep.subr.mxu0 0.0
  %1934 = vmatpush2.xpose.msra.mxu0 0.0
  %1935 = vmatprep.subr.mxu0 0.0
  %1936 = vmatpush2.xpose.msra.mxu0 0.0
  %1937 = vmatprep.subr.mxu0 0.0
  %1938 = vmatpush2.xpose.msra.mxu0 0.0
  %1939 = vmatprep.subr.mxu0 0.0
  %1940 = vmatpush2.xpose.msra.mxu0 0.0
  %1941 = vmatprep.subr.mxu0 0.0
  %1942 = vmatpush2.xpose.msra.mxu0 0.0
  %1943 = vmatprep.subr.mxu0 0.0
  %1944 = vmatpush2.xpose.msra.mxu0 0.0
  %1945 = vmatprep.subr.mxu0 0.0
  %1946 = vmatpush2.xpose.msra.mxu0 0.0
  %1947 = vmatprep.mubr.f32.mxu0 0.0
  %1948 = vmatmul.mubr.f32.gmra.mxu0 %v1875
  %v1949 = vpop.f32.mrf.mxu0
  %v1950 = vadd.f32 0.0, %v1949
  %v1951 = vpop.f32.mrf.mxu0
  %1952 = vmatprep.mubr.f32.mxu0 0.0
  %1953 = vmatmul.mubr.f32.gmra.mxu0 %v1877
  %v1954 = vpop.f32.mrf.mxu0
  %v1955 = vadd.f32 0.0, %v1954
  %v1956 = vpop.f32.mrf.mxu0
  %1957 = vdwg.mxu0
  %v1958 = vmul.f32 %v1950, 0.35355338
  %v1959 = vmul.f32 %v1955, 0.35355338
  %v1960 = vadd.f32 %v1958, %v177
  %v1961 = vadd.f32 %v1959, %v178
  %v1962 = vsel %vm415, %v1960, -inf
  %1963 = vmax.xlane.f32.xlu0 %v1962
  %v1964 = vpop.xlane.xlu0 %1963
  %v1965 = vsel %vm415, %v1961, -inf
  %1966 = vmax.xlane.f32.xlu0 %v1965
  %v1967 = vpop.xlane.xlu0 %1966
  %v1968 = vsub.f32 %v1960, %v1964
  %v1969 = vsub.f32 %v1961, %v1967
  %v1970 = vmul.f32 %v1968, 1.442695
  %v1971 = vpow.pop %v1970
  %v1972 = vmul.f32 %v1969, 1.442695
  %v1973 = vpow.pop %v1972
  %v1974 = vsel %vm415, %v1971, 0.0
  %1975 = vadd.xlane.f32.xlu0 %v1974
  %v1976 = vpop.xlane.xlu0 %1975
  %v1977 = vsel %vm415, %v1973, 0.0
  %1978 = vadd.xlane.f32.xlu0 %v1977
  %v1979 = vpop.xlane.xlu0 %1978
  %v1980 = vrcp.pop %v1976
  %v1981 = vmul.f32 %v1971, %v1980
  %v1982 = vrcp.pop %v1979
  %v1983 = vmul.f32 %v1973, %v1982
  %1984 = vrot.lane.b32.xlu0 %v1856, 64
  %v1985 = vpop.permute.xlu0 %1984
  %1986 = vrot.lane.b32.xlu0 %v1861, 64
  %v1987 = vpop.permute.xlu0 %1986
  %v1991 = vsel %vm415, %v1981, 0
  %v1994 = vsel %vm415, %v1983, 0
  %1996 = vmatprep.subr.mxu0 0.0
  %1997 = vmatpush1.msra.mxu0 0.0
  %1998 = vmatprep.subr.mxu0 0.0
  %1999 = vmatpush1.msra.mxu0 0.0
  %2000 = vmatprep.subr.mxu0 0.0
  %2001 = vmatpush1.msra.mxu0 0.0
  %2002 = vmatprep.subr.mxu0 0.0
  %2003 = vmatpush1.msra.mxu0 0.0
  %2004 = vmatprep.subr.mxu0 0.0
  %2005 = vmatpush1.msra.mxu0 0.0
  %2006 = vmatprep.subr.mxu0 0.0
  %2007 = vmatpush1.msra.mxu0 0.0
  %2008 = vmatprep.subr.mxu0 0.0
  %2009 = vmatpush1.msra.mxu0 0.0
  %2010 = vmatprep.subr.mxu0 0.0
  %2011 = vmatpush1.msra.mxu0 0.0
  %2012 = vmatprep.subr.mxu0 0.0
  %2013 = vmatpush1.msra.mxu0 0.0
  %2014 = vmatprep.subr.mxu0 0.0
  %2015 = vmatpush1.msra.mxu0 0.0
  %2016 = vmatprep.subr.mxu0 0.0
  %2017 = vmatpush1.msra.mxu0 0.0
  %2018 = vmatprep.subr.mxu0 0.0
  %2019 = vmatpush1.msra.mxu0 0.0
  %2020 = vmatprep.subr.mxu0 0.0
  %2021 = vmatpush1.msra.mxu0 0.0
  %2022 = vmatprep.subr.mxu0 0.0
  %2023 = vmatpush1.msra.mxu0 0.0
  %2024 = vmatprep.subr.mxu0 0.0
  %2025 = vmatpush1.msra.mxu0 %v1987
  %2026 = vmatprep.subr.mxu0 0.0
  %2027 = vmatpush1.msra.mxu0 %v1985
  %2028 = vmatprep.subr.mxu0 0.0
  %2029 = vmatpush2.msra.mxu0 0.0
  %2030 = vmatprep.subr.mxu0 0.0
  %2031 = vmatpush2.msra.mxu0 0.0
  %2032 = vmatprep.subr.mxu0 0.0
  %2033 = vmatpush2.msra.mxu0 0.0
  %2034 = vmatprep.subr.mxu0 0.0
  %2035 = vmatpush2.msra.mxu0 0.0
  %2036 = vmatprep.subr.mxu0 0.0
  %2037 = vmatpush2.msra.mxu0 0.0
  %2038 = vmatprep.subr.mxu0 0.0
  %2039 = vmatpush2.msra.mxu0 0.0
  %2040 = vmatprep.subr.mxu0 0.0
  %2041 = vmatpush2.msra.mxu0 0.0
  %2042 = vmatprep.subr.mxu0 0.0
  %2043 = vmatpush2.msra.mxu0 0.0
  %2044 = vmatprep.subr.mxu0 0.0
  %2045 = vmatpush2.msra.mxu0 0.0
  %2046 = vmatprep.subr.mxu0 0.0
  %2047 = vmatpush2.msra.mxu0 0.0
  %2048 = vmatprep.subr.mxu0 0.0
  %2049 = vmatpush2.msra.mxu0 0.0
  %2050 = vmatprep.subr.mxu0 0.0
  %2051 = vmatpush2.msra.mxu0 0.0
  %2052 = vmatprep.subr.mxu0 0.0
  %2053 = vmatpush2.msra.mxu0 0.0
  %2054 = vmatprep.subr.mxu0 0.0
  %2055 = vmatpush2.msra.mxu0 0.0
  %2056 = vmatprep.subr.mxu0 0.0
  %2057 = vmatpush2.msra.mxu0 0.0
  %2058 = vmatprep.subr.mxu0 0.0
  %2059 = vmatpush2.msra.mxu0 0.0
  %2060 = vmatprep.mubr.f32.mxu0 0.0
  %2061 = vmatmul.mubr.f32.gmra.mxu0 %v1991
  %v2062 = vpop.f32.mrf.mxu0
  %v2063 = vadd.f32 0.0, %v2062
  %v2064 = vpop.f32.mrf.mxu0
  %2065 = vmatprep.mubr.f32.mxu0 0.0
  %2066 = vmatmul.mubr.f32.gmra.mxu0 %v1994
  %v2067 = vpop.f32.mrf.mxu0
  %v2068 = vadd.f32 0.0, %v2067
  %v2069 = vpop.f32.mrf.mxu0
  %2070 = vdwg.mxu0
  %2071 = vrot.lane.b32.xlu0 %v1856, 120
  %v2072 = vpop.permute.xlu0 %2071
  %2073 = vrot.lane.b32.xlu0 %v1861, 120
  %v2074 = vpop.permute.xlu0 %2073
  %2075 = vrot.lane.b32.xlu0 %v1856, 88
  %v2076 = vpop.permute.xlu0 %2075
  %2077 = vrot.lane.b32.xlu0 %v1861, 88
  %v2078 = vpop.permute.xlu0 %2077
  %v2079 = vsel %vm327, %v2072, 0
  %v2081 = vsel %vm327, %v2074, 0
  %v2083 = vsel %vm327, %v2076, 0
  %v2085 = vsel %vm327, %v2078, 0
  %2087 = vmatprep.subr.mxu0 0.0
  %2088 = vmatpush1.xpose.msra.mxu0 0.0
  %2089 = vmatprep.subr.mxu0 0.0
  %2090 = vmatpush1.xpose.msra.mxu0 0.0
  %2091 = vmatprep.subr.mxu0 0.0
  %2092 = vmatpush1.xpose.msra.mxu0 0.0
  %2093 = vmatprep.subr.mxu0 0.0
  %2094 = vmatpush1.xpose.msra.mxu0 0.0
  %2095 = vmatprep.subr.mxu0 0.0
  %2096 = vmatpush1.xpose.msra.mxu0 0.0
  %2097 = vmatprep.subr.mxu0 0.0
  %2098 = vmatpush1.xpose.msra.mxu0 0.0
  %2099 = vmatprep.subr.mxu0 0.0
  %2100 = vmatpush1.xpose.msra.mxu0 0.0
  %2101 = vmatprep.subr.mxu0 0.0
  %2102 = vmatpush1.xpose.msra.mxu0 0.0
  %2103 = vmatprep.subr.mxu0 0.0
  %2104 = vmatpush1.xpose.msra.mxu0 0.0
  %2105 = vmatprep.subr.mxu0 0.0
  %2106 = vmatpush1.xpose.msra.mxu0 0.0
  %2107 = vmatprep.subr.mxu0 0.0
  %2108 = vmatpush1.xpose.msra.mxu0 0.0
  %2109 = vmatprep.subr.mxu0 0.0
  %2110 = vmatpush1.xpose.msra.mxu0 0.0
  %2111 = vmatprep.subr.mxu0 0.0
  %2112 = vmatpush1.xpose.msra.mxu0 0.0
  %2113 = vmatprep.subr.mxu0 0.0
  %2114 = vmatpush1.xpose.msra.mxu0 0.0
  %2115 = vmatprep.subr.mxu0 0.0
  %2116 = vmatpush1.xpose.msra.mxu0 %v2085
  %2117 = vmatprep.subr.mxu0 0.0
  %2118 = vmatpush1.xpose.msra.mxu0 %v2083
  %2119 = vmatprep.subr.mxu0 0.0
  %2120 = vmatpush2.xpose.msra.mxu0 0.0
  %2121 = vmatprep.subr.mxu0 0.0
  %2122 = vmatpush2.xpose.msra.mxu0 0.0
  %2123 = vmatprep.subr.mxu0 0.0
  %2124 = vmatpush2.xpose.msra.mxu0 0.0
  %2125 = vmatprep.subr.mxu0 0.0
  %2126 = vmatpush2.xpose.msra.mxu0 0.0
  %2127 = vmatprep.subr.mxu0 0.0
  %2128 = vmatpush2.xpose.msra.mxu0 0.0
  %2129 = vmatprep.subr.mxu0 0.0
  %2130 = vmatpush2.xpose.msra.mxu0 0.0
  %2131 = vmatprep.subr.mxu0 0.0
  %2132 = vmatpush2.xpose.msra.mxu0 0.0
  %2133 = vmatprep.subr.mxu0 0.0
  %2134 = vmatpush2.xpose.msra.mxu0 0.0
  %2135 = vmatprep.subr.mxu0 0.0
  %2136 = vmatpush2.xpose.msra.mxu0 0.0
  %2137 = vmatprep.subr.mxu0 0.0
  %2138 = vmatpush2.xpose.msra.mxu0 0.0
  %2139 = vmatprep.subr.mxu0 0.0
  %2140 = vmatpush2.xpose.msra.mxu0 0.0
  %2141 = vmatprep.subr.mxu0 0.0
  %2142 = vmatpush2.xpose.msra.mxu0 0.0
  %2143 = vmatprep.subr.mxu0 0.0
  %2144 = vmatpush2.xpose.msra.mxu0 0.0
  %2145 = vmatprep.subr.mxu0 0.0
  %2146 = vmatpush2.xpose.msra.mxu0 0.0
  %2147 = vmatprep.subr.mxu0 0.0
  %2148 = vmatpush2.xpose.msra.mxu0 0.0
  %2149 = vmatprep.subr.mxu0 0.0
  %2150 = vmatpush2.xpose.msra.mxu0 0.0
  %2151 = vmatprep.mubr.f32.mxu0 0.0
  %2152 = vmatmul.mubr.f32.gmra.mxu0 %v2079
  %v2153 = vpop.f32.mrf.mxu0
  %v2154 = vadd.f32 0.0, %v2153
  %v2155 = vpop.f32.mrf.mxu0
  %2156 = vmatprep.mubr.f32.mxu0 0.0
  %2157 = vmatmul.mubr.f32.gmra.mxu0 %v2081
  %v2158 = vpop.f32.mrf.mxu0
  %v2159 = vadd.f32 0.0, %v2158
  %v2160 = vpop.f32.mrf.mxu0
  %2161 = vdwg.mxu0
  %v2162 = vmul.f32 %v2154, 0.35355338
  %v2163 = vmul.f32 %v2159, 0.35355338
  %v2164 = vadd.f32 %v2162, %v177
  %v2165 = vadd.f32 %v2163, %v178
  %v2166 = vsel %vm415, %v2164, -inf
  %2167 = vmax.xlane.f32.xlu0 %v2166
  %v2168 = vpop.xlane.xlu0 %2167
  %v2169 = vsel %vm415, %v2165, -inf
  %2170 = vmax.xlane.f32.xlu0 %v2169
  %v2171 = vpop.xlane.xlu0 %2170
  %v2172 = vsub.f32 %v2164, %v2168
  %v2173 = vsub.f32 %v2165, %v2171
  %v2174 = vmul.f32 %v2172, 1.442695
  %v2175 = vpow.pop %v2174
  %v2176 = vmul.f32 %v2173, 1.442695
  %v2177 = vpow.pop %v2176
  %v2178 = vsel %vm415, %v2175, 0.0
  %2179 = vadd.xlane.f32.xlu0 %v2178
  %v2180 = vpop.xlane.xlu0 %2179
  %v2181 = vsel %vm415, %v2177, 0.0
  %2182 = vadd.xlane.f32.xlu0 %v2181
  %v2183 = vpop.xlane.xlu0 %2182
  %v2184 = vrcp.pop %v2180
  %v2185 = vmul.f32 %v2175, %v2184
  %v2186 = vrcp.pop %v2183
  %v2187 = vmul.f32 %v2177, %v2186
  %2188 = vrot.lane.b32.xlu0 %v1856, 56
  %v2189 = vpop.permute.xlu0 %2188
  %2190 = vrot.lane.b32.xlu0 %v1861, 56
  %v2191 = vpop.permute.xlu0 %2190
  %v2195 = vsel %vm415, %v2185, 0
  %v2198 = vsel %vm415, %v2187, 0
  %2200 = vmatprep.subr.mxu0 0.0
  %2201 = vmatpush1.msra.mxu0 0.0
  %2202 = vmatprep.subr.mxu0 0.0
  %2203 = vmatpush1.msra.mxu0 0.0
  %2204 = vmatprep.subr.mxu0 0.0
  %2205 = vmatpush1.msra.mxu0 0.0
  %2206 = vmatprep.subr.mxu0 0.0
  %2207 = vmatpush1.msra.mxu0 0.0
  %2208 = vmatprep.subr.mxu0 0.0
  %2209 = vmatpush1.msra.mxu0 0.0
  %2210 = vmatprep.subr.mxu0 0.0
  %2211 = vmatpush1.msra.mxu0 0.0
  %2212 = vmatprep.subr.mxu0 0.0
  %2213 = vmatpush1.msra.mxu0 0.0
  %2214 = vmatprep.subr.mxu0 0.0
  %2215 = vmatpush1.msra.mxu0 0.0
  %2216 = vmatprep.subr.mxu0 0.0
  %2217 = vmatpush1.msra.mxu0 0.0
  %2218 = vmatprep.subr.mxu0 0.0
  %2219 = vmatpush1.msra.mxu0 0.0
  %2220 = vmatprep.subr.mxu0 0.0
  %2221 = vmatpush1.msra.mxu0 0.0
  %2222 = vmatprep.subr.mxu0 0.0
  %2223 = vmatpush1.msra.mxu0 0.0
  %2224 = vmatprep.subr.mxu0 0.0
  %2225 = vmatpush1.msra.mxu0 0.0
  %2226 = vmatprep.subr.mxu0 0.0
  %2227 = vmatpush1.msra.mxu0 0.0
  %2228 = vmatprep.subr.mxu0 0.0
  %2229 = vmatpush1.msra.mxu0 %v2191
  %2230 = vmatprep.subr.mxu0 0.0
  %2231 = vmatpush1.msra.mxu0 %v2189
  %2232 = vmatprep.subr.mxu0 0.0
  %2233 = vmatpush2.msra.mxu0 0.0
  %2234 = vmatprep.subr.mxu0 0.0
  %2235 = vmatpush2.msra.mxu0 0.0
  %2236 = vmatprep.subr.mxu0 0.0
  %2237 = vmatpush2.msra.mxu0 0.0
  %2238 = vmatprep.subr.mxu0 0.0
  %2239 = vmatpush2.msra.mxu0 0.0
  %2240 = vmatprep.subr.mxu0 0.0
  %2241 = vmatpush2.msra.mxu0 0.0
  %2242 = vmatprep.subr.mxu0 0.0
  %2243 = vmatpush2.msra.mxu0 0.0
  %2244 = vmatprep.subr.mxu0 0.0
  %2245 = vmatpush2.msra.mxu0 0.0
  %2246 = vmatprep.subr.mxu0 0.0
  %2247 = vmatpush2.msra.mxu0 0.0
  %2248 = vmatprep.subr.mxu0 0.0
  %2249 = vmatpush2.msra.mxu0 0.0
  %2250 = vmatprep.subr.mxu0 0.0
  %2251 = vmatpush2.msra.mxu0 0.0
  %2252 = vmatprep.subr.mxu0 0.0
  %2253 = vmatpush2.msra.mxu0 0.0
  %2254 = vmatprep.subr.mxu0 0.0
  %2255 = vmatpush2.msra.mxu0 0.0
  %2256 = vmatprep.subr.mxu0 0.0
  %2257 = vmatpush2.msra.mxu0 0.0
  %2258 = vmatprep.subr.mxu0 0.0
  %2259 = vmatpush2.msra.mxu0 0.0
  %2260 = vmatprep.subr.mxu0 0.0
  %2261 = vmatpush2.msra.mxu0 0.0
  %2262 = vmatprep.subr.mxu0 0.0
  %2263 = vmatpush2.msra.mxu0 0.0
  %2264 = vmatprep.mubr.f32.mxu0 0.0
  %2265 = vmatmul.mubr.f32.gmra.mxu0 %v2195
  %v2266 = vpop.f32.mrf.mxu0
  %v2267 = vadd.f32 0.0, %v2266
  %v2268 = vpop.f32.mrf.mxu0
  %2269 = vmatprep.mubr.f32.mxu0 0.0
  %2270 = vmatmul.mubr.f32.gmra.mxu0 %v2198
  %v2271 = vpop.f32.mrf.mxu0
  %v2272 = vadd.f32 0.0, %v2271
  %v2273 = vpop.f32.mrf.mxu0
  %2274 = vdwg.mxu0
  %v2276 = vsel %vm327, %v2267, 0
  %v2279 = vsel %vm327, %v2272, 0
  %2281 = vmatprep.subr.mxu0 0.0
  %2282 = vmatpush1.msra.mxu0 0.0
  %2283 = vmatprep.subr.mxu0 0.0
  %2284 = vmatpush1.msra.mxu0 0.0
  %2285 = vmatprep.subr.mxu0 0.0
  %2286 = vmatpush1.msra.mxu0 0.0
  %2287 = vmatprep.subr.mxu0 0.0
  %2288 = vmatpush1.msra.mxu0 0.0
  %2289 = vmatprep.subr.mxu0 0.0
  %2290 = vmatpush1.msra.mxu0 0.0
  %2291 = vmatprep.subr.mxu0 0.0
  %2292 = vmatpush1.msra.mxu0 0.0
  %2293 = vmatprep.subr.mxu0 0.0
  %2294 = vmatpush1.msra.mxu0 0.0
  %2295 = vmatprep.subr.mxu0 0.0
  %2296 = vmatpush1.msra.mxu0 0.0
  %2297 = vmatprep.subr.mxu0 0.0
  %2298 = vmatpush1.msra.mxu0 0.0
  %2299 = vmatprep.subr.mxu0 0.0
  %2300 = vmatpush1.msra.mxu0 0.0
  %2301 = vmatprep.subr.mxu0 0.0
  %2302 = vmatpush1.msra.mxu0 0.0
  %2303 = vmatprep.subr.mxu0 0.0
  %2304 = vmatpush1.msra.mxu0 0.0
  %2305 = vmatprep.subr.mxu0 0.0
  %2306 = vmatpush1.msra.mxu0 0.0
  %2307 = vmatprep.subr.mxu0 0.0
  %2308 = vmatpush1.msra.mxu0 0.0
  %2309 = vmatprep.subr.mxu0 0.0
  %2310 = vmatpush1.msra.mxu0 0.0
  %2311 = vmatprep.subr.mxu0 0.0
  %2312 = vmatpush1.msra.mxu0 %v1866
  %2313 = vmatprep.subr.mxu0 0.0
  %2314 = vmatpush2.msra.mxu0 0.0
  %2315 = vmatprep.subr.mxu0 0.0
  %2316 = vmatpush2.msra.mxu0 0.0
  %2317 = vmatprep.subr.mxu0 0.0
  %2318 = vmatpush2.msra.mxu0 0.0
  %2319 = vmatprep.subr.mxu0 0.0
  %2320 = vmatpush2.msra.mxu0 0.0
  %2321 = vmatprep.subr.mxu0 0.0
  %2322 = vmatpush2.msra.mxu0 0.0
  %2323 = vmatprep.subr.mxu0 0.0
  %2324 = vmatpush2.msra.mxu0 0.0
  %2325 = vmatprep.subr.mxu0 0.0
  %2326 = vmatpush2.msra.mxu0 0.0
  %2327 = vmatprep.subr.mxu0 0.0
  %2328 = vmatpush2.msra.mxu0 0.0
  %2329 = vmatprep.subr.mxu0 0.0
  %2330 = vmatpush2.msra.mxu0 0.0
  %2331 = vmatprep.subr.mxu0 0.0
  %2332 = vmatpush2.msra.mxu0 0.0
  %2333 = vmatprep.subr.mxu0 0.0
  %2334 = vmatpush2.msra.mxu0 0.0
  %2335 = vmatprep.subr.mxu0 0.0
  %2336 = vmatpush2.msra.mxu0 0.0
  %2337 = vmatprep.subr.mxu0 0.0
  %2338 = vmatpush2.msra.mxu0 0.0
  %2339 = vmatprep.subr.mxu0 0.0
  %2340 = vmatpush2.msra.mxu0 0.0
  %2341 = vmatprep.subr.mxu0 0.0
  %2342 = vmatpush2.msra.mxu0 0.0
  %2343 = vmatprep.subr.mxu0 0.0
  %2344 = vmatpush2.msra.mxu0 0.0
  %2345 = vmatprep.mubr.f32.mxu0 0.0
  %2346 = vmatmul.mubr.f32.gmra.mxu0 %v2276
  %v2347 = vpop.f32.mrf.mxu0
  %v2348 = vadd.f32 0.0, %v2347
  %v2349 = vpop.f32.mrf.mxu0
  %2350 = vmatprep.mubr.f32.mxu0 0.0
  %2351 = vmatmul.mubr.f32.gmra.mxu0 %v2279
  %v2352 = vpop.f32.mrf.mxu0
  %v2353 = vadd.f32 0.0, %v2352
  %v2354 = vpop.f32.mrf.mxu0
  %2355 = vdwg.mxu0
  %v2357 = vsel %vm327, %v2063, 0
  %v2360 = vsel %vm327, %v2068, 0
  %2362 = vmatprep.subr.mxu0 0.0
  %2363 = vmatpush1.msra.mxu0 0.0
  %2364 = vmatprep.subr.mxu0 0.0
  %2365 = vmatpush1.msra.mxu0 0.0
  %2366 = vmatprep.subr.mxu0 0.0
  %2367 = vmatpush1.msra.mxu0 0.0
  %2368 = vmatprep.subr.mxu0 0.0
  %2369 = vmatpush1.msra.mxu0 0.0
  %2370 = vmatprep.subr.mxu0 0.0
  %2371 = vmatpush1.msra.mxu0 0.0
  %2372 = vmatprep.subr.mxu0 0.0
  %2373 = vmatpush1.msra.mxu0 0.0
  %2374 = vmatprep.subr.mxu0 0.0
  %2375 = vmatpush1.msra.mxu0 0.0
  %2376 = vmatprep.subr.mxu0 0.0
  %2377 = vmatpush1.msra.mxu0 0.0
  %2378 = vmatprep.subr.mxu0 0.0
  %2379 = vmatpush1.msra.mxu0 0.0
  %2380 = vmatprep.subr.mxu0 0.0
  %2381 = vmatpush1.msra.mxu0 0.0
  %2382 = vmatprep.subr.mxu0 0.0
  %2383 = vmatpush1.msra.mxu0 0.0
  %2384 = vmatprep.subr.mxu0 0.0
  %2385 = vmatpush1.msra.mxu0 0.0
  %2386 = vmatprep.subr.mxu0 0.0
  %2387 = vmatpush1.msra.mxu0 0.0
  %2388 = vmatprep.subr.mxu0 0.0
  %2389 = vmatpush1.msra.mxu0 0.0
  %2390 = vmatprep.subr.mxu0 0.0
  %2391 = vmatpush1.msra.mxu0 0.0
  %2392 = vmatprep.subr.mxu0 0.0
  %2393 = vmatpush1.msra.mxu0 %v1865
  %2394 = vmatprep.subr.mxu0 0.0
  %2395 = vmatpush2.msra.mxu0 0.0
  %2396 = vmatprep.subr.mxu0 0.0
  %2397 = vmatpush2.msra.mxu0 0.0
  %2398 = vmatprep.subr.mxu0 0.0
  %2399 = vmatpush2.msra.mxu0 0.0
  %2400 = vmatprep.subr.mxu0 0.0
  %2401 = vmatpush2.msra.mxu0 0.0
  %2402 = vmatprep.subr.mxu0 0.0
  %2403 = vmatpush2.msra.mxu0 0.0
  %2404 = vmatprep.subr.mxu0 0.0
  %2405 = vmatpush2.msra.mxu0 0.0
  %2406 = vmatprep.subr.mxu0 0.0
  %2407 = vmatpush2.msra.mxu0 0.0
  %2408 = vmatprep.subr.mxu0 0.0
  %2409 = vmatpush2.msra.mxu0 0.0
  %2410 = vmatprep.subr.mxu0 0.0
  %2411 = vmatpush2.msra.mxu0 0.0
  %2412 = vmatprep.subr.mxu0 0.0
  %2413 = vmatpush2.msra.mxu0 0.0
  %2414 = vmatprep.subr.mxu0 0.0
  %2415 = vmatpush2.msra.mxu0 0.0
  %2416 = vmatprep.subr.mxu0 0.0
  %2417 = vmatpush2.msra.mxu0 0.0
  %2418 = vmatprep.subr.mxu0 0.0
  %2419 = vmatpush2.msra.mxu0 0.0
  %2420 = vmatprep.subr.mxu0 0.0
  %2421 = vmatpush2.msra.mxu0 0.0
  %2422 = vmatprep.subr.mxu0 0.0
  %2423 = vmatpush2.msra.mxu0 0.0
  %2424 = vmatprep.subr.mxu0 0.0
  %2425 = vmatpush2.msra.mxu0 0.0
  %2426 = vmatprep.mubr.f32.mxu0 0.0
  %2427 = vmatmul.mubr.f32.gmra.mxu0 %v2357
  %v2428 = vpop.f32.mrf.mxu0
  %v2429 = vadd.f32 %v2348, %v2428
  %v2430 = vpop.f32.mrf.mxu0
  %2431 = vmatprep.mubr.f32.mxu0 0.0
  %2432 = vmatmul.mubr.f32.gmra.mxu0 %v2360
  %v2433 = vpop.f32.mrf.mxu0
  %v2434 = vadd.f32 %v2353, %v2433
  %v2435 = vpop.f32.mrf.mxu0
  %2436 = vdwg.mxu0
  %2437 = vrot.lane.b32.xlu0 %v1856, 112
  %v2438 = vpop.permute.xlu0 %2437
  %2439 = vrot.lane.b32.xlu0 %v1861, 112
  %v2440 = vpop.permute.xlu0 %2439
  %2441 = vrot.lane.b32.xlu0 %v1856, 80
  %v2442 = vpop.permute.xlu0 %2441
  %2443 = vrot.lane.b32.xlu0 %v1861, 80
  %v2444 = vpop.permute.xlu0 %2443
  %v2445 = vsel %vm327, %v2438, 0
  %v2447 = vsel %vm327, %v2440, 0
  %v2449 = vsel %vm327, %v2442, 0
  %v2451 = vsel %vm327, %v2444, 0
  %2453 = vmatprep.subr.mxu0 0.0
  %2454 = vmatpush1.xpose.msra.mxu0 0.0
  %2455 = vmatprep.subr.mxu0 0.0
  %2456 = vmatpush1.xpose.msra.mxu0 0.0
  %2457 = vmatprep.subr.mxu0 0.0
  %2458 = vmatpush1.xpose.msra.mxu0 0.0
  %2459 = vmatprep.subr.mxu0 0.0
  %2460 = vmatpush1.xpose.msra.mxu0 0.0
  %2461 = vmatprep.subr.mxu0 0.0
  %2462 = vmatpush1.xpose.msra.mxu0 0.0
  %2463 = vmatprep.subr.mxu0 0.0
  %2464 = vmatpush1.xpose.msra.mxu0 0.0
  %2465 = vmatprep.subr.mxu0 0.0
  %2466 = vmatpush1.xpose.msra.mxu0 0.0
  %2467 = vmatprep.subr.mxu0 0.0
  %2468 = vmatpush1.xpose.msra.mxu0 0.0
  %2469 = vmatprep.subr.mxu0 0.0
  %2470 = vmatpush1.xpose.msra.mxu0 0.0
  %2471 = vmatprep.subr.mxu0 0.0
  %2472 = vmatpush1.xpose.msra.mxu0 0.0
  %2473 = vmatprep.subr.mxu0 0.0
  %2474 = vmatpush1.xpose.msra.mxu0 0.0
  %2475 = vmatprep.subr.mxu0 0.0
  %2476 = vmatpush1.xpose.msra.mxu0 0.0
  %2477 = vmatprep.subr.mxu0 0.0
  %2478 = vmatpush1.xpose.msra.mxu0 0.0
  %2479 = vmatprep.subr.mxu0 0.0
  %2480 = vmatpush1.xpose.msra.mxu0 0.0
  %2481 = vmatprep.subr.mxu0 0.0
  %2482 = vmatpush1.xpose.msra.mxu0 %v2451
  %2483 = vmatprep.subr.mxu0 0.0
  %2484 = vmatpush1.xpose.msra.mxu0 %v2449
  %2485 = vmatprep.subr.mxu0 0.0
  %2486 = vmatpush2.xpose.msra.mxu0 0.0
  %2487 = vmatprep.subr.mxu0 0.0
  %2488 = vmatpush2.xpose.msra.mxu0 0.0
  %2489 = vmatprep.subr.mxu0 0.0
  %2490 = vmatpush2.xpose.msra.mxu0 0.0
  %2491 = vmatprep.subr.mxu0 0.0
  %2492 = vmatpush2.xpose.msra.mxu0 0.0
  %2493 = vmatprep.subr.mxu0 0.0
  %2494 = vmatpush2.xpose.msra.mxu0 0.0
  %2495 = vmatprep.subr.mxu0 0.0
  %2496 = vmatpush2.xpose.msra.mxu0 0.0
  %2497 = vmatprep.subr.mxu0 0.0
  %2498 = vmatpush2.xpose.msra.mxu0 0.0
  %2499 = vmatprep.subr.mxu0 0.0
  %2500 = vmatpush2.xpose.msra.mxu0 0.0
  %2501 = vmatprep.subr.mxu0 0.0
  %2502 = vmatpush2.xpose.msra.mxu0 0.0
  %2503 = vmatprep.subr.mxu0 0.0
  %2504 = vmatpush2.xpose.msra.mxu0 0.0
  %2505 = vmatprep.subr.mxu0 0.0
  %2506 = vmatpush2.xpose.msra.mxu0 0.0
  %2507 = vmatprep.subr.mxu0 0.0
  %2508 = vmatpush2.xpose.msra.mxu0 0.0
  %2509 = vmatprep.subr.mxu0 0.0
  %2510 = vmatpush2.xpose.msra.mxu0 0.0
  %2511 = vmatprep.subr.mxu0 0.0
  %2512 = vmatpush2.xpose.msra.mxu0 0.0
  %2513 = vmatprep.subr.mxu0 0.0
  %2514 = vmatpush2.xpose.msra.mxu0 0.0
  %2515 = vmatprep.subr.mxu0 0.0
  %2516 = vmatpush2.xpose.msra.mxu0 0.0
  %2517 = vmatprep.mubr.f32.mxu0 0.0
  %2518 = vmatmul.mubr.f32.gmra.mxu0 %v2445
  %v2519 = vpop.f32.mrf.mxu0
  %v2520 = vadd.f32 0.0, %v2519
  %v2521 = vpop.f32.mrf.mxu0
  %2522 = vmatprep.mubr.f32.mxu0 0.0
  %2523 = vmatmul.mubr.f32.gmra.mxu0 %v2447
  %v2524 = vpop.f32.mrf.mxu0
  %v2525 = vadd.f32 0.0, %v2524
  %v2526 = vpop.f32.mrf.mxu0
  %2527 = vdwg.mxu0
  %v2528 = vmul.f32 %v2520, 0.35355338
  %v2529 = vmul.f32 %v2525, 0.35355338
  %v2530 = vadd.f32 %v2528, %v177
  %v2531 = vadd.f32 %v2529, %v178
  %v2532 = vsel %vm415, %v2530, -inf
  %2533 = vmax.xlane.f32.xlu0 %v2532
  %v2534 = vpop.xlane.xlu0 %2533
  %v2535 = vsel %vm415, %v2531, -inf
  %2536 = vmax.xlane.f32.xlu0 %v2535
  %v2537 = vpop.xlane.xlu0 %2536
  %v2538 = vsub.f32 %v2530, %v2534
  %v2539 = vsub.f32 %v2531, %v2537
  %v2540 = vmul.f32 %v2538, 1.442695
  %v2541 = vpow.pop %v2540
  %v2542 = vmul.f32 %v2539, 1.442695
  %v2543 = vpow.pop %v2542
  %v2544 = vsel %vm415, %v2541, 0.0
  %2545 = vadd.xlane.f32.xlu0 %v2544
  %v2546 = vpop.xlane.xlu0 %2545
  %v2547 = vsel %vm415, %v2543, 0.0
  %2548 = vadd.xlane.f32.xlu0 %v2547
  %v2549 = vpop.xlane.xlu0 %2548
  %v2550 = vrcp.pop %v2546
  %v2551 = vmul.f32 %v2541, %v2550
  %v2552 = vrcp.pop %v2549
  %v2553 = vmul.f32 %v2543, %v2552
  %2554 = vrot.lane.b32.xlu0 %v1856, 48
  %v2555 = vpop.permute.xlu0 %2554
  %2556 = vrot.lane.b32.xlu0 %v1861, 48
  %v2557 = vpop.permute.xlu0 %2556
  %v2561 = vsel %vm415, %v2551, 0
  %v2564 = vsel %vm415, %v2553, 0
  %2566 = vmatprep.subr.mxu0 0.0
  %2567 = vmatpush1.msra.mxu0 0.0
  %2568 = vmatprep.subr.mxu0 0.0
  %2569 = vmatpush1.msra.mxu0 0.0
  %2570 = vmatprep.subr.mxu0 0.0
  %2571 = vmatpush1.msra.mxu0 0.0
  %2572 = vmatprep.subr.mxu0 0.0
  %2573 = vmatpush1.msra.mxu0 0.0
  %2574 = vmatprep.subr.mxu0 0.0
  %2575 = vmatpush1.msra.mxu0 0.0
  %2576 = vmatprep.subr.mxu0 0.0
  %2577 = vmatpush1.msra.mxu0 0.0
  %2578 = vmatprep.subr.mxu0 0.0
  %2579 = vmatpush1.msra.mxu0 0.0
  %2580 = vmatprep.subr.mxu0 0.0
  %2581 = vmatpush1.msra.mxu0 0.0
  %2582 = vmatprep.subr.mxu0 0.0
  %2583 = vmatpush1.msra.mxu0 0.0
  %2584 = vmatprep.subr.mxu0 0.0
  %2585 = vmatpush1.msra.mxu0 0.0
  %2586 = vmatprep.subr.mxu0 0.0
  %2587 = vmatpush1.msra.mxu0 0.0
  %2588 = vmatprep.subr.mxu0 0.0
  %2589 = vmatpush1.msra.mxu0 0.0
  %2590 = vmatprep.subr.mxu0 0.0
  %2591 = vmatpush1.msra.mxu0 0.0
  %2592 = vmatprep.subr.mxu0 0.0
  %2593 = vmatpush1.msra.mxu0 0.0
  %2594 = vmatprep.subr.mxu0 0.0
  %2595 = vmatpush1.msra.mxu0 %v2557
  %2596 = vmatprep.subr.mxu0 0.0
  %2597 = vmatpush1.msra.mxu0 %v2555
  %2598 = vmatprep.subr.mxu0 0.0
  %2599 = vmatpush2.msra.mxu0 0.0
  %2600 = vmatprep.subr.mxu0 0.0
  %2601 = vmatpush2.msra.mxu0 0.0
  %2602 = vmatprep.subr.mxu0 0.0
  %2603 = vmatpush2.msra.mxu0 0.0
  %2604 = vmatprep.subr.mxu0 0.0
  %2605 = vmatpush2.msra.mxu0 0.0
  %2606 = vmatprep.subr.mxu0 0.0
  %2607 = vmatpush2.msra.mxu0 0.0
  %2608 = vmatprep.subr.mxu0 0.0
  %2609 = vmatpush2.msra.mxu0 0.0
  %2610 = vmatprep.subr.mxu0 0.0
  %2611 = vmatpush2.msra.mxu0 0.0
  %2612 = vmatprep.subr.mxu0 0.0
  %2613 = vmatpush2.msra.mxu0 0.0
  %2614 = vmatprep.subr.mxu0 0.0
  %2615 = vmatpush2.msra.mxu0 0.0
  %2616 = vmatprep.subr.mxu0 0.0
  %2617 = vmatpush2.msra.mxu0 0.0
  %2618 = vmatprep.subr.mxu0 0.0
  %2619 = vmatpush2.msra.mxu0 0.0
  %2620 = vmatprep.subr.mxu0 0.0
  %2621 = vmatpush2.msra.mxu0 0.0
  %2622 = vmatprep.subr.mxu0 0.0
  %2623 = vmatpush2.msra.mxu0 0.0
  %2624 = vmatprep.subr.mxu0 0.0
  %2625 = vmatpush2.msra.mxu0 0.0
  %2626 = vmatprep.subr.mxu0 0.0
  %2627 = vmatpush2.msra.mxu0 0.0
  %2628 = vmatprep.subr.mxu0 0.0
  %2629 = vmatpush2.msra.mxu0 0.0
  %2630 = vmatprep.mubr.f32.mxu0 0.0
  %2631 = vmatmul.mubr.f32.gmra.mxu0 %v2561
  %v2632 = vpop.f32.mrf.mxu0
  %v2633 = vadd.f32 0.0, %v2632
  %v2634 = vpop.f32.mrf.mxu0
  %2635 = vmatprep.mubr.f32.mxu0 0.0
  %2636 = vmatmul.mubr.f32.gmra.mxu0 %v2564
  %v2637 = vpop.f32.mrf.mxu0
  %v2638 = vadd.f32 0.0, %v2637
  %v2639 = vpop.f32.mrf.mxu0
  %2640 = vdwg.mxu0
  %v2642 = vsel %vm327, %v2633, 0
  %v2645 = vsel %vm327, %v2638, 0
  %2647 = vmatprep.subr.mxu0 0.0
  %2648 = vmatpush1.msra.mxu0 0.0
  %2649 = vmatprep.subr.mxu0 0.0
  %2650 = vmatpush1.msra.mxu0 0.0
  %2651 = vmatprep.subr.mxu0 0.0
  %2652 = vmatpush1.msra.mxu0 0.0
  %2653 = vmatprep.subr.mxu0 0.0
  %2654 = vmatpush1.msra.mxu0 0.0
  %2655 = vmatprep.subr.mxu0 0.0
  %2656 = vmatpush1.msra.mxu0 0.0
  %2657 = vmatprep.subr.mxu0 0.0
  %2658 = vmatpush1.msra.mxu0 0.0
  %2659 = vmatprep.subr.mxu0 0.0
  %2660 = vmatpush1.msra.mxu0 0.0
  %2661 = vmatprep.subr.mxu0 0.0
  %2662 = vmatpush1.msra.mxu0 0.0
  %2663 = vmatprep.subr.mxu0 0.0
  %2664 = vmatpush1.msra.mxu0 0.0
  %2665 = vmatprep.subr.mxu0 0.0
  %2666 = vmatpush1.msra.mxu0 0.0
  %2667 = vmatprep.subr.mxu0 0.0
  %2668 = vmatpush1.msra.mxu0 0.0
  %2669 = vmatprep.subr.mxu0 0.0
  %2670 = vmatpush1.msra.mxu0 0.0
  %2671 = vmatprep.subr.mxu0 0.0
  %2672 = vmatpush1.msra.mxu0 0.0
  %2673 = vmatprep.subr.mxu0 0.0
  %2674 = vmatpush1.msra.mxu0 0.0
  %2675 = vmatprep.subr.mxu0 0.0
  %2676 = vmatpush1.msra.mxu0 0.0
  %2677 = vmatprep.subr.mxu0 0.0
  %2678 = vmatpush1.msra.mxu0 %v1867
  %2679 = vmatprep.subr.mxu0 0.0
  %2680 = vmatpush2.msra.mxu0 0.0
  %2681 = vmatprep.subr.mxu0 0.0
  %2682 = vmatpush2.msra.mxu0 0.0
  %2683 = vmatprep.subr.mxu0 0.0
  %2684 = vmatpush2.msra.mxu0 0.0
  %2685 = vmatprep.subr.mxu0 0.0
  %2686 = vmatpush2.msra.mxu0 0.0
  %2687 = vmatprep.subr.mxu0 0.0
  %2688 = vmatpush2.msra.mxu0 0.0
  %2689 = vmatprep.subr.mxu0 0.0
  %2690 = vmatpush2.msra.mxu0 0.0
  %2691 = vmatprep.subr.mxu0 0.0
  %2692 = vmatpush2.msra.mxu0 0.0
  %2693 = vmatprep.subr.mxu0 0.0
  %2694 = vmatpush2.msra.mxu0 0.0
  %2695 = vmatprep.subr.mxu0 0.0
  %2696 = vmatpush2.msra.mxu0 0.0
  %2697 = vmatprep.subr.mxu0 0.0
  %2698 = vmatpush2.msra.mxu0 0.0
  %2699 = vmatprep.subr.mxu0 0.0
  %2700 = vmatpush2.msra.mxu0 0.0
  %2701 = vmatprep.subr.mxu0 0.0
  %2702 = vmatpush2.msra.mxu0 0.0
  %2703 = vmatprep.subr.mxu0 0.0
  %2704 = vmatpush2.msra.mxu0 0.0
  %2705 = vmatprep.subr.mxu0 0.0
  %2706 = vmatpush2.msra.mxu0 0.0
  %2707 = vmatprep.subr.mxu0 0.0
  %2708 = vmatpush2.msra.mxu0 0.0
  %2709 = vmatprep.subr.mxu0 0.0
  %2710 = vmatpush2.msra.mxu0 0.0
  %2711 = vmatprep.mubr.f32.mxu0 0.0
  %2712 = vmatmul.mubr.f32.gmra.mxu0 %v2642
  %v2713 = vpop.f32.mrf.mxu0
  %v2714 = vadd.f32 0.0, %v2713
  %v2715 = vpop.f32.mrf.mxu0
  %2716 = vmatprep.mubr.f32.mxu0 0.0
  %2717 = vmatmul.mubr.f32.gmra.mxu0 %v2645
  %v2718 = vpop.f32.mrf.mxu0
  %v2719 = vadd.f32 0.0, %v2718
  %v2720 = vpop.f32.mrf.mxu0
  %2721 = vdwg.mxu0
  %v2722 = vadd.f32 %v2429, %v2714
  %v2723 = vadd.f32 %v2434, %v2719
  %2724 = vrot.lane.b32.xlu0 %v1856, 104
  %v2725 = vpop.permute.xlu0 %2724
  %2726 = vrot.lane.b32.xlu0 %v1861, 104
  %v2727 = vpop.permute.xlu0 %2726
  %2728 = vrot.lane.b32.xlu0 %v1856, 72
  %v2729 = vpop.permute.xlu0 %2728
  %2730 = vrot.lane.b32.xlu0 %v1861, 72
  %v2731 = vpop.permute.xlu0 %2730
  %v2732 = vsel %vm327, %v2725, 0
  %v2734 = vsel %vm327, %v2727, 0
  %v2736 = vsel %vm327, %v2729, 0
  %v2738 = vsel %vm327, %v2731, 0
  %2740 = vmatprep.subr.mxu0 0.0
  %2741 = vmatpush1.xpose.msra.mxu0 0.0
  %2742 = vmatprep.subr.mxu0 0.0
  %2743 = vmatpush1.xpose.msra.mxu0 0.0
  %2744 = vmatprep.subr.mxu0 0.0
  %2745 = vmatpush1.xpose.msra.mxu0 0.0
  %2746 = vmatprep.subr.mxu0 0.0
  %2747 = vmatpush1.xpose.msra.mxu0 0.0
  %2748 = vmatprep.subr.mxu0 0.0
  %2749 = vmatpush1.xpose.msra.mxu0 0.0
  %2750 = vmatprep.subr.mxu0 0.0
  %2751 = vmatpush1.xpose.msra.mxu0 0.0
  %2752 = vmatprep.subr.mxu0 0.0
  %2753 = vmatpush1.xpose.msra.mxu0 0.0
  %2754 = vmatprep.subr.mxu0 0.0
  %2755 = vmatpush1.xpose.msra.mxu0 0.0
  %2756 = vmatprep.subr.mxu0 0.0
  %2757 = vmatpush1.xpose.msra.mxu0 0.0
  %2758 = vmatprep.subr.mxu0 0.0
  %2759 = vmatpush1.xpose.msra.mxu0 0.0
  %2760 = vmatprep.subr.mxu0 0.0
  %2761 = vmatpush1.xpose.msra.mxu0 0.0
  %2762 = vmatprep.subr.mxu0 0.0
  %2763 = vmatpush1.xpose.msra.mxu0 0.0
  %2764 = vmatprep.subr.mxu0 0.0
  %2765 = vmatpush1.xpose.msra.mxu0 0.0
  %2766 = vmatprep.subr.mxu0 0.0
  %2767 = vmatpush1.xpose.msra.mxu0 0.0
  %2768 = vmatprep.subr.mxu0 0.0
  %2769 = vmatpush1.xpose.msra.mxu0 %v2738
  %2770 = vmatprep.subr.mxu0 0.0
  %2771 = vmatpush1.xpose.msra.mxu0 %v2736
  %2772 = vmatprep.subr.mxu0 0.0
  %2773 = vmatpush2.xpose.msra.mxu0 0.0
  %2774 = vmatprep.subr.mxu0 0.0
  %2775 = vmatpush2.xpose.msra.mxu0 0.0
  %2776 = vmatprep.subr.mxu0 0.0
  %2777 = vmatpush2.xpose.msra.mxu0 0.0
  %2778 = vmatprep.subr.mxu0 0.0
  %2779 = vmatpush2.xpose.msra.mxu0 0.0
  %2780 = vmatprep.subr.mxu0 0.0
  %2781 = vmatpush2.xpose.msra.mxu0 0.0
  %2782 = vmatprep.subr.mxu0 0.0
  %2783 = vmatpush2.xpose.msra.mxu0 0.0
  %2784 = vmatprep.subr.mxu0 0.0
  %2785 = vmatpush2.xpose.msra.mxu0 0.0
  %2786 = vmatprep.subr.mxu0 0.0
  %2787 = vmatpush2.xpose.msra.mxu0 0.0
  %2788 = vmatprep.subr.mxu0 0.0
  %2789 = vmatpush2.xpose.msra.mxu0 0.0
  %2790 = vmatprep.subr.mxu0 0.0
  %2791 = vmatpush2.xpose.msra.mxu0 0.0
  %2792 = vmatprep.subr.mxu0 0.0
  %2793 = vmatpush2.xpose.msra.mxu0 0.0
  %2794 = vmatprep.subr.mxu0 0.0
  %2795 = vmatpush2.xpose.msra.mxu0 0.0
  %2796 = vmatprep.subr.mxu0 0.0
  %2797 = vmatpush2.xpose.msra.mxu0 0.0
  %2798 = vmatprep.subr.mxu0 0.0
  %2799 = vmatpush2.xpose.msra.mxu0 0.0
  %2800 = vmatprep.subr.mxu0 0.0
  %2801 = vmatpush2.xpose.msra.mxu0 0.0
  %2802 = vmatprep.subr.mxu0 0.0
  %2803 = vmatpush2.xpose.msra.mxu0 0.0
  %2804 = vmatprep.mubr.f32.mxu0 0.0
  %2805 = vmatmul.mubr.f32.gmra.mxu0 %v2732
  %v2806 = vpop.f32.mrf.mxu0
  %v2807 = vadd.f32 0.0, %v2806
  %v2808 = vpop.f32.mrf.mxu0
  %2809 = vmatprep.mubr.f32.mxu0 0.0
  %2810 = vmatmul.mubr.f32.gmra.mxu0 %v2734
  %v2811 = vpop.f32.mrf.mxu0
  %v2812 = vadd.f32 0.0, %v2811
  %v2813 = vpop.f32.mrf.mxu0
  %2814 = vdwg.mxu0
  %v2815 = vmul.f32 %v2807, 0.35355338
  %v2816 = vmul.f32 %v2812, 0.35355338
  %v2817 = vadd.f32 %v2815, %v177
  %v2818 = vadd.f32 %v2816, %v178
  %v2819 = vsel %vm415, %v2817, -inf
  %2820 = vmax.xlane.f32.xlu0 %v2819
  %v2821 = vpop.xlane.xlu0 %2820
  %v2822 = vsel %vm415, %v2818, -inf
  %2823 = vmax.xlane.f32.xlu0 %v2822
  %v2824 = vpop.xlane.xlu0 %2823
  %v2825 = vsub.f32 %v2817, %v2821
  %v2826 = vsub.f32 %v2818, %v2824
  %v2827 = vmul.f32 %v2825, 1.442695
  %v2828 = vpow.pop %v2827
  %v2829 = vmul.f32 %v2826, 1.442695
  %v2830 = vpow.pop %v2829
  %v2831 = vsel %vm415, %v2828, 0.0
  %2832 = vadd.xlane.f32.xlu0 %v2831
  %v2833 = vpop.xlane.xlu0 %2832
  %v2834 = vsel %vm415, %v2830, 0.0
  %2835 = vadd.xlane.f32.xlu0 %v2834
  %v2836 = vpop.xlane.xlu0 %2835
  %v2837 = vrcp.pop %v2833
  %v2838 = vmul.f32 %v2828, %v2837
  %v2839 = vrcp.pop %v2836
  %v2840 = vmul.f32 %v2830, %v2839
  %2841 = vrot.lane.b32.xlu0 %v1856, 40
  %v2842 = vpop.permute.xlu0 %2841
  %2843 = vrot.lane.b32.xlu0 %v1861, 40
  %v2844 = vpop.permute.xlu0 %2843
  %v2848 = vsel %vm415, %v2838, 0
  %v2851 = vsel %vm415, %v2840, 0
  %2853 = vmatprep.subr.mxu0 0.0
  %2854 = vmatpush1.msra.mxu0 0.0
  %2855 = vmatprep.subr.mxu0 0.0
  %2856 = vmatpush1.msra.mxu0 0.0
  %2857 = vmatprep.subr.mxu0 0.0
  %2858 = vmatpush1.msra.mxu0 0.0
  %2859 = vmatprep.subr.mxu0 0.0
  %2860 = vmatpush1.msra.mxu0 0.0
  %2861 = vmatprep.subr.mxu0 0.0
  %2862 = vmatpush1.msra.mxu0 0.0
  %2863 = vmatprep.subr.mxu0 0.0
  %2864 = vmatpush1.msra.mxu0 0.0
  %2865 = vmatprep.subr.mxu0 0.0
  %2866 = vmatpush1.msra.mxu0 0.0
  %2867 = vmatprep.subr.mxu0 0.0
  %2868 = vmatpush1.msra.mxu0 0.0
  %2869 = vmatprep.subr.mxu0 0.0
  %2870 = vmatpush1.msra.mxu0 0.0
  %2871 = vmatprep.subr.mxu0 0.0
  %2872 = vmatpush1.msra.mxu0 0.0
  %2873 = vmatprep.subr.mxu0 0.0
  %2874 = vmatpush1.msra.mxu0 0.0
  %2875 = vmatprep.subr.mxu0 0.0
  %2876 = vmatpush1.msra.mxu0 0.0
  %2877 = vmatprep.subr.mxu0 0.0
  %2878 = vmatpush1.msra.mxu0 0.0
  %2879 = vmatprep.subr.mxu0 0.0
  %2880 = vmatpush1.msra.mxu0 0.0
  %2881 = vmatprep.subr.mxu0 0.0
  %2882 = vmatpush1.msra.mxu0 %v2844
  %2883 = vmatprep.subr.mxu0 0.0
  %2884 = vmatpush1.msra.mxu0 %v2842
  %2885 = vmatprep.subr.mxu0 0.0
  %2886 = vmatpush2.msra.mxu0 0.0
  %2887 = vmatprep.subr.mxu0 0.0
  %2888 = vmatpush2.msra.mxu0 0.0
  %2889 = vmatprep.subr.mxu0 0.0
  %2890 = vmatpush2.msra.mxu0 0.0
  %2891 = vmatprep.subr.mxu0 0.0
  %2892 = vmatpush2.msra.mxu0 0.0
  %2893 = vmatprep.subr.mxu0 0.0
  %2894 = vmatpush2.msra.mxu0 0.0
  %2895 = vmatprep.subr.mxu0 0.0
  %2896 = vmatpush2.msra.mxu0 0.0
  %2897 = vmatprep.subr.mxu0 0.0
  %2898 = vmatpush2.msra.mxu0 0.0
  %2899 = vmatprep.subr.mxu0 0.0
  %2900 = vmatpush2.msra.mxu0 0.0
  %2901 = vmatprep.subr.mxu0 0.0
  %2902 = vmatpush2.msra.mxu0 0.0
  %2903 = vmatprep.subr.mxu0 0.0
  %2904 = vmatpush2.msra.mxu0 0.0
  %2905 = vmatprep.subr.mxu0 0.0
  %2906 = vmatpush2.msra.mxu0 0.0
  %2907 = vmatprep.subr.mxu0 0.0
  %2908 = vmatpush2.msra.mxu0 0.0
  %2909 = vmatprep.subr.mxu0 0.0
  %2910 = vmatpush2.msra.mxu0 0.0
  %2911 = vmatprep.subr.mxu0 0.0
  %2912 = vmatpush2.msra.mxu0 0.0
  %2913 = vmatprep.subr.mxu0 0.0
  %2914 = vmatpush2.msra.mxu0 0.0
  %2915 = vmatprep.subr.mxu0 0.0
  %2916 = vmatpush2.msra.mxu0 0.0
  %2917 = vmatprep.mubr.f32.mxu0 0.0
  %2918 = vmatmul.mubr.f32.gmra.mxu0 %v2848
  %v2919 = vpop.f32.mrf.mxu0
  %v2920 = vadd.f32 0.0, %v2919
  %v2921 = vpop.f32.mrf.mxu0
  %2922 = vmatprep.mubr.f32.mxu0 0.0
  %2923 = vmatmul.mubr.f32.gmra.mxu0 %v2851
  %v2924 = vpop.f32.mrf.mxu0
  %v2925 = vadd.f32 0.0, %v2924
  %v2926 = vpop.f32.mrf.mxu0
  %2927 = vdwg.mxu0
  %v2929 = vsel %vm327, %v2920, 0
  %v2932 = vsel %vm327, %v2925, 0
  %2934 = vmatprep.subr.mxu0 0.0
  %2935 = vmatpush1.msra.mxu0 0.0
  %2936 = vmatprep.subr.mxu0 0.0
  %2937 = vmatpush1.msra.mxu0 0.0
  %2938 = vmatprep.subr.mxu0 0.0
  %2939 = vmatpush1.msra.mxu0 0.0
  %2940 = vmatprep.subr.mxu0 0.0
  %2941 = vmatpush1.msra.mxu0 0.0
  %2942 = vmatprep.subr.mxu0 0.0
  %2943 = vmatpush1.msra.mxu0 0.0
  %2944 = vmatprep.subr.mxu0 0.0
  %2945 = vmatpush1.msra.mxu0 0.0
  %2946 = vmatprep.subr.mxu0 0.0
  %2947 = vmatpush1.msra.mxu0 0.0
  %2948 = vmatprep.subr.mxu0 0.0
  %2949 = vmatpush1.msra.mxu0 0.0
  %2950 = vmatprep.subr.mxu0 0.0
  %2951 = vmatpush1.msra.mxu0 0.0
  %2952 = vmatprep.subr.mxu0 0.0
  %2953 = vmatpush1.msra.mxu0 0.0
  %2954 = vmatprep.subr.mxu0 0.0
  %2955 = vmatpush1.msra.mxu0 0.0
  %2956 = vmatprep.subr.mxu0 0.0
  %2957 = vmatpush1.msra.mxu0 0.0
  %2958 = vmatprep.subr.mxu0 0.0
  %2959 = vmatpush1.msra.mxu0 0.0
  %2960 = vmatprep.subr.mxu0 0.0
  %2961 = vmatpush1.msra.mxu0 0.0
  %2962 = vmatprep.subr.mxu0 0.0
  %2963 = vmatpush1.msra.mxu0 0.0
  %2964 = vmatprep.subr.mxu0 0.0
  %2965 = vmatpush1.msra.mxu0 %v1868
  %2966 = vmatprep.subr.mxu0 0.0
  %2967 = vmatpush2.msra.mxu0 0.0
  %2968 = vmatprep.subr.mxu0 0.0
  %2969 = vmatpush2.msra.mxu0 0.0
  %2970 = vmatprep.subr.mxu0 0.0
  %2971 = vmatpush2.msra.mxu0 0.0
  %2972 = vmatprep.subr.mxu0 0.0
  %2973 = vmatpush2.msra.mxu0 0.0
  %2974 = vmatprep.subr.mxu0 0.0
  %2975 = vmatpush2.msra.mxu0 0.0
  %2976 = vmatprep.subr.mxu0 0.0
  %2977 = vmatpush2.msra.mxu0 0.0
  %2978 = vmatprep.subr.mxu0 0.0
  %2979 = vmatpush2.msra.mxu0 0.0
  %2980 = vmatprep.subr.mxu0 0.0
  %2981 = vmatpush2.msra.mxu0 0.0
  %2982 = vmatprep.subr.mxu0 0.0
  %2983 = vmatpush2.msra.mxu0 0.0
  %2984 = vmatprep.subr.mxu0 0.0
  %2985 = vmatpush2.msra.mxu0 0.0
  %2986 = vmatprep.subr.mxu0 0.0
  %2987 = vmatpush2.msra.mxu0 0.0
  %2988 = vmatprep.subr.mxu0 0.0
  %2989 = vmatpush2.msra.mxu0 0.0
  %2990 = vmatprep.subr.mxu0 0.0
  %2991 = vmatpush2.msra.mxu0 0.0
  %2992 = vmatprep.subr.mxu0 0.0
  %2993 = vmatpush2.msra.mxu0 0.0
  %2994 = vmatprep.subr.mxu0 0.0
  %2995 = vmatpush2.msra.mxu0 0.0
  %2996 = vmatprep.subr.mxu0 0.0
  %2997 = vmatpush2.msra.mxu0 0.0
  %2998 = vmatprep.mubr.f32.mxu0 0.0
  %2999 = vmatmul.mubr.f32.gmra.mxu0 %v2929
  %v3000 = vpop.f32.mrf.mxu0
  %v3001 = vadd.f32 0.0, %v3000
  %v3002 = vpop.f32.mrf.mxu0
  %3003 = vmatprep.mubr.f32.mxu0 0.0
  %3004 = vmatmul.mubr.f32.gmra.mxu0 %v2932
  %v3005 = vpop.f32.mrf.mxu0
  %v3006 = vadd.f32 0.0, %v3005
  %v3007 = vpop.f32.mrf.mxu0
  %3008 = vdwg.mxu0
  %v3009 = vadd.f32 %v2722, %v3001
  %v3010 = vadd.f32 %v2723, %v3006
  %v3011 = vadd.f32 %v1722, %v3009
  %v3012 = vadd.f32 %v1723, %v3010
  %s3013 = scalar_lea.vmem %s9, 1
  %v3014 = vld [vmem:[%s3013] sm:$0x1]
  %v3016 = vlaneseq
  %v3017 = vshrl.u32 %v3016, 7
  %v3018 = vsub.s32 0, %v3017
  %v3019 = vrot.slane %v3014, %v3018
  %v3021 = vadd.f32 %v3011, %v3019
  %v3022 = vadd.f32 %v3012, %v3019
  %s3023 = scalar_lea.vmem %s10, 1
  %v3024 = vld [vmem:[%s3023] sm:$0x1]
  %s3025 = scalar_lea.vmem %s11, 1
  %v3026 = vld [vmem:[%s3025] sm:$0x1]
  %v3027 = vsel %vm181, %v3021, 0.0
  %3028 = vadd.xlane.f32.xlu0 %v3027
  %v3029 = vpop.xlane.xlu0 %3028
  %v3030 = vsel %vm181, %v3022, 0.0
  %3031 = vadd.xlane.f32.xlu0 %v3030
  %v3032 = vpop.xlane.xlu0 %3031
  %v3033 = vmul.f32 %v3029, %v188
  %v3034 = vmul.f32 %v3032, %v188
  %v3035 = vsub.f32 %v3021, %v3033
  %v3036 = vsub.f32 %v3022, %v3034
  %v3037 = vmul.f32 %v3035, %v3035
  %v3038 = vmul.f32 %v3036, %v3036
  %v3039 = vsel %vm181, %v3037, 0.0
  %3040 = vadd.xlane.f32.xlu0 %v3039
  %v3041 = vpop.xlane.xlu0 %3040
  %v3042 = vsel %vm181, %v3038, 0.0
  %3043 = vadd.xlane.f32.xlu0 %v3042
  %v3044 = vpop.xlane.xlu0 %3043
  %v3045 = vmul.f32 %v3041, %v188
  %v3046 = vmul.f32 %v3044, %v188
  %v3047 = vadd.f32 %v3045, 1e-12
  %v3048 = vadd.f32 %v3046, 1e-12
  %v3049 = vrsqrt.pop %v3047
  %v3050 = vrsqrt.pop %v3048
  %v3051 = vmul.f32 %v3035, %v3049
  %v3052 = vmul.f32 %v3036, %v3050
  %v3054 = vlaneseq
  %v3055 = vshrl.u32 %v3054, 7
  %v3056 = vsub.s32 0, %v3055
  %v3057 = vrot.slane %v3024, %v3056
  %v3059 = vmul.f32 %v3051, %v3057
  %v3060 = vmul.f32 %v3052, %v3057
  %v3062 = vlaneseq
  %v3063 = vshrl.u32 %v3062, 7
  %v3064 = vsub.s32 0, %v3063
  %v3065 = vrot.slane %v3026, %v3064
  %v3067 = vadd.f32 %v3059, %v3065
  %v3068 = vadd.f32 %v3060, %v3065
  %s3069 = scalar_lea.vmem %s12, 32
  %v3070 = vld [vmem:[%s3069] sm:$0xff]
  %v3071 = vld [vmem:[%s3069 + $0x8] sm:$0xff]
  %v3072 = vld [vmem:[%s3069 + $0x10] sm:$0xff]
  %v3073 = vld [vmem:[%s3069 + $0x18] sm:$0xff]
  %s3074 = scalar_lea.vmem %s13, 1
  %v3075 = vld [vmem:[%s3074] sm:$0x1]
  %v3077 = vlaneseq
  %v3078 = vshrl.u32 %v3077, 7
  %v3079 = vsub.s32 0, %v3078
  %v3080 = vrot.slane %v3075, %v3079
  %v3083 = vsel %vm181, %v3067, 0
  %v3086 = vsel %vm181, %v3068, 0
  %3088 = vmatprep.subr.mxu0 0.0
  %3089 = vmatpush1.msra.mxu0 0.0
  %3090 = vmatprep.subr.mxu0 0.0
  %3091 = vmatpush1.msra.mxu0 0.0
  %3092 = vmatprep.subr.mxu0 0.0
  %3093 = vmatpush1.msra.mxu0 0.0
  %3094 = vmatprep.subr.mxu0 0.0
  %3095 = vmatpush1.msra.mxu0 0.0
  %3096 = vmatprep.subr.mxu0 0.0
  %3097 = vmatpush1.msra.mxu0 0.0
  %3098 = vmatprep.subr.mxu0 0.0
  %3099 = vmatpush1.msra.mxu0 0.0
  %3100 = vmatprep.subr.mxu0 0.0
  %3101 = vmatpush1.msra.mxu0 0.0
  %3102 = vmatprep.subr.mxu0 0.0
  %3103 = vmatpush1.msra.mxu0 0.0
  %3104 = vmatprep.subr.mxu0 0.0
  %3105 = vmatpush1.msra.mxu0 0.0
  %3106 = vmatprep.subr.mxu0 0.0
  %3107 = vmatpush1.msra.mxu0 0.0
  %3108 = vmatprep.subr.mxu0 0.0
  %3109 = vmatpush1.msra.mxu0 0.0
  %3110 = vmatprep.subr.mxu0 0.0
  %3111 = vmatpush1.msra.mxu0 0.0
  %3112 = vmatprep.subr.mxu0 0.0
  %3113 = vmatpush1.msra.mxu0 %v3073
  %3114 = vmatprep.subr.mxu0 0.0
  %3115 = vmatpush1.msra.mxu0 %v3072
  %3116 = vmatprep.subr.mxu0 0.0
  %3117 = vmatpush1.msra.mxu0 %v3071
  %3118 = vmatprep.subr.mxu0 0.0
  %3119 = vmatpush1.msra.mxu0 %v3070
  %3120 = vmatprep.subr.mxu0 0.0
  %3121 = vmatpush2.msra.mxu0 0.0
  %3122 = vmatprep.subr.mxu0 0.0
  %3123 = vmatpush2.msra.mxu0 0.0
  %3124 = vmatprep.subr.mxu0 0.0
  %3125 = vmatpush2.msra.mxu0 0.0
  %3126 = vmatprep.subr.mxu0 0.0
  %3127 = vmatpush2.msra.mxu0 0.0
  %3128 = vmatprep.subr.mxu0 0.0
  %3129 = vmatpush2.msra.mxu0 0.0
  %3130 = vmatprep.subr.mxu0 0.0
  %3131 = vmatpush2.msra.mxu0 0.0
  %3132 = vmatprep.subr.mxu0 0.0
  %3133 = vmatpush2.msra.mxu0 0.0
  %3134 = vmatprep.subr.mxu0 0.0
  %3135 = vmatpush2.msra.mxu0 0.0
  %3136 = vmatprep.subr.mxu0 0.0
  %3137 = vmatpush2.msra.mxu0 0.0
  %3138 = vmatprep.subr.mxu0 0.0
  %3139 = vmatpush2.msra.mxu0 0.0
  %3140 = vmatprep.subr.mxu0 0.0
  %3141 = vmatpush2.msra.mxu0 0.0
  %3142 = vmatprep.subr.mxu0 0.0
  %3143 = vmatpush2.msra.mxu0 0.0
  %3144 = vmatprep.subr.mxu0 0.0
  %3145 = vmatpush2.msra.mxu0 0.0
  %3146 = vmatprep.subr.mxu0 0.0
  %3147 = vmatpush2.msra.mxu0 0.0
  %3148 = vmatprep.subr.mxu0 0.0
  %3149 = vmatpush2.msra.mxu0 0.0
  %3150 = vmatprep.subr.mxu0 0.0
  %3151 = vmatpush2.msra.mxu0 0.0
  %3152 = vmatprep.mubr.f32.mxu0 0.0
  %3153 = vmatmul.mubr.f32.gmra.mxu0 %v3083
  %v3154 = vpop.f32.mrf.mxu0
  %v3155 = vadd.f32 %v3080, %v3154
  %v3156 = vpop.f32.mrf.mxu0
  %3157 = vmatprep.mubr.f32.mxu0 0.0
  %3158 = vmatmul.mubr.f32.gmra.mxu0 %v3086
  %v3159 = vpop.f32.mrf.mxu0
  %v3160 = vadd.f32 %v3080, %v3159
  %v3161 = vpop.f32.mrf.mxu0
  %3162 = vdwg.mxu0
  %v3163 = vmul.f32 %v3155, 0.5
  %v3164 = vmul.f32 %v3160, 0.5
  %v3165 = vmul.f32 %v3155, 0.70710677
  %v3166 = vmul.f32 %v3160, 0.70710677
  %v3167 = verf.f32.pop %v3165
  %v3168 = verf.f32.pop %v3166
  %v3169 = vadd.f32 %v3167, 1.0
  %v3170 = vadd.f32 %v3168, 1.0
  %v3171 = vmul.f32 %v3163, %v3169
  %v3172 = vmul.f32 %v3164, %v3170
  %s3173 = scalar_lea.vmem %s14, 128
  %v3174 = vld [vmem:[%s3173] sm:$0xff]
  %v3175 = vld [vmem:[%s3173 + $0x8] sm:$0xff]
  %v3176 = vld [vmem:[%s3173 + $0x10] sm:$0xff]
  %v3177 = vld [vmem:[%s3173 + $0x18] sm:$0xff]
  %v3178 = vld [vmem:[%s3173 + $0x20] sm:$0xff]
  %v3179 = vld [vmem:[%s3173 + $0x28] sm:$0xff]
  %v3180 = vld [vmem:[%s3173 + $0x30] sm:$0xff]
  %v3181 = vld [vmem:[%s3173 + $0x38] sm:$0xff]
  %v3182 = vld [vmem:[%s3173 + $0x40] sm:$0xff]
  %v3183 = vld [vmem:[%s3173 + $0x48] sm:$0xff]
  %v3184 = vld [vmem:[%s3173 + $0x50] sm:$0xff]
  %v3185 = vld [vmem:[%s3173 + $0x58] sm:$0xff]
  %v3186 = vld [vmem:[%s3173 + $0x60] sm:$0xff]
  %v3187 = vld [vmem:[%s3173 + $0x68] sm:$0xff]
  %v3188 = vld [vmem:[%s3173 + $0x70] sm:$0xff]
  %v3189 = vld [vmem:[%s3173 + $0x78] sm:$0xff]
  %3190 = vmatprep.subr.mxu0 0.0
  %3191 = vmatpush1.msra.mxu0 %v3189
  %3192 = vmatprep.subr.mxu0 0.0
  %3193 = vmatpush1.msra.mxu0 %v3188
  %3194 = vmatprep.subr.mxu0 0.0
  %3195 = vmatpush1.msra.mxu0 %v3187
  %3196 = vmatprep.subr.mxu0 0.0
  %3197 = vmatpush1.msra.mxu0 %v3186
  %3198 = vmatprep.subr.mxu0 0.0
  %3199 = vmatpush1.msra.mxu0 %v3185
  %3200 = vmatprep.subr.mxu0 0.0
  %3201 = vmatpush1.msra.mxu0 %v3184
  %3202 = vmatprep.subr.mxu0 0.0
  %3203 = vmatpush1.msra.mxu0 %v3183
  %3204 = vmatprep.subr.mxu0 0.0
  %3205 = vmatpush1.msra.mxu0 %v3182
  %3206 = vmatprep.subr.mxu0 0.0
  %3207 = vmatpush1.msra.mxu0 %v3181
  %3208 = vmatprep.subr.mxu0 0.0
  %3209 = vmatpush1.msra.mxu0 %v3180
  %3210 = vmatprep.subr.mxu0 0.0
  %3211 = vmatpush1.msra.mxu0 %v3179
  %3212 = vmatprep.subr.mxu0 0.0
  %3213 = vmatpush1.msra.mxu0 %v3178
  %3214 = vmatprep.subr.mxu0 0.0
  %3215 = vmatpush1.msra.mxu0 %v3177
  %3216 = vmatprep.subr.mxu0 0.0
  %3217 = vmatpush1.msra.mxu0 %v3176
  %3218 = vmatprep.subr.mxu0 0.0
  %3219 = vmatpush1.msra.mxu0 %v3175
  %3220 = vmatprep.subr.mxu0 0.0
  %3221 = vmatpush1.msra.mxu0 %v3174
  %3222 = vmatprep.subr.mxu0 0.0
  %3223 = vmatpush2.msra.mxu0 0.0
  %3224 = vmatprep.subr.mxu0 0.0
  %3225 = vmatpush2.msra.mxu0 0.0
  %3226 = vmatprep.subr.mxu0 0.0
  %3227 = vmatpush2.msra.mxu0 0.0
  %3228 = vmatprep.subr.mxu0 0.0
  %3229 = vmatpush2.msra.mxu0 0.0
  %3230 = vmatprep.subr.mxu0 0.0
  %3231 = vmatpush2.msra.mxu0 0.0
  %3232 = vmatprep.subr.mxu0 0.0
  %3233 = vmatpush2.msra.mxu0 0.0
  %3234 = vmatprep.subr.mxu0 0.0
  %3235 = vmatpush2.msra.mxu0 0.0
  %3236 = vmatprep.subr.mxu0 0.0
  %3237 = vmatpush2.msra.mxu0 0.0
  %3238 = vmatprep.subr.mxu0 0.0
  %3239 = vmatpush2.msra.mxu0 0.0
  %3240 = vmatprep.subr.mxu0 0.0
  %3241 = vmatpush2.msra.mxu0 0.0
  %3242 = vmatprep.subr.mxu0 0.0
  %3243 = vmatpush2.msra.mxu0 0.0
  %3244 = vmatprep.subr.mxu0 0.0
  %3245 = vmatpush2.msra.mxu0 0.0
  %3246 = vmatprep.subr.mxu0 0.0
  %3247 = vmatpush2.msra.mxu0 0.0
  %3248 = vmatprep.subr.mxu0 0.0
  %3249 = vmatpush2.msra.mxu0 0.0
  %3250 = vmatprep.subr.mxu0 0.0
  %3251 = vmatpush2.msra.mxu0 0.0
  %3252 = vmatprep.subr.mxu0 0.0
  %3253 = vmatpush2.msra.mxu0 0.0
  %3254 = vmatprep.mubr.f32.mxu0 0.0
  %3255 = vmatmul.mubr.f32.gmra.mxu0 %v3171
  %v3256 = vpop.f32.mrf.mxu0
  %v3257 = vadd.f32 0.0, %v3256
  %v3258 = vpop.f32.mrf.mxu0
  %3259 = vmatprep.mubr.f32.mxu0 0.0
  %3260 = vmatmul.mubr.f32.gmra.mxu0 %v3172
  %v3261 = vpop.f32.mrf.mxu0
  %v3262 = vadd.f32 0.0, %v3261
  %v3263 = vpop.f32.mrf.mxu0
  %3264 = vdwg.mxu0
  %v3265 = vadd.f32 %v3021, %v3257
  %v3266 = vadd.f32 %v3022, %v3262
  %s3267 = scalar_lea.vmem %s15, 1
  %v3268 = vld [vmem:[%s3267] sm:$0x1]
  %v3270 = vlaneseq
  %v3271 = vshrl.u32 %v3270, 7
  %v3272 = vsub.s32 0, %v3271
  %v3273 = vrot.slane %v3268, %v3272
  %v3275 = vadd.f32 %v3265, %v3273
  %v3276 = vadd.f32 %v3266, %v3273
  %v3277 = vld [vmem:[%s16] sm:$0x1]
  %v3278 = vld [vmem:[%s17] sm:$0x1]
  %v3279 = vsel %vm181, %v3275, 0.0
  %3280 = vadd.xlane.f32.xlu0 %v3279
  %v3281 = vpop.xlane.xlu0 %3280
  %v3282 = vsel %vm181, %v3276, 0.0
  %3283 = vadd.xlane.f32.xlu0 %v3282
  %v3284 = vpop.xlane.xlu0 %3283
  %v3285 = vmul.f32 %v3281, %v188
  %v3286 = vmul.f32 %v3284, %v188
  %v3287 = vsub.f32 %v3275, %v3285
  %v3288 = vsub.f32 %v3276, %v3286
  %v3289 = vmul.f32 %v3287, %v3287
  %v3290 = vmul.f32 %v3288, %v3288
  %v3291 = vsel %vm181, %v3289, 0.0
  %3292 = vadd.xlane.f32.xlu0 %v3291
  %v3293 = vpop.xlane.xlu0 %3292
  %v3294 = vsel %vm181, %v3290, 0.0
  %3295 = vadd.xlane.f32.xlu0 %v3294
  %v3296 = vpop.xlane.xlu0 %3295
  %v3297 = vmul.f32 %v3293, %v188
  %v3298 = vmul.f32 %v3296, %v188
  %v3299 = vadd.f32 %v3297, 1e-12
  %v3300 = vadd.f32 %v3298, 1e-12
  %v3301 = vrsqrt.pop %v3299
  %v3302 = vrsqrt.pop %v3300
  %v3303 = vmul.f32 %v3287, %v3301
  %v3304 = vmul.f32 %v3288, %v3302
  %v3306 = vlaneseq
  %v3307 = vshrl.u32 %v3306, 7
  %v3308 = vsub.s32 0, %v3307
  %v3309 = vrot.slane %v3277, %v3308
  %v3311 = vmul.f32 %v3303, %v3309
  %v3312 = vmul.f32 %v3304, %v3309
  %v3314 = vlaneseq
  %v3315 = vshrl.u32 %v3314, 7
  %v3316 = vsub.s32 0, %v3315
  %v3317 = vrot.slane %v3278, %v3316
  %v3319 = vadd.f32 %v3311, %v3317
  %v3320 = vadd.f32 %v3312, %v3317
  %v3321 = vld [vmem:[%s18] sm:$0xff]
  %v3322 = vld [vmem:[%s18 + $0x8] sm:$0xff]
  %v3323 = vld [vmem:[%s18 + $0x10] sm:$0xff]
  %v3324 = vld [vmem:[%s18 + $0x18] sm:$0xff]
  %v3325 = vld [vmem:[%s19] sm:$0x1]
  %v3327 = vlaneseq
  %v3328 = vshrl.u32 %v3327, 7
  %v3329 = vsub.s32 0, %v3328
  %v3330 = vrot.slane %v3325, %v3329
  %v3333 = vsel %vm181, %v3319, 0
  %v3336 = vsel %vm181, %v3320, 0
  %3338 = vmatprep.subr.mxu0 0.0
  %3339 = vmatpush1.msra.mxu0 0.0
  %3340 = vmatprep.subr.mxu0 0.0
  %3341 = vmatpush1.msra.mxu0 0.0
  %3342 = vmatprep.subr.mxu0 0.0
  %3343 = vmatpush1.msra.mxu0 0.0
  %3344 = vmatprep.subr.mxu0 0.0
  %3345 = vmatpush1.msra.mxu0 0.0
  %3346 = vmatprep.subr.mxu0 0.0
  %3347 = vmatpush1.msra.mxu0 0.0
  %3348 = vmatprep.subr.mxu0 0.0
  %3349 = vmatpush1.msra.mxu0 0.0
  %3350 = vmatprep.subr.mxu0 0.0
  %3351 = vmatpush1.msra.mxu0 0.0
  %3352 = vmatprep.subr.mxu0 0.0
  %3353 = vmatpush1.msra.mxu0 0.0
  %3354 = vmatprep.subr.mxu0 0.0
  %3355 = vmatpush1.msra.mxu0 0.0
  %3356 = vmatprep.subr.mxu0 0.0
  %3357 = vmatpush1.msra.mxu0 0.0
  %3358 = vmatprep.subr.mxu0 0.0
  %3359 = vmatpush1.msra.mxu0 0.0
  %3360 = vmatprep.subr.mxu0 0.0
  %3361 = vmatpush1.msra.mxu0 0.0
  %3362 = vmatprep.subr.mxu0 0.0
  %3363 = vmatpush1.msra.mxu0 %v3324
  %3364 = vmatprep.subr.mxu0 0.0
  %3365 = vmatpush1.msra.mxu0 %v3323
  %3366 = vmatprep.subr.mxu0 0.0
  %3367 = vmatpush1.msra.mxu0 %v3322
  %3368 = vmatprep.subr.mxu0 0.0
  %3369 = vmatpush1.msra.mxu0 %v3321
  %3370 = vmatprep.subr.mxu0 0.0
  %3371 = vmatpush2.msra.mxu0 0.0
  %3372 = vmatprep.subr.mxu0 0.0
  %3373 = vmatpush2.msra.mxu0 0.0
  %3374 = vmatprep.subr.mxu0 0.0
  %3375 = vmatpush2.msra.mxu0 0.0
  %3376 = vmatprep.subr.mxu0 0.0
  %3377 = vmatpush2.msra.mxu0 0.0
  %3378 = vmatprep.subr.mxu0 0.0
  %3379 = vmatpush2.msra.mxu0 0.0
  %3380 = vmatprep.subr.mxu0 0.0
  %3381 = vmatpush2.msra.mxu0 0.0
  %3382 = vmatprep.subr.mxu0 0.0
  %3383 = vmatpush2.msra.mxu0 0.0
  %3384 = vmatprep.subr.mxu0 0.0
  %3385 = vmatpush2.msra.mxu0 0.0
  %3386 = vmatprep.subr.mxu0 0.0
  %3387 = vmatpush2.msra.mxu0 0.0
  %3388 = vmatprep.subr.mxu0 0.0
  %3389 = vmatpush2.msra.mxu0 0.0
  %3390 = vmatprep.subr.mxu0 0.0
  %3391 = vmatpush2.msra.mxu0 0.0
  %3392 = vmatprep.subr.mxu0 0.0
  %3393 = vmatpush2.msra.mxu0 0.0
  %3394 = vmatprep.subr.mxu0 0.0
  %3395 = vmatpush2.msra.mxu0 0.0
  %3396 = vmatprep.subr.mxu0 0.0
  %3397 = vmatpush2.msra.mxu0 0.0
  %3398 = vmatprep.subr.mxu0 0.0
  %3399 = vmatpush2.msra.mxu0 0.0
  %3400 = vmatprep.subr.mxu0 0.0
  %3401 = vmatpush2.msra.mxu0 0.0
  %3402 = vmatprep.mubr.f32.mxu0 0.0
  %3403 = vmatmul.mubr.f32.gmra.mxu0 %v3333
  %v3404 = vpop.f32.mrf.mxu0
  %v3405 = vadd.f32 %v3330, %v3404
  %v3406 = vpop.f32.mrf.mxu0
  %3407 = vmatprep.mubr.f32.mxu0 0.0
  %3408 = vmatmul.mubr.f32.gmra.mxu0 %v3336
  %v3409 = vpop.f32.mrf.mxu0
  %v3410 = vadd.f32 %v3330, %v3409
  %v3411 = vpop.f32.mrf.mxu0
  %3412 = vdwg.mxu0
  %3413 = vst [vmem:[%s20] sm:$0xff] %v3405
  %3414 = vst [vmem:[%s20 + $0x8] sm:$0xff] %v3410
  // Predicated region
  $region82: #{full_vit_forward.1} parent=0 // pred_check
    _
  $region83: #{full_vit_forward.1} parent=0 // pred_check_branch
    %3416 = sbr.rel (0) target = $region85
  $region84: #{full_vit_forward.1} parent=0 // pred_region
    _
  $region85: #{full_vit_forward.1} parent=0 // pred_fallthru
    _
  // Predicated region
  $region86: #{full_vit_forward.1} parent=0 // pred_check
    _
  $region87: #{full_vit_forward.1} parent=0 // pred_check_branch
    %3418 = sbr.rel (0) target = $region89
  $region88: #{full_vit_forward.1} parent=0 // pred_region
    _
  $region89: #{full_vit_forward.1} parent=0 // pred_fallthru
    _

</llo_original>
